<compile_context>
chip_gen: v5e
topology: v5e:2x2
jax: 0.10.0
libtpu: 0.0.40
codegen_flags: <defaults>
</compile_context>

<pallas_src>
import functools

import jax
import jax.numpy as jnp
from jax import lax
from jax.experimental import pallas as pl
from jax.experimental.pallas import tpu as pltpu

NEG_SLOPE = 0.2      # LeakyReLU slope used everywhere in the PyTorch module
NUM_STREAMS = 2      # pkppre / noise GATv2 streams


def _leaky(v):
    return jnp.where(v > 0, v, NEG_SLOPE * v)


def _recip(x):
    # EUP approximate reciprocal + one Newton refinement -> ~f32-accurate, divide off the VALU.
    r = pl.reciprocal(x, approx=True)
    return r * (2.0 - x * r)


# ----------------------------------------------------------------------------
# Fused forward kernel (per grid step: G graphs, row-stacked)
# ----------------------------------------------------------------------------
def fused_gnn_kernel(x_ref, mask_ref, ea_ref, wp_ref, bp_ref, we_ref, att_ref,
                     bias_ref, wc_ref, bc_ref, o_ref, *,
                     heads, out_ch, n_nodes, g_per_blk):
    G, N, C, H = g_per_blk, n_nodes, out_ch, heads
    KH = NUM_STREAMS * H                      # (stream, head) slots = 4
    KHC = KH * C                              # 128 channels

    # --- fat projection for both streams / all heads: [G*N, F] @ [F, 2*KH*C]  (MXU) ---
    x = x_ref[...]                                                                # [G*N, F]
    proj = jnp.dot(x, wp_ref[...], preferred_element_type=jnp.float32) + bp_ref[...]
    xl = proj[:, :KHC]                                                            # source terms
    xr = proj[:, KHC:]                                                            # target terms
    xlg = xl.reshape(G, N, KHC)
    xrg = xr.reshape(G, N, KHC)

    mask = mask_ref[...]                                                          # [G, N, N]
    ea = ea_ref[...]                                                              # [G, N, N]

    # --- GATv2 pre-activation for ALL (stream, head) channels in one pass ---
    # g[g, i, j, c] = x_l[g, j, c] + x_r[g, i, c] + W_e[c] * edge_attr[g, i, j]
    g = (xlg[:, None, :, :] + xrg[:, :, None, :]
         + we_ref[...][None, None, :, :] * ea[:, :, :, None])                     # [G, N, N, KHC]
    prod = _leaky(g) * att_ref[...][None, None, :, :]                             # [G, N, N, KHC]

    # --- per-head logits stacked along sublanes -> ONE masked-softmax pass ---
    logits = jnp.concatenate(
        [jnp.sum(prod[:, :, :, k * C:(k + 1) * C], axis=-1) for k in range(KH)],
        axis=1)                                                                   # [G, KH*N, N]
    mask_t = jnp.concatenate([mask] * KH, axis=1)                                 # [G, KH*N, N]
    logits = jnp.where(mask_t > 0, logits, jnp.float32(-1e30))
    m = jnp.max(logits, axis=-1, keepdims=True)
    p = jnp.exp(logits - m) * mask_t
    denom = jnp.maximum(jnp.sum(p, axis=-1, keepdims=True), jnp.float32(1e-20))
    alpha = p * _recip(denom)                                                     # [G, KH*N, N]

    # --- aggregation: one batched dot per (stream, head); heads averaged (concat=False) ---
    inv_h = jnp.float32(1.0 / H)
    accs = []
    for s in range(NUM_STREAMS):                                                  # static unroll
        acc = jnp.zeros((G, N, C), jnp.float32)
        for h in range(H):                                                        # static unroll
            k = s * H + h
            a_k = alpha[:, k * N:(k + 1) * N, :]                                  # [G, N, N] (sublane slice)
            v_k = xlg[:, :, k * C:(k + 1) * C]                                    # [G, N, C]
            acc = acc + jnp.einsum('gij,gjc->gic', a_k, v_k,
                                   preferred_element_type=jnp.float32)
        accs.append(acc * inv_h)

    # per-stream bias + LeakyReLU (GNN_layer_GATv2.ac); keep lane-concat [h_pkppre | h_noise]
    hcat = jnp.concatenate(accs, axis=-1).reshape(G * N, NUM_STREAMS * C)         # [G*N, 2C]
    hcat = _leaky(hcat + bias_ref[...])

    # --- Conv1d(2,2,7,pad=3) as block-Toeplitz matmul (MXU) + softmax over the 2 channels ---
    y = jnp.dot(hcat, wc_ref[...], preferred_element_type=jnp.float32) + bc_ref[...]   # [G*N, 2C]
    y0 = y[:, :C]
    y1 = y[:, C:2 * C]
    mx = jnp.maximum(y0, y1)
    e0 = jnp.exp(y0 - mx)
    e1 = jnp.exp(y1 - mx)
    inv = _recip(e0 + e1)
    s0 = e0 * inv
    s1 = e1 * inv

    pad_cols = o_ref.shape[-1] - 2 * C                       # lane-dense 128-wide store
    if pad_cols > 0:
        o_ref[...] = jnp.concatenate(
            [s0, s1, jnp.zeros((G * N, pad_cols), jnp.float32)], axis=-1)
    else:
        o_ref[...] = jnp.concatenate([s0, s1], axis=-1)


def fused_gnn(x_rows, mask, eattr, fused, *, heads, out_ch, n_nodes, g_per_blk):
    """x_rows: [B*N, F] row-stacked node features; mask/eattr: [B, N, N]."""
    wp, bp, we, att, bias, wc, bc = fused
    B = mask.shape[0]
    assert B % g_per_blk == 0
    GN = g_per_blk * n_nodes
    F = x_rows.shape[-1]
    out_w = -(-2 * out_ch // 128) * 128                      # pad output width to 128 lanes

    kern = functools.partial(fused_gnn_kernel, heads=heads, out_ch=out_ch,
                             n_nodes=n_nodes, g_per_blk=g_per_blk)
    grid = (B // g_per_blk,)
    in_specs = [
        pl.BlockSpec((GN, F), lambda b: (b, 0)),
        pl.BlockSpec((g_per_blk, n_nodes, n_nodes), lambda b: (b, 0, 0)),
        pl.BlockSpec((g_per_blk, n_nodes, n_nodes), lambda b: (b, 0, 0)),
        pl.BlockSpec(wp.shape, lambda b: (0, 0)),            # weights: same block every step
        pl.BlockSpec(bp.shape, lambda b: (0, 0)),
        pl.BlockSpec(we.shape, lambda b: (0, 0)),
        pl.BlockSpec(att.shape, lambda b: (0, 0)),
        pl.BlockSpec(bias.shape, lambda b: (0, 0)),
        pl.BlockSpec(wc.shape, lambda b: (0, 0)),
        pl.BlockSpec(bc.shape, lambda b: (0, 0)),
    ]
    out_specs = pl.BlockSpec((GN, out_w), lambda b: (b, 0))
    return pl.pallas_call(
        kern,
        out_shape=jax.ShapeDtypeStruct((B * n_nodes, out_w), jnp.float32),
        grid=grid,
        in_specs=in_specs,
        out_specs=out_specs,
        compiler_params=pltpu.CompilerParams(dimension_semantics=("parallel",)),
    )(x_rows, mask, eattr, wp, bp, we, att, bias, wc, bc)


# ----------------------------------------------------------------------------
# One-time parameter packing + graph densification (plain-JAX glue, hoisted out of the forward)
# ----------------------------------------------------------------------------
def pack_params(p1, p2, conv_w, conv_b, F):
    """Pack both GAT streams + the conv stage into the fused-kernel layout.  Call ONCE."""
    w_proj = jnp.concatenate([p1["wl"], p2["wl"], p1["wr"], p2["wr"]], axis=1)    # [F, 4*H*C]
    b_proj = jnp.concatenate([p1["bl"], p2["bl"], p1["br"], p2["br"]], axis=1)    # [1, 4*H*C]
    we_all = jnp.concatenate([p1["we"].reshape(1, -1), p2["we"].reshape(1, -1)], axis=1)
    att_all = jnp.concatenate([p1["att"].reshape(1, -1), p2["att"].reshape(1, -1)], axis=1)
    bias_cat = jnp.concatenate([p1["bias"], p2["bias"]], axis=1)                  # [1, 2*C]

    # Conv1d (PyTorch cross-correlation, weight [oc, ic, k], padding=K//2) as block-Toeplitz:
    #   W[ic*F + s, oc*F + t] = conv_w[oc, ic, s - t + pad]  if the tap index is valid, else 0.
    oc_n, ic_n, K = conv_w.shape
    assert oc_n == NUM_STREAMS and ic_n == NUM_STREAMS
    pad = K // 2
    s_idx = jnp.arange(F)[:, None]
    t_idx = jnp.arange(F)[None, :]
    kk = s_idx - t_idx + pad
    valid = (kk >= 0) & (kk < K)
    taps = conv_w[:, :, jnp.clip(kk, 0, K - 1)]                                   # [oc, ic, s, t]
    toep = jnp.where(valid[None, None], taps, 0.0)
    w_conv = jnp.transpose(toep, (1, 2, 0, 3)).reshape(NUM_STREAMS * F, NUM_STREAMS * F)
    b_conv = jnp.repeat(conv_b, F).reshape(1, NUM_STREAMS * F)

    f32 = lambda a: a.astype(jnp.float32)
    return tuple(map(f32, (w_proj, b_proj, we_all, att_all, bias_cat, w_conv, b_conv)))


def densify_graph(edge_index, edges_attr, n):
    """Dense adjacency mask + edge-attr matrix with self-loops (PyG fill_value='mean')."""
    src, dst = edge_index[0], edge_index[1]
    mask0 = jnp.zeros((n, n), jnp.float32).at[dst, src].set(1.0)
    ed0 = jnp.zeros((n, n), jnp.float32).at[dst, src].set(edges_attr[:, 0])
    deg = mask0.sum(axis=1)
    mean_in = jnp.where(deg > 0, ed0.sum(axis=1) / jnp.maximum(deg, 1.0), 0.0)
    diag = jnp.arange(n)
    mask = mask0.at[diag, diag].set(1.0)
    eattr = ed0.at[diag, diag].set(mean_in)
    return mask, eattr


def init_gat_params(key, F, H, C, scale=0.1):
    ks = jax.random.split(key, 7)
    return dict(
        wl=scale * jax.random.normal(ks[0], (F, H * C), jnp.float32),
        bl=scale * jax.random.normal(ks[1], (1, H * C), jnp.float32),
        wr=scale * jax.random.normal(ks[2], (F, H * C), jnp.float32),
        br=scale * jax.random.normal(ks[3], (1, H * C), jnp.float32),
        we=scale * jax.random.normal(ks[4], (H, C), jnp.float32),     # lin_edge (edge_dim=1)
        att=scale * jax.random.normal(ks[5], (H, C), jnp.float32),
        bias=scale * jax.random.normal(ks[6], (1, C), jnp.float32),
    )


# ----------------------------------------------------------------------------
# Jitted forward (kernel call + trivial reshape/slice only)
# ----------------------------------------------------------------------------
@functools.partial(jax.jit, static_argnames=("heads", "out_ch", "g_per_blk"))
def gnn_forward(x_bn1f, mask, eattr, fused, *, heads, out_ch, g_per_blk=8):
    B, N, _, F = x_bn1f.shape
    x = x_bn1f[:, :, 0, :].astype(jnp.float32)                # data.x.squeeze(1) per graph
    Bp = -(-B // g_per_blk) * g_per_blk                       # pad batch to a chunk multiple
    if Bp != B:
        padg = Bp - B
        x = jnp.concatenate([x, jnp.zeros((padg, N, F), jnp.float32)], axis=0)
        mask = jnp.concatenate([mask, jnp.zeros((padg, N, N), jnp.float32)], axis=0)
        eattr = jnp.concatenate([eattr, jnp.zeros((padg, N, N), jnp.float32)], axis=0)
    out_pad = fused_gnn(x.reshape(Bp * N, F), mask, eattr, fused,
                        heads=heads, out_ch=out_ch, n_nodes=N, g_per_blk=g_per_blk)
    out2f = out_pad[:B * N, :2 * out_ch]                      # drop lane pad + padded graphs
    return out2f.reshape(B, N, 2, out_ch)                     # PyTorch NCW per graph: [N, 2, F]


# ----------------------------------------------------------------------------
# Pure-JAX reference (for correctness check only)
# ----------------------------------------------------------------------------
def _gatv2_ref(x, mask, ea, p, heads):
    C = p["bias"].shape[-1]
    H = heads
    hi = lax.Precision.HIGHEST
    xl = jnp.dot(x, p["wl"], precision=hi) + p["bl"]
    xr = jnp.dot(x, p["wr"], precision=hi) + p["br"]
    we = p["we"].reshape(-1)
    att = p["att"].reshape(-1)
    out = jnp.zeros((x.shape[0], C), jnp.float32)
    for h in range(H):
        sl = slice(h * C, (h + 1) * C)
        g = xl[None, :, sl] + xr[:, None, sl] + we[sl][None, None, :] * ea[:, :, None]
        e = jnp.sum(jnp.where(g > 0, g, NEG_SLOPE * g) * att[sl][None, None, :], axis=-1)
        e = jnp.where(mask > 0, e, -jnp.inf)
        a = jnp.where(mask > 0, jax.nn.softmax(e, axis=-1), 0.0)
        out = out + jnp.dot(a, xl[:, sl], precision=hi)
    out = out / H + p["bias"][0]
    return jnp.where(out > 0, out, NEG_SLOPE * out)


def reference_forward(x_bn1f, mask_b, ea_b, p1, p2, conv_w, conv_b, heads):
    def one(x1, m, e):
        x = x1[:, 0, :]
        h = jnp.stack([_gatv2_ref(x, m, e, p1, heads),
                       _gatv2_ref(x, m, e, p2, heads)], axis=1)          # [N, 2, F]
        y = lax.conv_general_dilated(h, conv_w, window_strides=(1,),
                                     padding=[(conv_w.shape[-1] // 2,) * 2],
                                     dimension_numbers=("NCH", "OIH", "NCH"),
                                     precision=lax.Precision.HIGHEST)
        y = y + conv_b[None, :, None]
        return jax.nn.softmax(y, axis=1)
    return jax.vmap(one)(x_bn1f, mask_b, ea_b)


if __name__ == "__main__":
    B, N, F, H, K = 16, 8, 32, 2, 7                           # 16 graphs, 8 nodes, waveform_len=32
    G_PER_BLK = 8                                             # graphs per grid step (grid=(2,))

    key = jax.random.PRNGKey(0)
    kx, ke, kp1, kp2, kw, kb = jax.random.split(key, 6)

    # data.x per graph: [N, 1, waveform_len]
    x_batch = jax.random.normal(kx, (B, N, 1, F), jnp.float32)

    # shared ring topology (both directions), per-graph edge attributes
    fwd = jnp.arange(N, dtype=jnp.int32)
    edge_index = jnp.stack([jnp.concatenate([fwd, (fwd + 1) % N]),
                            jnp.concatenate([(fwd + 1) % N, fwd])])       # [2, 2N]
    edges_attr = jax.random.normal(ke, (B, edge_index.shape[1], 1), jnp.float32)

    p1 = init_gat_params(kp1, F, H, F)
    p2 = init_gat_params(kp2, F, H, F)
    conv_w = 0.1 * jax.random.normal(kw, (2, 2, K), jnp.float32)
    conv_b = 0.1 * jax.random.normal(kb, (2,), jnp.float32)

    # one-time packing + densification, hoisted OUT of the jitted forward
    fused = pack_params(p1, p2, conv_w, conv_b, F)
    mask_b, ea_b = jax.vmap(lambda ea: densify_graph(edge_index, ea, N))(edges_attr)

    out = gnn_forward(x_batch, mask_b, ea_b, fused, heads=H, out_ch=F, g_per_blk=G_PER_BLK)
    out = jax.block_until_ready(out)

    assert out.shape == (B, N, 2, F)
    assert bool(jnp.all(jnp.isfinite(out)))
    assert bool(jnp.allclose(out.sum(axis=2), 1.0, atol=1e-4))            # channel softmax sums to 1

    ref = reference_forward(x_batch, mask_b, ea_b, p1, p2, conv_w, conv_b, H)
    assert bool(jnp.allclose(out, ref, atol=5e-3, rtol=5e-3))

    print("KERNEL_OK")
</pallas_src>

<mosaic_0001>
module attributes {stable_mosaic.version = 11 : i64} {
  func.func @fused_gnn_kernel(%arg0: i32, %arg1: memref<64x32xf32, #tpu.memory_space<vmem>>, %arg2: memref<8x8x8xf32, #tpu.memory_space<vmem>>, %arg3: memref<8x8x8xf32, #tpu.memory_space<vmem>>, %arg4: memref<32x256xf32, #tpu.memory_space<vmem>>, %arg5: memref<1x256xf32, #tpu.memory_space<vmem>>, %arg6: memref<1x128xf32, #tpu.memory_space<vmem>>, %arg7: memref<1x128xf32, #tpu.memory_space<vmem>>, %arg8: memref<1x64xf32, #tpu.memory_space<vmem>>, %arg9: memref<64x64xf32, #tpu.memory_space<vmem>>, %arg10: memref<1x64xf32, #tpu.memory_space<vmem>>, %arg11: memref<64x128xf32, #tpu.memory_space<vmem>>) attributes {dimension_semantics = [#tpu.dimension_semantics<parallel>], iteration_bounds = array<i64: 2>, scalar_prefetch = 0 : i64, scratch_operands = 0 : i64, tpu.core_type = #tpu.core_type<tc>, window_params = [{transform_indices = @transform_0, window_bounds = array<i64: 64, 32>}, {transform_indices = @transform_1, window_bounds = array<i64: 8, 8, 8>}, {transform_indices = @transform_2, window_bounds = array<i64: 8, 8, 8>}, {pipeline_mode = #tpu.pipeline_mode<synchronous>, transform_indices = @transform_3, window_bounds = array<i64: 32, 256>}, {pipeline_mode = #tpu.pipeline_mode<synchronous>, transform_indices = @transform_4, window_bounds = array<i64: 1, 256>}, {pipeline_mode = #tpu.pipeline_mode<synchronous>, transform_indices = @transform_5, window_bounds = array<i64: 1, 128>}, {pipeline_mode = #tpu.pipeline_mode<synchronous>, transform_indices = @transform_6, window_bounds = array<i64: 1, 128>}, {pipeline_mode = #tpu.pipeline_mode<synchronous>, transform_indices = @transform_7, window_bounds = array<i64: 1, 64>}, {pipeline_mode = #tpu.pipeline_mode<synchronous>, transform_indices = @transform_8, window_bounds = array<i64: 64, 64>}, {pipeline_mode = #tpu.pipeline_mode<synchronous>, transform_indices = @transform_9, window_bounds = array<i64: 1, 64>}, {transform_indices = @transform_10, window_bounds = array<i64: 64, 128>}]} {
    %c0 = arith.constant 0 : index
    %c0_0 = arith.constant 0 : index
    %0 = vector.load %arg1[%c0, %c0_0] : memref<64x32xf32, #tpu.memory_space<vmem>>, vector<64x32xf32>
    %c0_1 = arith.constant 0 : index
    %c0_2 = arith.constant 0 : index
    %1 = vector.load %arg4[%c0_1, %c0_2] : memref<32x256xf32, #tpu.memory_space<vmem>>, vector<32x256xf32>
    %cst = arith.constant dense<0.000000e+00> : vector<64x256xf32>
    %2 = tpu.matmul %0, %1, %cst {dimension_numbers = #tpu.dot_dimension_numbers<[1], [0], [0], [1], [0, 0, 1, 1], [], []>} : vector<64x32xf32>, vector<32x256xf32>, vector<64x256xf32> -> vector<64x256xf32>
    %c0_3 = arith.constant 0 : index
    %c0_4 = arith.constant 0 : index
    %3 = vector.load %arg5[%c0_3, %c0_4] : memref<1x256xf32, #tpu.memory_space<vmem>>, vector<1x256xf32>
    %4 = vector.broadcast %3 : vector<1x256xf32> to vector<64x256xf32>
    %5 = arith.addf %2, %4 : vector<64x256xf32>
    %6 = vector.extract_strided_slice %5 {offsets = [0, 0], sizes = [64, 128], strides = [1, 1]} : vector<64x256xf32> to vector<64x128xf32>
    %7 = vector.extract_strided_slice %5 {offsets = [0, 128], sizes = [64, 128], strides = [1, 1]} : vector<64x256xf32> to vector<64x128xf32>
    %8 = vector.shape_cast %6 : vector<64x128xf32> to vector<8x8x128xf32>
    %9 = vector.shape_cast %7 : vector<64x128xf32> to vector<8x8x128xf32>
    %c0_5 = arith.constant 0 : index
    %c0_6 = arith.constant 0 : index
    %c0_7 = arith.constant 0 : index
    %10 = vector.load %arg2[%c0_5, %c0_6, %c0_7] : memref<8x8x8xf32, #tpu.memory_space<vmem>>, vector<8x8x8xf32>
    %c0_8 = arith.constant 0 : index
    %c0_9 = arith.constant 0 : index
    %c0_10 = arith.constant 0 : index
    %11 = vector.load %arg3[%c0_8, %c0_9, %c0_10] : memref<8x8x8xf32, #tpu.memory_space<vmem>>, vector<8x8x8xf32>
    %12 = vector.shape_cast %8 : vector<8x8x128xf32> to vector<8x1x8x128xf32>
    %13 = vector.shape_cast %9 : vector<8x8x128xf32> to vector<8x8x1x128xf32>
    %14 = vector.broadcast %12 : vector<8x1x8x128xf32> to vector<8x8x8x128xf32>
    %15 = vector.broadcast %13 : vector<8x8x1x128xf32> to vector<8x8x8x128xf32>
    %16 = arith.addf %14, %15 : vector<8x8x8x128xf32>
    %c0_11 = arith.constant 0 : index
    %c0_12 = arith.constant 0 : index
    %17 = vector.load %arg6[%c0_11, %c0_12] : memref<1x128xf32, #tpu.memory_space<vmem>>, vector<1x128xf32>
    %18 = vector.shape_cast %17 : vector<1x128xf32> to vector<1x1x1x128xf32>
    %19 = vector.shape_cast %11 : vector<8x8x8xf32> to vector<8x8x8x1xf32>
    %20 = vector.broadcast %18 : vector<1x1x1x128xf32> to vector<8x8x8x128xf32>
    %21 = vector.broadcast %19 : vector<8x8x8x1xf32> to vector<8x8x8x128xf32>
    %22 = arith.mulf %20, %21 : vector<8x8x8x128xf32>
    %23 = arith.addf %16, %22 : vector<8x8x8x128xf32>
    %cst_13 = arith.constant 0.000000e+00 : f32
    %24 = vector.broadcast %cst_13 : f32 to vector<8x8x8x128xf32>
    %25 = arith.cmpf ogt, %23, %24 : vector<8x8x8x128xf32>
    %cst_14 = arith.constant 2.000000e-01 : f32
    %26 = vector.broadcast %cst_14 : f32 to vector<8x8x8x128xf32>
    %27 = arith.mulf %26, %23 : vector<8x8x8x128xf32>
    %28 = arith.select %25, %23, %27 : vector<8x8x8x128xi1>, vector<8x8x8x128xf32>
    %c0_15 = arith.constant 0 : index
    %c0_16 = arith.constant 0 : index
    %29 = vector.load %arg7[%c0_15, %c0_16] : memref<1x128xf32, #tpu.memory_space<vmem>>, vector<1x128xf32>
    %30 = vector.shape_cast %29 : vector<1x128xf32> to vector<1x1x1x128xf32>
    %31 = vector.broadcast %30 : vector<1x1x1x128xf32> to vector<8x8x8x128xf32>
    %32 = arith.mulf %28, %31 : vector<8x8x8x128xf32>
    %33 = vector.extract_strided_slice %32 {offsets = [0, 0, 0, 0], sizes = [8, 8, 8, 32], strides = [1, 1, 1, 1]} : vector<8x8x8x128xf32> to vector<8x8x8x32xf32>
    %cst_17 = arith.constant dense<0.000000e+00> : vector<8x8x8xf32>
    %34 = vector.multi_reduction <add>, %33, %cst_17 [3] : vector<8x8x8x32xf32> to vector<8x8x8xf32>
    %35 = vector.extract_strided_slice %32 {offsets = [0, 0, 0, 32], sizes = [8, 8, 8, 32], strides = [1, 1, 1, 1]} : vector<8x8x8x128xf32> to vector<8x8x8x32xf32>
    %cst_18 = arith.constant dense<0.000000e+00> : vector<8x8x8xf32>
    %36 = vector.multi_reduction <add>, %35, %cst_18 [3] : vector<8x8x8x32xf32> to vector<8x8x8xf32>
    %37 = vector.extract_strided_slice %32 {offsets = [0, 0, 0, 64], sizes = [8, 8, 8, 32], strides = [1, 1, 1, 1]} : vector<8x8x8x128xf32> to vector<8x8x8x32xf32>
    %cst_19 = arith.constant dense<0.000000e+00> : vector<8x8x8xf32>
    %38 = vector.multi_reduction <add>, %37, %cst_19 [3] : vector<8x8x8x32xf32> to vector<8x8x8xf32>
    %39 = vector.extract_strided_slice %32 {offsets = [0, 0, 0, 96], sizes = [8, 8, 8, 32], strides = [1, 1, 1, 1]} : vector<8x8x8x128xf32> to vector<8x8x8x32xf32>
    %cst_20 = arith.constant dense<0.000000e+00> : vector<8x8x8xf32>
    %40 = vector.multi_reduction <add>, %39, %cst_20 [3] : vector<8x8x8x32xf32> to vector<8x8x8xf32>
    %41 = tpu.concatenate %34, %36, %38, %40 in 1 : vector<8x8x8xf32>, vector<8x8x8xf32>, vector<8x8x8xf32>, vector<8x8x8xf32> -> vector<8x32x8xf32>
    %42 = tpu.concatenate %10, %10, %10, %10 in 1 : vector<8x8x8xf32>, vector<8x8x8xf32>, vector<8x8x8xf32>, vector<8x8x8xf32> -> vector<8x32x8xf32>
    %cst_21 = arith.constant 0.000000e+00 : f32
    %43 = vector.broadcast %cst_21 : f32 to vector<8x32x8xf32>
    %44 = arith.cmpf ogt, %42, %43 : vector<8x32x8xf32>
    %cst_22 = arith.constant -1.000000e+30 : f32
    %45 = vector.broadcast %cst_22 : f32 to vector<8x32x8xf32>
    %46 = arith.select %44, %41, %45 : vector<8x32x8xi1>, vector<8x32x8xf32>
    %cst_23 = arith.constant dense<0xFF800000> : vector<8x32xf32>
    %47 = vector.multi_reduction <maximumf>, %46, %cst_23 [2] : vector<8x32x8xf32> to vector<8x32xf32>
    %48 = vector.shape_cast %47 : vector<8x32xf32> to vector<8x32x1xf32>
    %49 = vector.broadcast %48 : vector<8x32x1xf32> to vector<8x32x8xf32>
    %50 = arith.subf %46, %49 : vector<8x32x8xf32>
    %51 = math.exp %50 : vector<8x32x8xf32>
    %52 = arith.mulf %51, %42 : vector<8x32x8xf32>
    %cst_24 = arith.constant dense<0.000000e+00> : vector<8x32xf32>
    %53 = vector.multi_reduction <add>, %52, %cst_24 [2] : vector<8x32x8xf32> to vector<8x32xf32>
    %54 = vector.shape_cast %53 : vector<8x32xf32> to vector<8x32x1xf32>
    %cst_25 = arith.constant 9.99999968E-21 : f32
    %55 = vector.broadcast %cst_25 : f32 to vector<8x32x1xf32>
    %56 = arith.maximumf %54, %55 : vector<8x32x1xf32>
    %57 = tpu.reciprocal %56 {approx = true} : vector<8x32x1xf32> -> vector<8x32x1xf32>
    %58 = arith.mulf %56, %57 : vector<8x32x1xf32>
    %cst_26 = arith.constant 2.000000e+00 : f32
    %59 = vector.broadcast %cst_26 : f32 to vector<8x32x1xf32>
    %60 = arith.subf %59, %58 : vector<8x32x1xf32>
    %61 = arith.mulf %57, %60 : vector<8x32x1xf32>
    %62 = vector.broadcast %61 : vector<8x32x1xf32> to vector<8x32x8xf32>
    %63 = arith.mulf %52, %62 : vector<8x32x8xf32>
    %cst_27 = arith.constant 0.000000e+00 : f32
    %64 = vector.broadcast %cst_27 : f32 to vector<8x8x32xf32>
    %65 = vector.extract_strided_slice %63 {offsets = [0, 0, 0], sizes = [8, 8, 8], strides = [1, 1, 1]} : vector<8x32x8xf32> to vector<8x8x8xf32>
    %66 = vector.extract_strided_slice %8 {offsets = [0, 0, 0], sizes = [8, 8, 32], strides = [1, 1, 1]} : vector<8x8x128xf32> to vector<8x8x32xf32>
    "tpu.trace_start"() <{level = 10 : i32, message = "gij,gjc->gic"}> : () -> ()
    %cst_28 = arith.constant dense<0.000000e+00> : vector<8x8x32xf32>
    %67 = tpu.matmul %65, %66, %cst_28 {dimension_numbers = #tpu.dot_dimension_numbers<[2], [1], [1], [2], [0, 0, 0, 1, 1, 2], [0], [0]>} : vector<8x8x8xf32>, vector<8x8x32xf32>, vector<8x8x32xf32> -> vector<8x8x32xf32>
    "tpu.trace_stop"() : () -> ()
    %68 = arith.addf %64, %67 : vector<8x8x32xf32>
    %69 = vector.extract_strided_slice %63 {offsets = [0, 8, 0], sizes = [8, 8, 8], strides = [1, 1, 1]} : vector<8x32x8xf32> to vector<8x8x8xf32>
    %70 = vector.extract_strided_slice %8 {offsets = [0, 0, 32], sizes = [8, 8, 32], strides = [1, 1, 1]} : vector<8x8x128xf32> to vector<8x8x32xf32>
    "tpu.trace_start"() <{level = 10 : i32, message = "gij,gjc->gic"}> : () -> ()
    %cst_29 = arith.constant dense<0.000000e+00> : vector<8x8x32xf32>
    %71 = tpu.matmul %69, %70, %cst_29 {dimension_numbers = #tpu.dot_dimension_numbers<[2], [1], [1], [2], [0, 0, 0, 1, 1, 2], [0], [0]>} : vector<8x8x8xf32>, vector<8x8x32xf32>, vector<8x8x32xf32> -> vector<8x8x32xf32>
    "tpu.trace_stop"() : () -> ()
    %72 = arith.addf %68, %71 : vector<8x8x32xf32>
    %cst_30 = arith.constant 5.000000e-01 : f32
    %73 = vector.broadcast %cst_30 : f32 to vector<8x8x32xf32>
    %74 = arith.mulf %72, %73 : vector<8x8x32xf32>
    %cst_31 = arith.constant 0.000000e+00 : f32
    %75 = vector.broadcast %cst_31 : f32 to vector<8x8x32xf32>
    %76 = vector.extract_strided_slice %63 {offsets = [0, 16, 0], sizes = [8, 8, 8], strides = [1, 1, 1]} : vector<8x32x8xf32> to vector<8x8x8xf32>
    %77 = vector.extract_strided_slice %8 {offsets = [0, 0, 64], sizes = [8, 8, 32], strides = [1, 1, 1]} : vector<8x8x128xf32> to vector<8x8x32xf32>
    "tpu.trace_start"() <{level = 10 : i32, message = "gij,gjc->gic"}> : () -> ()
    %cst_32 = arith.constant dense<0.000000e+00> : vector<8x8x32xf32>
    %78 = tpu.matmul %76, %77, %cst_32 {dimension_numbers = #tpu.dot_dimension_numbers<[2], [1], [1], [2], [0, 0, 0, 1, 1, 2], [0], [0]>} : vector<8x8x8xf32>, vector<8x8x32xf32>, vector<8x8x32xf32> -> vector<8x8x32xf32>
    "tpu.trace_stop"() : () -> ()
    %79 = arith.addf %75, %78 : vector<8x8x32xf32>
    %80 = vector.extract_strided_slice %63 {offsets = [0, 24, 0], sizes = [8, 8, 8], strides = [1, 1, 1]} : vector<8x32x8xf32> to vector<8x8x8xf32>
    %81 = vector.extract_strided_slice %8 {offsets = [0, 0, 96], sizes = [8, 8, 32], strides = [1, 1, 1]} : vector<8x8x128xf32> to vector<8x8x32xf32>
    "tpu.trace_start"() <{level = 10 : i32, message = "gij,gjc->gic"}> : () -> ()
    %cst_33 = arith.constant dense<0.000000e+00> : vector<8x8x32xf32>
    %82 = tpu.matmul %80, %81, %cst_33 {dimension_numbers = #tpu.dot_dimension_numbers<[2], [1], [1], [2], [0, 0, 0, 1, 1, 2], [0], [0]>} : vector<8x8x8xf32>, vector<8x8x32xf32>, vector<8x8x32xf32> -> vector<8x8x32xf32>
    "tpu.trace_stop"() : () -> ()
    %83 = arith.addf %79, %82 : vector<8x8x32xf32>
    %cst_34 = arith.constant 5.000000e-01 : f32
    %84 = vector.broadcast %cst_34 : f32 to vector<8x8x32xf32>
    %85 = arith.mulf %83, %84 : vector<8x8x32xf32>
    %86 = tpu.concatenate %74, %85 in 2 : vector<8x8x32xf32>, vector<8x8x32xf32> -> vector<8x8x64xf32>
    %87 = vector.shape_cast %86 : vector<8x8x64xf32> to vector<64x64xf32>
    %c0_35 = arith.constant 0 : index
    %c0_36 = arith.constant 0 : index
    %88 = vector.load %arg8[%c0_35, %c0_36] : memref<1x64xf32, #tpu.memory_space<vmem>>, vector<1x64xf32>
    %89 = vector.broadcast %88 : vector<1x64xf32> to vector<64x64xf32>
    %90 = arith.addf %87, %89 : vector<64x64xf32>
    %cst_37 = arith.constant 0.000000e+00 : f32
    %91 = vector.broadcast %cst_37 : f32 to vector<64x64xf32>
    %92 = arith.cmpf ogt, %90, %91 : vector<64x64xf32>
    %cst_38 = arith.constant 2.000000e-01 : f32
    %93 = vector.broadcast %cst_38 : f32 to vector<64x64xf32>
    %94 = arith.mulf %93, %90 : vector<64x64xf32>
    %95 = arith.select %92, %90, %94 : vector<64x64xi1>, vector<64x64xf32>
    %c0_39 = arith.constant 0 : index
    %c0_40 = arith.constant 0 : index
    %96 = vector.load %arg9[%c0_39, %c0_40] : memref<64x64xf32, #tpu.memory_space<vmem>>, vector<64x64xf32>
    %cst_41 = arith.constant dense<0.000000e+00> : vector<64x64xf32>
    %97 = tpu.matmul %95, %96, %cst_41 {dimension_numbers = #tpu.dot_dimension_numbers<[1], [0], [0], [1], [0, 0, 1, 1], [], []>} : vector<64x64xf32>, vector<64x64xf32>, vector<64x64xf32> -> vector<64x64xf32>
    %c0_42 = arith.constant 0 : index
    %c0_43 = arith.constant 0 : index
    %98 = vector.load %arg10[%c0_42, %c0_43] : memref<1x64xf32, #tpu.memory_space<vmem>>, vector<1x64xf32>
    %99 = vector.broadcast %98 : vector<1x64xf32> to vector<64x64xf32>
    %100 = arith.addf %97, %99 : vector<64x64xf32>
    %101 = vector.extract_strided_slice %100 {offsets = [0, 0], sizes = [64, 32], strides = [1, 1]} : vector<64x64xf32> to vector<64x32xf32>
    %102 = vector.extract_strided_slice %100 {offsets = [0, 32], sizes = [64, 32], strides = [1, 1]} : vector<64x64xf32> to vector<64x32xf32>
    %103 = arith.maximumf %101, %102 : vector<64x32xf32>
    %104 = arith.subf %101, %103 : vector<64x32xf32>
    %105 = math.exp %104 : vector<64x32xf32>
    %106 = arith.subf %102, %103 : vector<64x32xf32>
    %107 = math.exp %106 : vector<64x32xf32>
    %108 = arith.addf %105, %107 : vector<64x32xf32>
    %109 = tpu.reciprocal %108 {approx = true} : vector<64x32xf32> -> vector<64x32xf32>
    %110 = arith.mulf %108, %109 : vector<64x32xf32>
    %cst_44 = arith.constant 2.000000e+00 : f32
    %111 = vector.broadcast %cst_44 : f32 to vector<64x32xf32>
    %112 = arith.subf %111, %110 : vector<64x32xf32>
    %113 = arith.mulf %109, %112 : vector<64x32xf32>
    %114 = arith.mulf %105, %113 : vector<64x32xf32>
    %115 = arith.mulf %107, %113 : vector<64x32xf32>
    %cst_45 = arith.constant 0.000000e+00 : f32
    %116 = vector.broadcast %cst_45 : f32 to vector<64x64xf32>
    %117 = tpu.concatenate %114, %115, %116 in 1 : vector<64x32xf32>, vector<64x32xf32>, vector<64x64xf32> -> vector<64x128xf32>
    %c0_46 = arith.constant 0 : index
    %c0_47 = arith.constant 0 : index
    %118 = vector.load %arg11[%c0_46, %c0_47] : memref<64x128xf32, #tpu.memory_space<vmem>>, vector<64x128xf32>
    tpu.vector_store %arg11[%c0_46, %c0_47], %117 {strides = array<i32>} : memref<64x128xf32, #tpu.memory_space<vmem>>, vector<64x128xf32>,
    return
  }
  func.func @transform_0(%arg0: i32) -> (i32, i32) {
    %c0_i32 = arith.constant 0 : i32
    %c0_i32_0 = arith.constant 0 : i32
    return %arg0, %c0_i32 : i32, i32
  }
  func.func @transform_1(%arg0: i32) -> (i32, i32, i32) {
    %c0_i32 = arith.constant 0 : i32
    %c0_i32_0 = arith.constant 0 : i32
    %c0_i32_1 = arith.constant 0 : i32
    return %arg0, %c0_i32, %c0_i32_0 : i32, i32, i32
  }
  func.func @transform_2(%arg0: i32) -> (i32, i32, i32) {
    %c0_i32 = arith.constant 0 : i32
    %c0_i32_0 = arith.constant 0 : i32
    %c0_i32_1 = arith.constant 0 : i32
    return %arg0, %c0_i32, %c0_i32_0 : i32, i32, i32
  }
  func.func @transform_3(%arg0: i32) -> (i32, i32) {
    %c0_i32 = arith.constant 0 : i32
    %c0_i32_0 = arith.constant 0 : i32
    %c0_i32_1 = arith.constant 0 : i32
    return %c0_i32, %c0_i32_0 : i32, i32
  }
  func.func @transform_4(%arg0: i32) -> (i32, i32) {
    %c0_i32 = arith.constant 0 : i32
    %c0_i32_0 = arith.constant 0 : i32
    %c0_i32_1 = arith.constant 0 : i32
    return %c0_i32, %c0_i32_0 : i32, i32
  }
  func.func @transform_5(%arg0: i32) -> (i32, i32) {
    %c0_i32 = arith.constant 0 : i32
    %c0_i32_0 = arith.constant 0 : i32
    %c0_i32_1 = arith.constant 0 : i32
    return %c0_i32, %c0_i32_0 : i32, i32
  }
  func.func @transform_6(%arg0: i32) -> (i32, i32) {
    %c0_i32 = arith.constant 0 : i32
    %c0_i32_0 = arith.constant 0 : i32
    %c0_i32_1 = arith.constant 0 : i32
    return %c0_i32, %c0_i32_0 : i32, i32
  }
  func.func @transform_7(%arg0: i32) -> (i32, i32) {
    %c0_i32 = arith.constant 0 : i32
    %c0_i32_0 = arith.constant 0 : i32
    %c0_i32_1 = arith.constant 0 : i32
    return %c0_i32, %c0_i32_0 : i32, i32
  }
  func.func @transform_8(%arg0: i32) -> (i32, i32) {
    %c0_i32 = arith.constant 0 : i32
    %c0_i32_0 = arith.constant 0 : i32
    %c0_i32_1 = arith.constant 0 : i32
    return %c0_i32, %c0_i32_0 : i32, i32
  }
  func.func @transform_9(%arg0: i32) -> (i32, i32) {
    %c0_i32 = arith.constant 0 : i32
    %c0_i32_0 = arith.constant 0 : i32
    %c0_i32_1 = arith.constant 0 : i32
    return %c0_i32, %c0_i32_0 : i32, i32
  }
  func.func @transform_10(%arg0: i32) -> (i32, i32) {
    %c0_i32 = arith.constant 0 : i32
    %c0_i32_0 = arith.constant 0 : i32
    return %arg0, %c0_i32 : i32, i32
  }
}

</mosaic_0001>

<llo_original>
// kernel: gnn_forward.1
$region0: #{gnn_forward.1}
  #allocation0 [shape = 'u32[]', space=smem, size = 0x4, offset = 0x4, fixed_abs, tag = 'smem constant byte address 0x4 - core index']
  #allocation1 [shape = 'u32[72,128]{1,0:T(1,128)}', space=vmem, size = 0x9000, scoped, tag = 'internal scratch']
  %s0 = inlined_call_operand.vmem [shape: f32[128,32], index: 0, kind: input, shape index: {}]
  %s1 = inlined_call_operand.vmem [shape: f32[16,8,8], index: 1, kind: input, shape index: {}]
  %s2 = inlined_call_operand.vmem [shape: f32[16,8,8], index: 2, kind: input, shape index: {}]
  %s3 = inlined_call_operand.vmem [shape: f32[32,256], index: 3, kind: input, shape index: {}]
  %s4 = inlined_call_operand.vmem [shape: f32[1,256], index: 4, kind: input, shape index: {}]
  %s5 = inlined_call_operand.vmem [shape: f32[1,128], index: 5, kind: input, shape index: {}]
  %s6 = inlined_call_operand.vmem [shape: f32[1,128], index: 6, kind: input, shape index: {}]
  %s7 = inlined_call_operand.vmem [shape: f32[1,64], index: 7, kind: input, shape index: {}]
  %s8 = inlined_call_operand.vmem [shape: f32[64,64], index: 8, kind: input, shape index: {}]
  %s9 = inlined_call_operand.vmem [shape: f32[1,64], index: 9, kind: input, shape index: {}]
  %s10 = inlined_call_operand.vmem [shape: f32[128,128], index: 10, kind: output, shape index: {}]
  %s11 = sld [smem:[#allocation0]]
  $region73: #{gnn_forward.1} parent=0
    _
  %s13 = ssub.s32 1, %s11
  %s14 = scalar_select 0, %s13, %s11
  loop: start=0, step=1, limit=4
  $region2: #{gnn_forward.1} parent=0 // loop_pre_header
    _
  $region3: #{gnn_forward.1} parent=0 // loop_header
    %s16 = sphi 0, %s20
    %p17 = scmp.ge.s32.totalorder %s16, 4
    %s26 = sphi 0, %s28
    %s29 = sphi 0, %s26
    %s30 = sphi 0, %s29
    %s46 = sphi 0, %s30
    %s52 = sphi 0, %s54
    %s55 = sphi 0, %s52
    %s56 = sphi 0, %s55
    %s72 = sphi 0, %s56
    %s78 = sphi 0, %s80
    %s81 = sphi 0, %s78
    %s82 = sphi 0, %s81
    %s98 = sphi 0, %s82
    %s102 = sphi 0, %s102
    %s104 = sphi 0, %s102
    %s105 = sphi 0, %s104
    %s119 = sphi 0, %s105
    %s123 = sphi 0, %s123
    %s125 = sphi 0, %s123
    %s126 = sphi 0, %s125
    %s140 = sphi 0, %s126
    %s144 = sphi 0, %s144
    %s146 = sphi 0, %s144
    %s147 = sphi 0, %s146
    %s161 = sphi 0, %s147
    %s165 = sphi 0, %s165
    %s167 = sphi 0, %s165
    %s168 = sphi 0, %s167
    %s182 = sphi 0, %s168
    %s186 = sphi 0, %s186
    %s188 = sphi 0, %s186
    %s189 = sphi 0, %s188
    %s203 = sphi 0, %s189
    %s207 = sphi 0, %s207
    %s209 = sphi 0, %s207
    %s210 = sphi 0, %s209
    %s224 = sphi 0, %s210
    %s228 = sphi 0, %s228
    %s230 = sphi 0, %s228
    %s231 = sphi 0, %s230
    %s245 = sphi 0, %s231
    %s251 = sphi 0, %s253
    %s254 = sphi 0, %s251
    %s255 = sphi 0, %s254
    %s271 = sphi 0, %s255
  $region4: #{gnn_forward.1} parent=0 // loop_header_branch
    %19 = sbr.rel (%p17) target = $region8
  $region5: #{gnn_forward.1} parent=0 // loop_body
    %s21 = ssub.s32 %s16, 1
    %s22 = ssub.s32 %s16, 2
    %s23 = sadd.s32 %s16, 1
    %s24 = ssub.s32 %s16, %s23
    %p25 = scmp.eq.s32.totalorder %s24, 0
    %s27 = sadd.s32 %s26, 1
    %s28 = scalar_select %p25, %s26, %s27
    %p31 = pneg %p25
    %p32 = scmp.eq.s32.totalorder %s16, 1
    %p33 = por %p31, %p32
    %p34 = scmp.ne.s32.totalorder %s26, %s29
    %p35 = scmp.eq.s32.totalorder %s16, 0
    %p36 = por %p34, %p35
    %p37 = scmp.ne.s32.totalorder %s26, %s29
    %p38 = scmp.eq.s32.totalorder %s21, 1
    %p39 = por %p37, %p38
    %p40 = scmp.ne.s32.totalorder %s29, %s30
    %p41 = scmp.eq.s32.totalorder %s21, 0
    %p42 = por %p40, %p41
    %p43 = scmp.ne.s32.totalorder %s29, %s30
    %p44 = scmp.eq.s32.totalorder %s22, 1
    %p45 = por %p43, %p44
    %p47 = scmp.ne.s32.totalorder %s30, %s46
    %p48 = scmp.eq.s32.totalorder %s22, 0
    %p49 = por %p47, %p48
    %s50 = ssub.s32 %s16, %s23
    %p51 = scmp.eq.s32.totalorder %s50, 0
    %s53 = sadd.s32 %s52, 1
    %s54 = scalar_select %p51, %s52, %s53
    %p57 = pneg %p51
    %p58 = scmp.eq.s32.totalorder %s16, 1
    %p59 = por %p57, %p58
    %p60 = scmp.ne.s32.totalorder %s52, %s55
    %p61 = scmp.eq.s32.totalorder %s16, 0
    %p62 = por %p60, %p61
    %p63 = scmp.ne.s32.totalorder %s52, %s55
    %p64 = scmp.eq.s32.totalorder %s21, 1
    %p65 = por %p63, %p64
    %p66 = scmp.ne.s32.totalorder %s55, %s56
    %p67 = scmp.eq.s32.totalorder %s21, 0
    %p68 = por %p66, %p67
    %p69 = scmp.ne.s32.totalorder %s55, %s56
    %p70 = scmp.eq.s32.totalorder %s22, 1
    %p71 = por %p69, %p70
    %p73 = scmp.ne.s32.totalorder %s56, %s72
    %p74 = scmp.eq.s32.totalorder %s22, 0
    %p75 = por %p73, %p74
    %s76 = ssub.s32 %s16, %s23
    %p77 = scmp.eq.s32.totalorder %s76, 0
    %s79 = sadd.s32 %s78, 1
    %s80 = scalar_select %p77, %s78, %s79
    %p83 = pneg %p77
    %p84 = scmp.eq.s32.totalorder %s16, 1
    %p85 = por %p83, %p84
    %p86 = scmp.ne.s32.totalorder %s78, %s81
    %p87 = scmp.eq.s32.totalorder %s16, 0
    %p88 = por %p86, %p87
    %p89 = scmp.ne.s32.totalorder %s78, %s81
    %p90 = scmp.eq.s32.totalorder %s21, 1
    %p91 = por %p89, %p90
    %p92 = scmp.ne.s32.totalorder %s81, %s82
    %p93 = scmp.eq.s32.totalorder %s21, 0
    %p94 = por %p92, %p93
    %p95 = scmp.ne.s32.totalorder %s81, %s82
    %p96 = scmp.eq.s32.totalorder %s22, 1
    %p97 = por %p95, %p96
    %p99 = scmp.ne.s32.totalorder %s82, %s98
    %p100 = scmp.eq.s32.totalorder %s22, 0
    %p101 = por %p99, %p100
    %s103 = sadd.s32 %s102, 1
    %p106 = scmp.eq.s32.totalorder %s16, 1
    %p107 = scmp.ne.s32.totalorder %s102, %s104
    %p108 = scmp.eq.s32.totalorder %s16, 0
    %p109 = por %p107, %p108
    %p110 = scmp.ne.s32.totalorder %s102, %s104
    %p111 = scmp.eq.s32.totalorder %s21, 1
    %p112 = por %p110, %p111
    %p113 = scmp.ne.s32.totalorder %s104, %s105
    %p114 = scmp.eq.s32.totalorder %s21, 0
    %p115 = por %p113, %p114
    %p116 = scmp.ne.s32.totalorder %s104, %s105
    %p117 = scmp.eq.s32.totalorder %s22, 1
    %p118 = por %p116, %p117
    %p120 = scmp.ne.s32.totalorder %s105, %s119
    %p121 = scmp.eq.s32.totalorder %s22, 0
    %p122 = por %p120, %p121
    %s124 = sadd.s32 %s123, 1
    %p127 = scmp.eq.s32.totalorder %s16, 1
    %p128 = scmp.ne.s32.totalorder %s123, %s125
    %p129 = scmp.eq.s32.totalorder %s16, 0
    %p130 = por %p128, %p129
    %p131 = scmp.ne.s32.totalorder %s123, %s125
    %p132 = scmp.eq.s32.totalorder %s21, 1
    %p133 = por %p131, %p132
    %p134 = scmp.ne.s32.totalorder %s125, %s126
    %p135 = scmp.eq.s32.totalorder %s21, 0
    %p136 = por %p134, %p135
    %p137 = scmp.ne.s32.totalorder %s125, %s126
    %p138 = scmp.eq.s32.totalorder %s22, 1
    %p139 = por %p137, %p138
    %p141 = scmp.ne.s32.totalorder %s126, %s140
    %p142 = scmp.eq.s32.totalorder %s22, 0
    %p143 = por %p141, %p142
    %s145 = sadd.s32 %s144, 1
    %p148 = scmp.eq.s32.totalorder %s16, 1
    %p149 = scmp.ne.s32.totalorder %s144, %s146
    %p150 = scmp.eq.s32.totalorder %s16, 0
    %p151 = por %p149, %p150
    %p152 = scmp.ne.s32.totalorder %s144, %s146
    %p153 = scmp.eq.s32.totalorder %s21, 1
    %p154 = por %p152, %p153
    %p155 = scmp.ne.s32.totalorder %s146, %s147
    %p156 = scmp.eq.s32.totalorder %s21, 0
    %p157 = por %p155, %p156
    %p158 = scmp.ne.s32.totalorder %s146, %s147
    %p159 = scmp.eq.s32.totalorder %s22, 1
    %p160 = por %p158, %p159
    %p162 = scmp.ne.s32.totalorder %s147, %s161
    %p163 = scmp.eq.s32.totalorder %s22, 0
    %p164 = por %p162, %p163
    %s166 = sadd.s32 %s165, 1
    %p169 = scmp.eq.s32.totalorder %s16, 1
    %p170 = scmp.ne.s32.totalorder %s165, %s167
    %p171 = scmp.eq.s32.totalorder %s16, 0
    %p172 = por %p170, %p171
    %p173 = scmp.ne.s32.totalorder %s165, %s167
    %p174 = scmp.eq.s32.totalorder %s21, 1
    %p175 = por %p173, %p174
    %p176 = scmp.ne.s32.totalorder %s167, %s168
    %p177 = scmp.eq.s32.totalorder %s21, 0
    %p178 = por %p176, %p177
    %p179 = scmp.ne.s32.totalorder %s167, %s168
    %p180 = scmp.eq.s32.totalorder %s22, 1
    %p181 = por %p179, %p180
    %p183 = scmp.ne.s32.totalorder %s168, %s182
    %p184 = scmp.eq.s32.totalorder %s22, 0
    %p185 = por %p183, %p184
    %s187 = sadd.s32 %s186, 1
    %p190 = scmp.eq.s32.totalorder %s16, 1
    %p191 = scmp.ne.s32.totalorder %s186, %s188
    %p192 = scmp.eq.s32.totalorder %s16, 0
    %p193 = por %p191, %p192
    %p194 = scmp.ne.s32.totalorder %s186, %s188
    %p195 = scmp.eq.s32.totalorder %s21, 1
    %p196 = por %p194, %p195
    %p197 = scmp.ne.s32.totalorder %s188, %s189
    %p198 = scmp.eq.s32.totalorder %s21, 0
    %p199 = por %p197, %p198
    %p200 = scmp.ne.s32.totalorder %s188, %s189
    %p201 = scmp.eq.s32.totalorder %s22, 1
    %p202 = por %p200, %p201
    %p204 = scmp.ne.s32.totalorder %s189, %s203
    %p205 = scmp.eq.s32.totalorder %s22, 0
    %p206 = por %p204, %p205
    %s208 = sadd.s32 %s207, 1
    %p211 = scmp.eq.s32.totalorder %s16, 1
    %p212 = scmp.ne.s32.totalorder %s207, %s209
    %p213 = scmp.eq.s32.totalorder %s16, 0
    %p214 = por %p212, %p213
    %p215 = scmp.ne.s32.totalorder %s207, %s209
    %p216 = scmp.eq.s32.totalorder %s21, 1
    %p217 = por %p215, %p216
    %p218 = scmp.ne.s32.totalorder %s209, %s210
    %p219 = scmp.eq.s32.totalorder %s21, 0
    %p220 = por %p218, %p219
    %p221 = scmp.ne.s32.totalorder %s209, %s210
    %p222 = scmp.eq.s32.totalorder %s22, 1
    %p223 = por %p221, %p222
    %p225 = scmp.ne.s32.totalorder %s210, %s224
    %p226 = scmp.eq.s32.totalorder %s22, 0
    %p227 = por %p225, %p226
    %s229 = sadd.s32 %s228, 1
    %p232 = scmp.eq.s32.totalorder %s16, 1
    %p233 = scmp.ne.s32.totalorder %s228, %s230
    %p234 = scmp.eq.s32.totalorder %s16, 0
    %p235 = por %p233, %p234
    %p236 = scmp.ne.s32.totalorder %s228, %s230
    %p237 = scmp.eq.s32.totalorder %s21, 1
    %p238 = por %p236, %p237
    %p239 = scmp.ne.s32.totalorder %s230, %s231
    %p240 = scmp.eq.s32.totalorder %s21, 0
    %p241 = por %p239, %p240
    %p242 = scmp.ne.s32.totalorder %s230, %s231
    %p243 = scmp.eq.s32.totalorder %s22, 1
    %p244 = por %p242, %p243
    %p246 = scmp.ne.s32.totalorder %s231, %s245
    %p247 = scmp.eq.s32.totalorder %s22, 0
    %p248 = por %p246, %p247
    %s249 = ssub.s32 %s16, %s23
    %p250 = scmp.eq.s32.totalorder %s249, 0
    %s252 = sadd.s32 %s251, 1
    %s253 = scalar_select %p250, %s251, %s252
    %p256 = pneg %p250
    %p257 = scmp.eq.s32.totalorder %s16, 1
    %p258 = por %p256, %p257
    %p259 = scmp.ne.s32.totalorder %s251, %s254
    %p260 = scmp.eq.s32.totalorder %s16, 0
    %p261 = por %p259, %p260
    %p262 = scmp.ne.s32.totalorder %s251, %s254
    %p263 = scmp.eq.s32.totalorder %s21, 1
    %p264 = por %p262, %p263
    %p265 = scmp.ne.s32.totalorder %s254, %s255
    %p266 = scmp.eq.s32.totalorder %s21, 0
    %p267 = por %p265, %p266
    %p268 = scmp.ne.s32.totalorder %s254, %s255
    %p269 = scmp.eq.s32.totalorder %s22, 1
    %p270 = por %p268, %p269
    %p272 = scmp.ne.s32.totalorder %s255, %s271
    %p273 = scmp.eq.s32.totalorder %s22, 0
    %p274 = por %p272, %p273
    %p275 = scmp.le.s32.totalorder 1, %s16
    %p276 = scmp.lt.s32.totalorder %s16, 3
    %p277 = pnand %p275, %p276
    %p278 = pneg %p277
    // Predicated region
    $region9: #{gnn_forward.1} parent=5 // pred_check
      _
    $region10: #{gnn_forward.1} parent=5 // pred_check_branch
      %280 = sbr.rel (%p277) target = $region12
    $region11: #{gnn_forward.1} parent=5 // pred_region
      %s281 = ssub.s32 %s16, 1
      // Predicated region
      $region13: #{gnn_forward.1} parent=11 // pred_check
        %p282 = pneg %p115
      $region14: #{gnn_forward.1} parent=11 // pred_check_branch
        %284 = sbr.rel (%p282) target = $region16
      $region15: #{gnn_forward.1} parent=11 // pred_region
        _
      $region16: #{gnn_forward.1} parent=11 // pred_fallthru
        _
      // Predicated region
      $region17: #{gnn_forward.1} parent=11 // pred_check
        %p285 = pneg %p136
      $region18: #{gnn_forward.1} parent=11 // pred_check_branch
        %287 = sbr.rel (%p285) target = $region20
      $region19: #{gnn_forward.1} parent=11 // pred_region
        _
      $region20: #{gnn_forward.1} parent=11 // pred_fallthru
        _
      // Predicated region
      $region21: #{gnn_forward.1} parent=11 // pred_check
        %p288 = pneg %p157
      $region22: #{gnn_forward.1} parent=11 // pred_check_branch
        %290 = sbr.rel (%p288) target = $region24
      $region23: #{gnn_forward.1} parent=11 // pred_region
        _
      $region24: #{gnn_forward.1} parent=11 // pred_fallthru
        _
      // Predicated region
      $region25: #{gnn_forward.1} parent=11 // pred_check
        %p291 = pneg %p178
      $region26: #{gnn_forward.1} parent=11 // pred_check_branch
        %293 = sbr.rel (%p291) target = $region28
      $region27: #{gnn_forward.1} parent=11 // pred_region
        _
      $region28: #{gnn_forward.1} parent=11 // pred_fallthru
        _
      // Predicated region
      $region29: #{gnn_forward.1} parent=11 // pred_check
        %p294 = pneg %p199
      $region30: #{gnn_forward.1} parent=11 // pred_check_branch
        %296 = sbr.rel (%p294) target = $region32
      $region31: #{gnn_forward.1} parent=11 // pred_region
        _
      $region32: #{gnn_forward.1} parent=11 // pred_fallthru
        _
      // Predicated region
      $region33: #{gnn_forward.1} parent=11 // pred_check
        %p297 = pneg %p220
      $region34: #{gnn_forward.1} parent=11 // pred_check_branch
        %299 = sbr.rel (%p297) target = $region36
      $region35: #{gnn_forward.1} parent=11 // pred_region
        _
      $region36: #{gnn_forward.1} parent=11 // pred_fallthru
        _
      // Predicated region
      $region37: #{gnn_forward.1} parent=11 // pred_check
        %p300 = pneg %p241
      $region38: #{gnn_forward.1} parent=11 // pred_check_branch
        %302 = sbr.rel (%p300) target = $region40
      $region39: #{gnn_forward.1} parent=11 // pred_region
        _
      $region40: #{gnn_forward.1} parent=11 // pred_fallthru
        _
    $region12: #{gnn_forward.1} parent=5 // pred_fallthru
      _
    %p303 = scmp.lt.s32.totalorder %s16, 2
    // Predicated region
    $region41: #{gnn_forward.1} parent=5 // pred_check
      %p304 = pneg %p303
    $region42: #{gnn_forward.1} parent=5 // pred_check_branch
      %306 = sbr.rel (%p304) target = $region44
    $region43: #{gnn_forward.1} parent=5 // pred_region
      // Predicated region
      $region45: #{gnn_forward.1} parent=43 // pred_check
        %p307 = pneg %p36
      $region46: #{gnn_forward.1} parent=43 // pred_check_branch
        %309 = sbr.rel (%p307) target = $region48
      $region47: #{gnn_forward.1} parent=43 // pred_region
        %s310 = smul.u32 8, %s16
        %p311 = scmp.lt.s32.totalorder %s310, 15
        %s312 = scalar_select %p311, %s310, 15
        %s313 = smul.addr %s312, 8
        %s314 = scalar_lea.vmem %s0, %s313
        %s315 = smul.u32 8, %s16
      $region48: #{gnn_forward.1} parent=43 // pred_fallthru
        _
      // Predicated region
      $region49: #{gnn_forward.1} parent=43 // pred_check
        %p316 = pneg %p62
      $region50: #{gnn_forward.1} parent=43 // pred_check_branch
        %318 = sbr.rel (%p316) target = $region52
      $region51: #{gnn_forward.1} parent=43 // pred_region
        %s319 = smul.u32 8, %s16
        %p320 = scmp.lt.s32.totalorder %s319, 15
        %s321 = scalar_select %p320, %s319, 15
        %s322 = smul.addr %s321, 8
        %s323 = scalar_lea.vmem %s1, %s322
        %s324 = smul.u32 8, %s16
      $region52: #{gnn_forward.1} parent=43 // pred_fallthru
        _
      // Predicated region
      $region53: #{gnn_forward.1} parent=43 // pred_check
        %p325 = pneg %p88
      $region54: #{gnn_forward.1} parent=43 // pred_check_branch
        %327 = sbr.rel (%p325) target = $region56
      $region55: #{gnn_forward.1} parent=43 // pred_region
        %s328 = smul.u32 8, %s16
        %p329 = scmp.lt.s32.totalorder %s328, 15
        %s330 = scalar_select %p329, %s328, 15
        %s331 = smul.addr %s330, 8
        %s332 = scalar_lea.vmem %s2, %s331
        %s333 = smul.u32 8, %s16
      $region56: #{gnn_forward.1} parent=43 // pred_fallthru
        _
    $region44: #{gnn_forward.1} parent=5 // pred_fallthru
      _
    %p334 = scmp.le.s32.totalorder 1, %s16
    %p335 = scmp.lt.s32.totalorder %s16, 3
    %p336 = pnand %p334, %p335
    %p337 = pneg %p336
    // Predicated region
    $region57: #{gnn_forward.1} parent=5 // pred_check
      _
    $region58: #{gnn_forward.1} parent=5 // pred_check_branch
      %339 = sbr.rel (%p336) target = $region60
    $region59: #{gnn_forward.1} parent=5 // pred_region
      %s340 = ssub.s32 %s16, 1
      %s341 = smul.u32 8, %s21
      %p342 = scmp.lt.s32.totalorder %s341, 15
      %s343 = scalar_select %p342, %s341, 15
      %s344 = smul.addr %s343, 8
      %s345 = scalar_lea.vmem %s0, %s344
      %p346 = pneg %p42
      %p347 = pneg %p39
      %s348 = smul.u32 8, %s21
      %p349 = scmp.lt.s32.totalorder %s348, 15
      %s350 = scalar_select %p349, %s348, 15
      %s351 = smul.addr %s350, 8
      %s352 = scalar_lea.vmem %s1, %s351
      %p353 = pneg %p68
      %p354 = pneg %p65
      %s355 = smul.u32 8, %s21
      %p356 = scmp.lt.s32.totalorder %s355, 15
      %s357 = scalar_select %p356, %s355, 15
      %s358 = smul.addr %s357, 8
      %s359 = scalar_lea.vmem %s2, %s358
      %p360 = pneg %p94
      %p361 = pneg %p91
      %p362 = pneg %p115
      %p363 = pneg %p112
      %p364 = pneg %p136
      %p365 = pneg %p133
      %p366 = pneg %p157
      %p367 = pneg %p154
      %p368 = pneg %p178
      %p369 = pneg %p175
      %p370 = pneg %p199
      %p371 = pneg %p196
      %p372 = pneg %p220
      %p373 = pneg %p217
      %p374 = pneg %p241
      %p375 = pneg %p238
      %p376 = pneg %p267
      %p377 = pneg %p264
      %s378 = smul.u32 8, %s21
      %p379 = scmp.lt.s32.totalorder %s378, 15
      %s380 = scalar_select %p379, %s378, 15
      %s381 = smul.addr %s380, 8
      %s382 = scalar_lea.vmem %s10, %s381
      %s383 = smul.u32 8, %s21
      %p384 = scmp.lt.s32.totalorder %s383, 15
      %s385 = scalar_select %p384, %s383, 15
      %s386 = smul.addr %s385, 8
      %s387 = scalar_lea.vmem %s0, %s386
      %s388 = smul.u32 8, %s21
      %s389 = smul.u32 8, %s21
      %p390 = scmp.lt.s32.totalorder %s389, 15
      %s391 = scalar_select %p390, %s389, 15
      %s392 = smul.addr %s391, 8
      %s393 = scalar_lea.vmem %s1, %s392
      %s394 = smul.u32 8, %s21
      %s395 = smul.u32 8, %s21
      %p396 = scmp.lt.s32.totalorder %s395, 15
      %s397 = scalar_select %p396, %s395, 15
      %s398 = smul.addr %s397, 8
      %s399 = scalar_lea.vmem %s2, %s398
      %s400 = smul.u32 8, %s21
      %s401 = smul.u32 8, %s21
      %p402 = scmp.lt.s32.totalorder %s401, 15
      %s403 = scalar_select %p402, %s401, 15
      %s404 = smul.addr %s403, 8
      %s405 = scalar_lea.vmem %s10, %s404
      %s406 = smul.u32 8, %s21
      %v407 = vld [vmem:[%s387] sm:$0xff]
      %v408 = vld [vmem:[%s387 + $0x8] sm:$0xff]
      %v409 = vld [vmem:[%s387 + $0x10] sm:$0xff]
      %v410 = vld [vmem:[%s387 + $0x18] sm:$0xff]
      %v411 = vld [vmem:[%s387 + $0x20] sm:$0xff]
      %v412 = vld [vmem:[%s387 + $0x28] sm:$0xff]
      %v413 = vld [vmem:[%s387 + $0x30] sm:$0xff]
      %v414 = vld [vmem:[%s387 + $0x38] sm:$0xff]
      %v415 = vld [vmem:[%s3] sm:$0xff]
      %v416 = vld [vmem:[%s3 + $0x8] sm:$0xff]
      %v417 = vld [vmem:[%s3 + $0x10] sm:$0xff]
      %v418 = vld [vmem:[%s3 + $0x18] sm:$0xff]
      %v419 = vld [vmem:[%s3 + $0x20] sm:$0xff]
      %v420 = vld [vmem:[%s3 + $0x28] sm:$0xff]
      %v421 = vld [vmem:[%s3 + $0x30] sm:$0xff]
      %v422 = vld [vmem:[%s3 + $0x38] sm:$0xff]
      %v423 = vld [vmem:[%s4] sm:$0x3]
      %v425 = vperm.slane %v423, 0
      %v426 = vperm.slane %v423, 1
      %vm429 = vcmask 261120
      %v431 = vsel %vm429, %v407, 0
      %v434 = vsel %vm429, %v408, 0
      %v437 = vsel %vm429, %v409, 0
      %v440 = vsel %vm429, %v410, 0
      %v443 = vsel %vm429, %v411, 0
      %v446 = vsel %vm429, %v412, 0
      %v449 = vsel %vm429, %v413, 0
      %v452 = vsel %vm429, %v414, 0
      %454 = vmatpush.msra.mxu0 0.0
      %455 = vmatpush.msra.mxu0 0.0
      %456 = vmatpush.msra.mxu0 0.0
      %457 = vmatpush.msra.mxu0 0.0
      %458 = vmatpush.msra.mxu0 0.0
      %459 = vmatpush.msra.mxu0 0.0
      %460 = vmatpush.msra.mxu0 0.0
      %461 = vmatpush.msra.mxu0 0.0
      %462 = vmatpush.msra.mxu0 0.0
      %463 = vmatpush.msra.mxu0 0.0
      %464 = vmatpush.msra.mxu0 0.0
      %465 = vmatpush.msra.mxu0 0.0
      %466 = vmatpush.msra.mxu0 %v421
      %467 = vmatpush.msra.mxu0 %v419
      %468 = vmatpush.msra.mxu0 %v417
      %469 = vmatpush.msra.mxu0 %v415
      %470 = vmatmul.f32.gmra.mxu0 %v431
      %v471 = vpop.f32.mrf.mxu0
      %v472 = vadd.f32 %v425, %v471
      %473 = vmatmul.f32.gmra.mxu0 %v434
      %v474 = vpop.f32.mrf.mxu0
      %v475 = vadd.f32 %v425, %v474
      %476 = vmatmul.f32.gmra.mxu0 %v437
      %v477 = vpop.f32.mrf.mxu0
      %v478 = vadd.f32 %v425, %v477
      %479 = vmatmul.f32.gmra.mxu0 %v440
      %v480 = vpop.f32.mrf.mxu0
      %v481 = vadd.f32 %v425, %v480
      %482 = vmatmul.f32.gmra.mxu0 %v443
      %v483 = vpop.f32.mrf.mxu0
      %v484 = vadd.f32 %v425, %v483
      %485 = vmatmul.f32.gmra.mxu0 %v446
      %v486 = vpop.f32.mrf.mxu0
      %v487 = vadd.f32 %v425, %v486
      %488 = vmatmul.f32.gmra.mxu0 %v449
      %v489 = vpop.f32.mrf.mxu0
      %v490 = vadd.f32 %v425, %v489
      %491 = vmatmul.f32.gmra.mxu0 %v452
      %v492 = vpop.f32.mrf.mxu0
      %v493 = vadd.f32 %v425, %v492
      %494 = vdwg.mxu0
      %495 = vmatpush.msra.mxu0 0.0
      %496 = vmatpush.msra.mxu0 0.0
      %497 = vmatpush.msra.mxu0 0.0
      %498 = vmatpush.msra.mxu0 0.0
      %499 = vmatpush.msra.mxu0 0.0
      %500 = vmatpush.msra.mxu0 0.0
      %501 = vmatpush.msra.mxu0 0.0
      %502 = vmatpush.msra.mxu0 0.0
      %503 = vmatpush.msra.mxu0 0.0
      %504 = vmatpush.msra.mxu0 0.0
      %505 = vmatpush.msra.mxu0 0.0
      %506 = vmatpush.msra.mxu0 0.0
      %507 = vmatpush.msra.mxu0 %v422
      %508 = vmatpush.msra.mxu0 %v420
      %509 = vmatpush.msra.mxu0 %v418
      %510 = vmatpush.msra.mxu0 %v416
      %511 = vmatmul.f32.gmra.mxu0 %v431
      %v512 = vpop.f32.mrf.mxu0
      %v513 = vadd.f32 %v426, %v512
      %514 = vmatmul.f32.gmra.mxu0 %v434
      %v515 = vpop.f32.mrf.mxu0
      %v516 = vadd.f32 %v426, %v515
      %517 = vmatmul.f32.gmra.mxu0 %v437
      %v518 = vpop.f32.mrf.mxu0
      %v519 = vadd.f32 %v426, %v518
      %520 = vmatmul.f32.gmra.mxu0 %v440
      %v521 = vpop.f32.mrf.mxu0
      %v522 = vadd.f32 %v426, %v521
      %523 = vmatmul.f32.gmra.mxu0 %v443
      %v524 = vpop.f32.mrf.mxu0
      %v525 = vadd.f32 %v426, %v524
      %526 = vmatmul.f32.gmra.mxu0 %v446
      %v527 = vpop.f32.mrf.mxu0
      %v528 = vadd.f32 %v426, %v527
      %529 = vmatmul.f32.gmra.mxu0 %v449
      %v530 = vpop.f32.mrf.mxu0
      %v531 = vadd.f32 %v426, %v530
      %532 = vmatmul.f32.gmra.mxu0 %v452
      %v533 = vpop.f32.mrf.mxu0
      %v534 = vadd.f32 %v426, %v533
      %535 = vdwg.mxu0
      %v536 = vld [vmem:[%s393] sm:$0xff]
      %v537 = vld [vmem:[%s393 + $0x8] sm:$0xff]
      %v538 = vld [vmem:[%s393 + $0x10] sm:$0xff]
      %v539 = vld [vmem:[%s393 + $0x18] sm:$0xff]
      %v540 = vld [vmem:[%s393 + $0x20] sm:$0xff]
      %v541 = vld [vmem:[%s393 + $0x28] sm:$0xff]
      %v542 = vld [vmem:[%s393 + $0x30] sm:$0xff]
      %v543 = vld [vmem:[%s393 + $0x38] sm:$0xff]
      %v544 = vld [vmem:[%s399] sm:$0xff]
      %v545 = vld [vmem:[%s399 + $0x8] sm:$0xff]
      %v546 = vld [vmem:[%s399 + $0x10] sm:$0xff]
      %v547 = vld [vmem:[%s399 + $0x18] sm:$0xff]
      %v548 = vld [vmem:[%s399 + $0x20] sm:$0xff]
      %v549 = vld [vmem:[%s399 + $0x28] sm:$0xff]
      %v550 = vld [vmem:[%s399 + $0x30] sm:$0xff]
      %v551 = vld [vmem:[%s399 + $0x38] sm:$0xff]
      %v560 = vrot.slane %v513, 1
      %v561 = vrot.slane %v513, 2
      %v562 = vrot.slane %v513, 3
      %v563 = vrot.slane %v513, 4
      %v564 = vrot.slane %v513, 5
      %v565 = vrot.slane %v513, 6
      %v566 = vrot.slane %v513, 7
      %v567 = vrot.slane %v516, 1
      %v568 = vrot.slane %v516, 2
      %v569 = vrot.slane %v516, 3
      %v570 = vrot.slane %v516, 4
      %v571 = vrot.slane %v516, 5
      %v572 = vrot.slane %v516, 6
      %v573 = vrot.slane %v516, 7
      %v574 = vrot.slane %v519, 1
      %v575 = vrot.slane %v519, 2
      %v576 = vrot.slane %v519, 3
      %v577 = vrot.slane %v519, 4
      %v578 = vrot.slane %v519, 5
      %v579 = vrot.slane %v519, 6
      %v580 = vrot.slane %v519, 7
      %v581 = vrot.slane %v522, 1
      %v582 = vrot.slane %v522, 2
      %v583 = vrot.slane %v522, 3
      %v584 = vrot.slane %v522, 4
      %v585 = vrot.slane %v522, 5
      %v586 = vrot.slane %v522, 6
      %v587 = vrot.slane %v522, 7
      %v588 = vrot.slane %v525, 1
      %v589 = vrot.slane %v525, 2
      %v590 = vrot.slane %v525, 3
      %v591 = vrot.slane %v525, 4
      %v592 = vrot.slane %v525, 5
      %v593 = vrot.slane %v525, 6
      %v594 = vrot.slane %v525, 7
      %v595 = vrot.slane %v528, 1
      %v596 = vrot.slane %v528, 2
      %v597 = vrot.slane %v528, 3
      %v598 = vrot.slane %v528, 4
      %v599 = vrot.slane %v528, 5
      %v600 = vrot.slane %v528, 6
      %v601 = vrot.slane %v528, 7
      %v602 = vrot.slane %v531, 1
      %v603 = vrot.slane %v531, 2
      %v604 = vrot.slane %v531, 3
      %v605 = vrot.slane %v531, 4
      %v606 = vrot.slane %v531, 5
      %v607 = vrot.slane %v531, 6
      %v608 = vrot.slane %v531, 7
      %v609 = vrot.slane %v534, 1
      %v610 = vrot.slane %v534, 2
      %v611 = vrot.slane %v534, 3
      %v612 = vrot.slane %v534, 4
      %v613 = vrot.slane %v534, 5
      %v614 = vrot.slane %v534, 6
      %v615 = vrot.slane %v534, 7
      %v616 = vperm.slane %v513, 0
      %v617 = vperm.slane %v560, 0
      %v618 = vperm.slane %v561, 0
      %v619 = vperm.slane %v562, 0
      %v620 = vperm.slane %v563, 0
      %v621 = vperm.slane %v564, 0
      %v622 = vperm.slane %v565, 0
      %v623 = vperm.slane %v566, 0
      %v624 = vperm.slane %v516, 0
      %v625 = vperm.slane %v567, 0
      %v626 = vperm.slane %v568, 0
      %v627 = vperm.slane %v569, 0
      %v628 = vperm.slane %v570, 0
      %v629 = vperm.slane %v571, 0
      %v630 = vperm.slane %v572, 0
      %v631 = vperm.slane %v573, 0
      %v632 = vperm.slane %v519, 0
      %v633 = vperm.slane %v574, 0
      %v634 = vperm.slane %v575, 0
      %v635 = vperm.slane %v576, 0
      %v636 = vperm.slane %v577, 0
      %v637 = vperm.slane %v578, 0
      %v638 = vperm.slane %v579, 0
      %v639 = vperm.slane %v580, 0
      %v640 = vperm.slane %v522, 0
      %v641 = vperm.slane %v581, 0
      %v642 = vperm.slane %v582, 0
      %v643 = vperm.slane %v583, 0
      %v644 = vperm.slane %v584, 0
      %v645 = vperm.slane %v585, 0
      %v646 = vperm.slane %v586, 0
      %v647 = vperm.slane %v587, 0
      %v648 = vperm.slane %v525, 0
      %v649 = vperm.slane %v588, 0
      %v650 = vperm.slane %v589, 0
      %v651 = vperm.slane %v590, 0
      %v652 = vperm.slane %v591, 0
      %v653 = vperm.slane %v592, 0
      %v654 = vperm.slane %v593, 0
      %v655 = vperm.slane %v594, 0
      %v656 = vperm.slane %v528, 0
      %v657 = vperm.slane %v595, 0
      %v658 = vperm.slane %v596, 0
      %v659 = vperm.slane %v597, 0
      %v660 = vperm.slane %v598, 0
      %v661 = vperm.slane %v599, 0
      %v662 = vperm.slane %v600, 0
      %v663 = vperm.slane %v601, 0
      %v664 = vperm.slane %v531, 0
      %v665 = vperm.slane %v602, 0
      %v666 = vperm.slane %v603, 0
      %v667 = vperm.slane %v604, 0
      %v668 = vperm.slane %v605, 0
      %v669 = vperm.slane %v606, 0
      %v670 = vperm.slane %v607, 0
      %v671 = vperm.slane %v608, 0
      %v672 = vperm.slane %v534, 0
      %v673 = vperm.slane %v609, 0
      %v674 = vperm.slane %v610, 0
      %v675 = vperm.slane %v611, 0
      %v676 = vperm.slane %v612, 0
      %v677 = vperm.slane %v613, 0
      %v678 = vperm.slane %v614, 0
      %v679 = vperm.slane %v615, 0
      %v744 = vadd.f32 %v472, %v616
      %v745 = vadd.f32 %v472, %v617
      %v746 = vadd.f32 %v472, %v618
      %v747 = vadd.f32 %v472, %v619
      %v748 = vadd.f32 %v472, %v620
      %v749 = vadd.f32 %v472, %v621
      %v750 = vadd.f32 %v472, %v622
      %v751 = vadd.f32 %v472, %v623
      %v752 = vadd.f32 %v475, %v624
      %v753 = vadd.f32 %v475, %v625
      %v754 = vadd.f32 %v475, %v626
      %v755 = vadd.f32 %v475, %v627
      %v756 = vadd.f32 %v475, %v628
      %v757 = vadd.f32 %v475, %v629
      %v758 = vadd.f32 %v475, %v630
      %v759 = vadd.f32 %v475, %v631
      %v760 = vadd.f32 %v478, %v632
      %v761 = vadd.f32 %v478, %v633
      %v762 = vadd.f32 %v478, %v634
      %v763 = vadd.f32 %v478, %v635
      %v764 = vadd.f32 %v478, %v636
      %v765 = vadd.f32 %v478, %v637
      %v766 = vadd.f32 %v478, %v638
      %v767 = vadd.f32 %v478, %v639
      %v768 = vadd.f32 %v481, %v640
      %v769 = vadd.f32 %v481, %v641
      %v770 = vadd.f32 %v481, %v642
      %v771 = vadd.f32 %v481, %v643
      %v772 = vadd.f32 %v481, %v644
      %v773 = vadd.f32 %v481, %v645
      %v774 = vadd.f32 %v481, %v646
      %v775 = vadd.f32 %v481, %v647
      %v776 = vadd.f32 %v484, %v648
      %v777 = vadd.f32 %v484, %v649
      %v778 = vadd.f32 %v484, %v650
      %v779 = vadd.f32 %v484, %v651
      %v780 = vadd.f32 %v484, %v652
      %v781 = vadd.f32 %v484, %v653
      %v782 = vadd.f32 %v484, %v654
      %v783 = vadd.f32 %v484, %v655
      %v784 = vadd.f32 %v487, %v656
      %v785 = vadd.f32 %v487, %v657
      %v786 = vadd.f32 %v487, %v658
      %v787 = vadd.f32 %v487, %v659
      %v788 = vadd.f32 %v487, %v660
      %v789 = vadd.f32 %v487, %v661
      %v790 = vadd.f32 %v487, %v662
      %v791 = vadd.f32 %v487, %v663
      %v792 = vadd.f32 %v490, %v664
      %v793 = vadd.f32 %v490, %v665
      %v794 = vadd.f32 %v490, %v666
      %v795 = vadd.f32 %v490, %v667
      %v796 = vadd.f32 %v490, %v668
      %v797 = vadd.f32 %v490, %v669
      %v798 = vadd.f32 %v490, %v670
      %v799 = vadd.f32 %v490, %v671
      %v800 = vadd.f32 %v493, %v672
      %v801 = vadd.f32 %v493, %v673
      %v802 = vadd.f32 %v493, %v674
      %v803 = vadd.f32 %v493, %v675
      %v804 = vadd.f32 %v493, %v676
      %v805 = vadd.f32 %v493, %v677
      %v806 = vadd.f32 %v493, %v678
      %v807 = vadd.f32 %v493, %v679
      %v808 = vld [vmem:[%s5] sm:$0x1]
      %v809 = vperm.slane %v544, 0
      %v810 = vlaneseq
      %v811 = vshrl.u32 %v810, 7
      %813 = vset.pattern.permute.xlu0 %v811
      %814 = vperm.xlu0 %813, %v809
      %v815 = vpop.permute.xlu0 %814
      %v816 = vperm.slane %v544, 1
      %v817 = vlaneseq
      %v818 = vshrl.u32 %v817, 7
      %820 = vset.pattern.permute.xlu0 %v818
      %821 = vperm.xlu0 %820, %v816
      %v822 = vpop.permute.xlu0 %821
      %v823 = vperm.slane %v544, 2
      %v824 = vlaneseq
      %v825 = vshrl.u32 %v824, 7
      %827 = vset.pattern.permute.xlu0 %v825
      %828 = vperm.xlu0 %827, %v823
      %v829 = vpop.permute.xlu0 %828
      %v830 = vperm.slane %v544, 3
      %v831 = vlaneseq
      %v832 = vshrl.u32 %v831, 7
      %834 = vset.pattern.permute.xlu0 %v832
      %835 = vperm.xlu0 %834, %v830
      %v836 = vpop.permute.xlu0 %835
      %v837 = vperm.slane %v544, 4
      %v838 = vlaneseq
      %v839 = vshrl.u32 %v838, 7
      %841 = vset.pattern.permute.xlu0 %v839
      %842 = vperm.xlu0 %841, %v837
      %v843 = vpop.permute.xlu0 %842
      %v844 = vperm.slane %v544, 5
      %v845 = vlaneseq
      %v846 = vshrl.u32 %v845, 7
      %848 = vset.pattern.permute.xlu0 %v846
      %849 = vperm.xlu0 %848, %v844
      %v850 = vpop.permute.xlu0 %849
      %v851 = vperm.slane %v544, 6
      %v852 = vlaneseq
      %v853 = vshrl.u32 %v852, 7
      %855 = vset.pattern.permute.xlu0 %v853
      %856 = vperm.xlu0 %855, %v851
      %v857 = vpop.permute.xlu0 %856
      %v858 = vperm.slane %v544, 7
      %v859 = vlaneseq
      %v860 = vshrl.u32 %v859, 7
      %862 = vset.pattern.permute.xlu0 %v860
      %863 = vperm.xlu0 %862, %v858
      %v864 = vpop.permute.xlu0 %863
      %v865 = vperm.slane %v545, 0
      %v866 = vlaneseq
      %v867 = vshrl.u32 %v866, 7
      %869 = vset.pattern.permute.xlu0 %v867
      %870 = vperm.xlu0 %869, %v865
      %v871 = vpop.permute.xlu0 %870
      %v872 = vperm.slane %v545, 1
      %v873 = vlaneseq
      %v874 = vshrl.u32 %v873, 7
      %876 = vset.pattern.permute.xlu0 %v874
      %877 = vperm.xlu0 %876, %v872
      %v878 = vpop.permute.xlu0 %877
      %v879 = vperm.slane %v545, 2
      %v880 = vlaneseq
      %v881 = vshrl.u32 %v880, 7
      %883 = vset.pattern.permute.xlu0 %v881
      %884 = vperm.xlu0 %883, %v879
      %v885 = vpop.permute.xlu0 %884
      %v886 = vperm.slane %v545, 3
      %v887 = vlaneseq
      %v888 = vshrl.u32 %v887, 7
      %890 = vset.pattern.permute.xlu0 %v888
      %891 = vperm.xlu0 %890, %v886
      %v892 = vpop.permute.xlu0 %891
      %v893 = vperm.slane %v545, 4
      %v894 = vlaneseq
      %v895 = vshrl.u32 %v894, 7
      %897 = vset.pattern.permute.xlu0 %v895
      %898 = vperm.xlu0 %897, %v893
      %v899 = vpop.permute.xlu0 %898
      %v900 = vperm.slane %v545, 5
      %v901 = vlaneseq
      %v902 = vshrl.u32 %v901, 7
      %904 = vset.pattern.permute.xlu0 %v902
      %905 = vperm.xlu0 %904, %v900
      %v906 = vpop.permute.xlu0 %905
      %v907 = vperm.slane %v545, 6
      %v908 = vlaneseq
      %v909 = vshrl.u32 %v908, 7
      %911 = vset.pattern.permute.xlu0 %v909
      %912 = vperm.xlu0 %911, %v907
      %v913 = vpop.permute.xlu0 %912
      %v914 = vperm.slane %v545, 7
      %v915 = vlaneseq
      %v916 = vshrl.u32 %v915, 7
      %918 = vset.pattern.permute.xlu0 %v916
      %919 = vperm.xlu0 %918, %v914
      %v920 = vpop.permute.xlu0 %919
      %v921 = vperm.slane %v546, 0
      %v922 = vlaneseq
      %v923 = vshrl.u32 %v922, 7
      %925 = vset.pattern.permute.xlu0 %v923
      %926 = vperm.xlu0 %925, %v921
      %v927 = vpop.permute.xlu0 %926
      %v928 = vperm.slane %v546, 1
      %v929 = vlaneseq
      %v930 = vshrl.u32 %v929, 7
      %932 = vset.pattern.permute.xlu0 %v930
      %933 = vperm.xlu0 %932, %v928
      %v934 = vpop.permute.xlu0 %933
      %v935 = vperm.slane %v546, 2
      %v936 = vlaneseq
      %v937 = vshrl.u32 %v936, 7
      %939 = vset.pattern.permute.xlu0 %v937
      %940 = vperm.xlu0 %939, %v935
      %v941 = vpop.permute.xlu0 %940
      %v942 = vperm.slane %v546, 3
      %v943 = vlaneseq
      %v944 = vshrl.u32 %v943, 7
      %946 = vset.pattern.permute.xlu0 %v944
      %947 = vperm.xlu0 %946, %v942
      %v948 = vpop.permute.xlu0 %947
      %v949 = vperm.slane %v546, 4
      %v950 = vlaneseq
      %v951 = vshrl.u32 %v950, 7
      %953 = vset.pattern.permute.xlu0 %v951
      %954 = vperm.xlu0 %953, %v949
      %v955 = vpop.permute.xlu0 %954
      %v956 = vperm.slane %v546, 5
      %v957 = vlaneseq
      %v958 = vshrl.u32 %v957, 7
      %960 = vset.pattern.permute.xlu0 %v958
      %961 = vperm.xlu0 %960, %v956
      %v962 = vpop.permute.xlu0 %961
      %v963 = vperm.slane %v546, 6
      %v964 = vlaneseq
      %v965 = vshrl.u32 %v964, 7
      %967 = vset.pattern.permute.xlu0 %v965
      %968 = vperm.xlu0 %967, %v963
      %v969 = vpop.permute.xlu0 %968
      %v970 = vperm.slane %v546, 7
      %v971 = vlaneseq
      %v972 = vshrl.u32 %v971, 7
      %974 = vset.pattern.permute.xlu0 %v972
      %975 = vperm.xlu0 %974, %v970
      %v976 = vpop.permute.xlu0 %975
      %v977 = vperm.slane %v547, 0
      %v978 = vlaneseq
      %v979 = vshrl.u32 %v978, 7
      %981 = vset.pattern.permute.xlu0 %v979
      %982 = vperm.xlu0 %981, %v977
      %v983 = vpop.permute.xlu0 %982
      %v984 = vperm.slane %v547, 1
      %v985 = vlaneseq
      %v986 = vshrl.u32 %v985, 7
      %988 = vset.pattern.permute.xlu0 %v986
      %989 = vperm.xlu0 %988, %v984
      %v990 = vpop.permute.xlu0 %989
      %v991 = vperm.slane %v547, 2
      %v992 = vlaneseq
      %v993 = vshrl.u32 %v992, 7
      %995 = vset.pattern.permute.xlu0 %v993
      %996 = vperm.xlu0 %995, %v991
      %v997 = vpop.permute.xlu0 %996
      %v998 = vperm.slane %v547, 3
      %v999 = vlaneseq
      %v1000 = vshrl.u32 %v999, 7
      %1002 = vset.pattern.permute.xlu0 %v1000
      %1003 = vperm.xlu0 %1002, %v998
      %v1004 = vpop.permute.xlu0 %1003
      %v1005 = vperm.slane %v547, 4
      %v1006 = vlaneseq
      %v1007 = vshrl.u32 %v1006, 7
      %1009 = vset.pattern.permute.xlu0 %v1007
      %1010 = vperm.xlu0 %1009, %v1005
      %v1011 = vpop.permute.xlu0 %1010
      %v1012 = vperm.slane %v547, 5
      %v1013 = vlaneseq
      %v1014 = vshrl.u32 %v1013, 7
      %1016 = vset.pattern.permute.xlu0 %v1014
      %1017 = vperm.xlu0 %1016, %v1012
      %v1018 = vpop.permute.xlu0 %1017
      %v1019 = vperm.slane %v547, 6
      %v1020 = vlaneseq
      %v1021 = vshrl.u32 %v1020, 7
      %1023 = vset.pattern.permute.xlu0 %v1021
      %1024 = vperm.xlu0 %1023, %v1019
      %v1025 = vpop.permute.xlu0 %1024
      %v1026 = vperm.slane %v547, 7
      %v1027 = vlaneseq
      %v1028 = vshrl.u32 %v1027, 7
      %1030 = vset.pattern.permute.xlu0 %v1028
      %1031 = vperm.xlu0 %1030, %v1026
      %v1032 = vpop.permute.xlu0 %1031
      %v1033 = vperm.slane %v548, 0
      %v1034 = vlaneseq
      %v1035 = vshrl.u32 %v1034, 7
      %1037 = vset.pattern.permute.xlu0 %v1035
      %1038 = vperm.xlu0 %1037, %v1033
      %v1039 = vpop.permute.xlu0 %1038
      %v1040 = vperm.slane %v548, 1
      %v1041 = vlaneseq
      %v1042 = vshrl.u32 %v1041, 7
      %1044 = vset.pattern.permute.xlu0 %v1042
      %1045 = vperm.xlu0 %1044, %v1040
      %v1046 = vpop.permute.xlu0 %1045
      %v1047 = vperm.slane %v548, 2
      %v1048 = vlaneseq
      %v1049 = vshrl.u32 %v1048, 7
      %1051 = vset.pattern.permute.xlu0 %v1049
      %1052 = vperm.xlu0 %1051, %v1047
      %v1053 = vpop.permute.xlu0 %1052
      %v1054 = vperm.slane %v548, 3
      %v1055 = vlaneseq
      %v1056 = vshrl.u32 %v1055, 7
      %1058 = vset.pattern.permute.xlu0 %v1056
      %1059 = vperm.xlu0 %1058, %v1054
      %v1060 = vpop.permute.xlu0 %1059
      %v1061 = vperm.slane %v548, 4
      %v1062 = vlaneseq
      %v1063 = vshrl.u32 %v1062, 7
      %1065 = vset.pattern.permute.xlu0 %v1063
      %1066 = vperm.xlu0 %1065, %v1061
      %v1067 = vpop.permute.xlu0 %1066
      %v1068 = vperm.slane %v548, 5
      %v1069 = vlaneseq
      %v1070 = vshrl.u32 %v1069, 7
      %1072 = vset.pattern.permute.xlu0 %v1070
      %1073 = vperm.xlu0 %1072, %v1068
      %v1074 = vpop.permute.xlu0 %1073
      %v1075 = vperm.slane %v548, 6
      %v1076 = vlaneseq
      %v1077 = vshrl.u32 %v1076, 7
      %1079 = vset.pattern.permute.xlu0 %v1077
      %1080 = vperm.xlu0 %1079, %v1075
      %v1081 = vpop.permute.xlu0 %1080
      %v1082 = vperm.slane %v548, 7
      %v1083 = vlaneseq
      %v1084 = vshrl.u32 %v1083, 7
      %1086 = vset.pattern.permute.xlu0 %v1084
      %1087 = vperm.xlu0 %1086, %v1082
      %v1088 = vpop.permute.xlu0 %1087
      %v1089 = vperm.slane %v549, 0
      %v1090 = vlaneseq
      %v1091 = vshrl.u32 %v1090, 7
      %1093 = vset.pattern.permute.xlu0 %v1091
      %1094 = vperm.xlu0 %1093, %v1089
      %v1095 = vpop.permute.xlu0 %1094
      %v1096 = vperm.slane %v549, 1
      %v1097 = vlaneseq
      %v1098 = vshrl.u32 %v1097, 7
      %1100 = vset.pattern.permute.xlu0 %v1098
      %1101 = vperm.xlu0 %1100, %v1096
      %v1102 = vpop.permute.xlu0 %1101
      %v1103 = vperm.slane %v549, 2
      %v1104 = vlaneseq
      %v1105 = vshrl.u32 %v1104, 7
      %1107 = vset.pattern.permute.xlu0 %v1105
      %1108 = vperm.xlu0 %1107, %v1103
      %v1109 = vpop.permute.xlu0 %1108
      %v1110 = vperm.slane %v549, 3
      %v1111 = vlaneseq
      %v1112 = vshrl.u32 %v1111, 7
      %1114 = vset.pattern.permute.xlu0 %v1112
      %1115 = vperm.xlu0 %1114, %v1110
      %v1116 = vpop.permute.xlu0 %1115
      %v1117 = vperm.slane %v549, 4
      %v1118 = vlaneseq
      %v1119 = vshrl.u32 %v1118, 7
      %1121 = vset.pattern.permute.xlu0 %v1119
      %1122 = vperm.xlu0 %1121, %v1117
      %v1123 = vpop.permute.xlu0 %1122
      %v1124 = vperm.slane %v549, 5
      %v1125 = vlaneseq
      %v1126 = vshrl.u32 %v1125, 7
      %1128 = vset.pattern.permute.xlu0 %v1126
      %1129 = vperm.xlu0 %1128, %v1124
      %v1130 = vpop.permute.xlu0 %1129
      %v1131 = vperm.slane %v549, 6
      %v1132 = vlaneseq
      %v1133 = vshrl.u32 %v1132, 7
      %1135 = vset.pattern.permute.xlu0 %v1133
      %1136 = vperm.xlu0 %1135, %v1131
      %v1137 = vpop.permute.xlu0 %1136
      %v1138 = vperm.slane %v549, 7
      %v1139 = vlaneseq
      %v1140 = vshrl.u32 %v1139, 7
      %1142 = vset.pattern.permute.xlu0 %v1140
      %1143 = vperm.xlu0 %1142, %v1138
      %v1144 = vpop.permute.xlu0 %1143
      %v1145 = vperm.slane %v550, 0
      %v1146 = vlaneseq
      %v1147 = vshrl.u32 %v1146, 7
      %1149 = vset.pattern.permute.xlu0 %v1147
      %1150 = vperm.xlu0 %1149, %v1145
      %v1151 = vpop.permute.xlu0 %1150
      %v1152 = vperm.slane %v550, 1
      %v1153 = vlaneseq
      %v1154 = vshrl.u32 %v1153, 7
      %1156 = vset.pattern.permute.xlu0 %v1154
      %1157 = vperm.xlu0 %1156, %v1152
      %v1158 = vpop.permute.xlu0 %1157
      %v1159 = vperm.slane %v550, 2
      %v1160 = vlaneseq
      %v1161 = vshrl.u32 %v1160, 7
      %1163 = vset.pattern.permute.xlu0 %v1161
      %1164 = vperm.xlu0 %1163, %v1159
      %v1165 = vpop.permute.xlu0 %1164
      %v1166 = vperm.slane %v550, 3
      %v1167 = vlaneseq
      %v1168 = vshrl.u32 %v1167, 7
      %1170 = vset.pattern.permute.xlu0 %v1168
      %1171 = vperm.xlu0 %1170, %v1166
      %v1172 = vpop.permute.xlu0 %1171
      %v1173 = vperm.slane %v550, 4
      %v1174 = vlaneseq
      %v1175 = vshrl.u32 %v1174, 7
      %1177 = vset.pattern.permute.xlu0 %v1175
      %1178 = vperm.xlu0 %1177, %v1173
      %v1179 = vpop.permute.xlu0 %1178
      %v1180 = vperm.slane %v550, 5
      %v1181 = vlaneseq
      %v1182 = vshrl.u32 %v1181, 7
      %1184 = vset.pattern.permute.xlu0 %v1182
      %1185 = vperm.xlu0 %1184, %v1180
      %v1186 = vpop.permute.xlu0 %1185
      %v1187 = vperm.slane %v550, 6
      %v1188 = vlaneseq
      %v1189 = vshrl.u32 %v1188, 7
      %1191 = vset.pattern.permute.xlu0 %v1189
      %1192 = vperm.xlu0 %1191, %v1187
      %v1193 = vpop.permute.xlu0 %1192
      %v1194 = vperm.slane %v550, 7
      %v1195 = vlaneseq
      %v1196 = vshrl.u32 %v1195, 7
      %1198 = vset.pattern.permute.xlu0 %v1196
      %1199 = vperm.xlu0 %1198, %v1194
      %v1200 = vpop.permute.xlu0 %1199
      %v1201 = vperm.slane %v551, 0
      %v1202 = vlaneseq
      %v1203 = vshrl.u32 %v1202, 7
      %1205 = vset.pattern.permute.xlu0 %v1203
      %1206 = vperm.xlu0 %1205, %v1201
      %v1207 = vpop.permute.xlu0 %1206
      %v1208 = vperm.slane %v551, 1
      %v1209 = vlaneseq
      %v1210 = vshrl.u32 %v1209, 7
      %1212 = vset.pattern.permute.xlu0 %v1210
      %1213 = vperm.xlu0 %1212, %v1208
      %v1214 = vpop.permute.xlu0 %1213
      %v1215 = vperm.slane %v551, 2
      %v1216 = vlaneseq
      %v1217 = vshrl.u32 %v1216, 7
      %1219 = vset.pattern.permute.xlu0 %v1217
      %1220 = vperm.xlu0 %1219, %v1215
      %v1221 = vpop.permute.xlu0 %1220
      %v1222 = vperm.slane %v551, 3
      %v1223 = vlaneseq
      %v1224 = vshrl.u32 %v1223, 7
      %1226 = vset.pattern.permute.xlu0 %v1224
      %1227 = vperm.xlu0 %1226, %v1222
      %v1228 = vpop.permute.xlu0 %1227
      %v1229 = vperm.slane %v551, 4
      %v1230 = vlaneseq
      %v1231 = vshrl.u32 %v1230, 7
      %1233 = vset.pattern.permute.xlu0 %v1231
      %1234 = vperm.xlu0 %1233, %v1229
      %v1235 = vpop.permute.xlu0 %1234
      %v1236 = vperm.slane %v551, 5
      %v1237 = vlaneseq
      %v1238 = vshrl.u32 %v1237, 7
      %1240 = vset.pattern.permute.xlu0 %v1238
      %1241 = vperm.xlu0 %1240, %v1236
      %v1242 = vpop.permute.xlu0 %1241
      %v1243 = vperm.slane %v551, 6
      %v1244 = vlaneseq
      %v1245 = vshrl.u32 %v1244, 7
      %1247 = vset.pattern.permute.xlu0 %v1245
      %1248 = vperm.xlu0 %1247, %v1243
      %v1249 = vpop.permute.xlu0 %1248
      %v1250 = vperm.slane %v551, 7
      %v1251 = vlaneseq
      %v1252 = vshrl.u32 %v1251, 7
      %1254 = vset.pattern.permute.xlu0 %v1252
      %1255 = vperm.xlu0 %1254, %v1250
      %v1256 = vpop.permute.xlu0 %1255
      %v1258 = vperm.slane %v808, 0
      %v1260 = vmul.f32 %v1258, %v815
      %v1261 = vmul.f32 %v1258, %v822
      %v1262 = vmul.f32 %v1258, %v829
      %v1263 = vmul.f32 %v1258, %v836
      %v1264 = vmul.f32 %v1258, %v843
      %v1265 = vmul.f32 %v1258, %v850
      %v1266 = vmul.f32 %v1258, %v857
      %v1267 = vmul.f32 %v1258, %v864
      %v1268 = vmul.f32 %v1258, %v871
      %v1269 = vmul.f32 %v1258, %v878
      %v1270 = vmul.f32 %v1258, %v885
      %v1271 = vmul.f32 %v1258, %v892
      %v1272 = vmul.f32 %v1258, %v899
      %v1273 = vmul.f32 %v1258, %v906
      %v1274 = vmul.f32 %v1258, %v913
      %v1275 = vmul.f32 %v1258, %v920
      %v1276 = vmul.f32 %v1258, %v927
      %v1277 = vmul.f32 %v1258, %v934
      %v1278 = vmul.f32 %v1258, %v941
      %v1279 = vmul.f32 %v1258, %v948
      %v1280 = vmul.f32 %v1258, %v955
      %v1281 = vmul.f32 %v1258, %v962
      %v1282 = vmul.f32 %v1258, %v969
      %v1283 = vmul.f32 %v1258, %v976
      %v1284 = vmul.f32 %v1258, %v983
      %v1285 = vmul.f32 %v1258, %v990
      %v1286 = vmul.f32 %v1258, %v997
      %v1287 = vmul.f32 %v1258, %v1004
      %v1288 = vmul.f32 %v1258, %v1011
      %v1289 = vmul.f32 %v1258, %v1018
      %v1290 = vmul.f32 %v1258, %v1025
      %v1291 = vmul.f32 %v1258, %v1032
      %v1292 = vmul.f32 %v1258, %v1039
      %v1293 = vmul.f32 %v1258, %v1046
      %v1294 = vmul.f32 %v1258, %v1053
      %v1295 = vmul.f32 %v1258, %v1060
      %v1296 = vmul.f32 %v1258, %v1067
      %v1297 = vmul.f32 %v1258, %v1074
      %v1298 = vmul.f32 %v1258, %v1081
      %v1299 = vmul.f32 %v1258, %v1088
      %v1300 = vmul.f32 %v1258, %v1095
      %v1301 = vmul.f32 %v1258, %v1102
      %v1302 = vmul.f32 %v1258, %v1109
      %v1303 = vmul.f32 %v1258, %v1116
      %v1304 = vmul.f32 %v1258, %v1123
      %v1305 = vmul.f32 %v1258, %v1130
      %v1306 = vmul.f32 %v1258, %v1137
      %v1307 = vmul.f32 %v1258, %v1144
      %v1308 = vmul.f32 %v1258, %v1151
      %v1309 = vmul.f32 %v1258, %v1158
      %v1310 = vmul.f32 %v1258, %v1165
      %v1311 = vmul.f32 %v1258, %v1172
      %v1312 = vmul.f32 %v1258, %v1179
      %v1313 = vmul.f32 %v1258, %v1186
      %v1314 = vmul.f32 %v1258, %v1193
      %v1315 = vmul.f32 %v1258, %v1200
      %v1316 = vmul.f32 %v1258, %v1207
      %v1317 = vmul.f32 %v1258, %v1214
      %v1318 = vmul.f32 %v1258, %v1221
      %v1319 = vmul.f32 %v1258, %v1228
      %v1320 = vmul.f32 %v1258, %v1235
      %v1321 = vmul.f32 %v1258, %v1242
      %v1322 = vmul.f32 %v1258, %v1249
      %v1323 = vmul.f32 %v1258, %v1256
      %v1324 = vadd.f32 %v744, %v1260
      %v1325 = vadd.f32 %v745, %v1261
      %v1326 = vadd.f32 %v746, %v1262
      %v1327 = vadd.f32 %v747, %v1263
      %v1328 = vadd.f32 %v748, %v1264
      %v1329 = vadd.f32 %v749, %v1265
      %v1330 = vadd.f32 %v750, %v1266
      %v1331 = vadd.f32 %v751, %v1267
      %v1332 = vadd.f32 %v752, %v1268
      %v1333 = vadd.f32 %v753, %v1269
      %v1334 = vadd.f32 %v754, %v1270
      %v1335 = vadd.f32 %v755, %v1271
      %v1336 = vadd.f32 %v756, %v1272
      %v1337 = vadd.f32 %v757, %v1273
      %v1338 = vadd.f32 %v758, %v1274
      %v1339 = vadd.f32 %v759, %v1275
      %v1340 = vadd.f32 %v760, %v1276
      %v1341 = vadd.f32 %v761, %v1277
      %v1342 = vadd.f32 %v762, %v1278
      %v1343 = vadd.f32 %v763, %v1279
      %v1344 = vadd.f32 %v764, %v1280
      %v1345 = vadd.f32 %v765, %v1281
      %v1346 = vadd.f32 %v766, %v1282
      %v1347 = vadd.f32 %v767, %v1283
      %v1348 = vadd.f32 %v768, %v1284
      %v1349 = vadd.f32 %v769, %v1285
      %v1350 = vadd.f32 %v770, %v1286
      %v1351 = vadd.f32 %v771, %v1287
      %v1352 = vadd.f32 %v772, %v1288
      %v1353 = vadd.f32 %v773, %v1289
      %v1354 = vadd.f32 %v774, %v1290
      %v1355 = vadd.f32 %v775, %v1291
      %v1356 = vadd.f32 %v776, %v1292
      %v1357 = vadd.f32 %v777, %v1293
      %v1358 = vadd.f32 %v778, %v1294
      %v1359 = vadd.f32 %v779, %v1295
      %v1360 = vadd.f32 %v780, %v1296
      %v1361 = vadd.f32 %v781, %v1297
      %v1362 = vadd.f32 %v782, %v1298
      %v1363 = vadd.f32 %v783, %v1299
      %v1364 = vadd.f32 %v784, %v1300
      %v1365 = vadd.f32 %v785, %v1301
      %v1366 = vadd.f32 %v786, %v1302
      %v1367 = vadd.f32 %v787, %v1303
      %v1368 = vadd.f32 %v788, %v1304
      %v1369 = vadd.f32 %v789, %v1305
      %v1370 = vadd.f32 %v790, %v1306
      %v1371 = vadd.f32 %v791, %v1307
      %v1372 = vadd.f32 %v792, %v1308
      %v1373 = vadd.f32 %v793, %v1309
      %v1374 = vadd.f32 %v794, %v1310
      %v1375 = vadd.f32 %v795, %v1311
      %v1376 = vadd.f32 %v796, %v1312
      %v1377 = vadd.f32 %v797, %v1313
      %v1378 = vadd.f32 %v798, %v1314
      %v1379 = vadd.f32 %v799, %v1315
      %v1380 = vadd.f32 %v800, %v1316
      %v1381 = vadd.f32 %v801, %v1317
      %v1382 = vadd.f32 %v802, %v1318
      %v1383 = vadd.f32 %v803, %v1319
      %v1384 = vadd.f32 %v804, %v1320
      %v1385 = vadd.f32 %v805, %v1321
      %v1386 = vadd.f32 %v806, %v1322
      %v1387 = vadd.f32 %v807, %v1323
      %vm1388 = vcmp.gt.f32.partialorder %v1324, 0.0
      %vm1389 = vcmp.gt.f32.partialorder %v1325, 0.0
      %vm1390 = vcmp.gt.f32.partialorder %v1326, 0.0
      %vm1391 = vcmp.gt.f32.partialorder %v1327, 0.0
      %vm1392 = vcmp.gt.f32.partialorder %v1328, 0.0
      %vm1393 = vcmp.gt.f32.partialorder %v1329, 0.0
      %vm1394 = vcmp.gt.f32.partialorder %v1330, 0.0
      %vm1395 = vcmp.gt.f32.partialorder %v1331, 0.0
      %vm1396 = vcmp.gt.f32.partialorder %v1332, 0.0
      %vm1397 = vcmp.gt.f32.partialorder %v1333, 0.0
      %vm1398 = vcmp.gt.f32.partialorder %v1334, 0.0
      %vm1399 = vcmp.gt.f32.partialorder %v1335, 0.0
      %vm1400 = vcmp.gt.f32.partialorder %v1336, 0.0
      %vm1401 = vcmp.gt.f32.partialorder %v1337, 0.0
      %vm1402 = vcmp.gt.f32.partialorder %v1338, 0.0
      %vm1403 = vcmp.gt.f32.partialorder %v1339, 0.0
      %vm1404 = vcmp.gt.f32.partialorder %v1340, 0.0
      %vm1405 = vcmp.gt.f32.partialorder %v1341, 0.0
      %vm1406 = vcmp.gt.f32.partialorder %v1342, 0.0
      %vm1407 = vcmp.gt.f32.partialorder %v1343, 0.0
      %vm1408 = vcmp.gt.f32.partialorder %v1344, 0.0
      %vm1409 = vcmp.gt.f32.partialorder %v1345, 0.0
      %vm1410 = vcmp.gt.f32.partialorder %v1346, 0.0
      %vm1411 = vcmp.gt.f32.partialorder %v1347, 0.0
      %vm1412 = vcmp.gt.f32.partialorder %v1348, 0.0
      %vm1413 = vcmp.gt.f32.partialorder %v1349, 0.0
      %vm1414 = vcmp.gt.f32.partialorder %v1350, 0.0
      %vm1415 = vcmp.gt.f32.partialorder %v1351, 0.0
      %vm1416 = vcmp.gt.f32.partialorder %v1352, 0.0
      %vm1417 = vcmp.gt.f32.partialorder %v1353, 0.0
      %vm1418 = vcmp.gt.f32.partialorder %v1354, 0.0
      %vm1419 = vcmp.gt.f32.partialorder %v1355, 0.0
      %vm1420 = vcmp.gt.f32.partialorder %v1356, 0.0
      %vm1421 = vcmp.gt.f32.partialorder %v1357, 0.0
      %vm1422 = vcmp.gt.f32.partialorder %v1358, 0.0
      %vm1423 = vcmp.gt.f32.partialorder %v1359, 0.0
      %vm1424 = vcmp.gt.f32.partialorder %v1360, 0.0
      %vm1425 = vcmp.gt.f32.partialorder %v1361, 0.0
      %vm1426 = vcmp.gt.f32.partialorder %v1362, 0.0
      %vm1427 = vcmp.gt.f32.partialorder %v1363, 0.0
      %vm1428 = vcmp.gt.f32.partialorder %v1364, 0.0
      %vm1429 = vcmp.gt.f32.partialorder %v1365, 0.0
      %vm1430 = vcmp.gt.f32.partialorder %v1366, 0.0
      %vm1431 = vcmp.gt.f32.partialorder %v1367, 0.0
      %vm1432 = vcmp.gt.f32.partialorder %v1368, 0.0
      %vm1433 = vcmp.gt.f32.partialorder %v1369, 0.0
      %vm1434 = vcmp.gt.f32.partialorder %v1370, 0.0
      %vm1435 = vcmp.gt.f32.partialorder %v1371, 0.0
      %vm1436 = vcmp.gt.f32.partialorder %v1372, 0.0
      %vm1437 = vcmp.gt.f32.partialorder %v1373, 0.0
      %vm1438 = vcmp.gt.f32.partialorder %v1374, 0.0
      %vm1439 = vcmp.gt.f32.partialorder %v1375, 0.0
      %vm1440 = vcmp.gt.f32.partialorder %v1376, 0.0
      %vm1441 = vcmp.gt.f32.partialorder %v1377, 0.0
      %vm1442 = vcmp.gt.f32.partialorder %v1378, 0.0
      %vm1443 = vcmp.gt.f32.partialorder %v1379, 0.0
      %vm1444 = vcmp.gt.f32.partialorder %v1380, 0.0
      %vm1445 = vcmp.gt.f32.partialorder %v1381, 0.0
      %vm1446 = vcmp.gt.f32.partialorder %v1382, 0.0
      %vm1447 = vcmp.gt.f32.partialorder %v1383, 0.0
      %vm1448 = vcmp.gt.f32.partialorder %v1384, 0.0
      %vm1449 = vcmp.gt.f32.partialorder %v1385, 0.0
      %vm1450 = vcmp.gt.f32.partialorder %v1386, 0.0
      %vm1451 = vcmp.gt.f32.partialorder %v1387, 0.0
      %v1452 = vmul.f32 %v1324, 0.2
      %v1453 = vmul.f32 %v1325, 0.2
      %v1454 = vmul.f32 %v1326, 0.2
      %v1455 = vmul.f32 %v1327, 0.2
      %v1456 = vmul.f32 %v1328, 0.2
      %v1457 = vmul.f32 %v1329, 0.2
      %v1458 = vmul.f32 %v1330, 0.2
      %v1459 = vmul.f32 %v1331, 0.2
      %v1460 = vmul.f32 %v1332, 0.2
      %v1461 = vmul.f32 %v1333, 0.2
      %v1462 = vmul.f32 %v1334, 0.2
      %v1463 = vmul.f32 %v1335, 0.2
      %v1464 = vmul.f32 %v1336, 0.2
      %v1465 = vmul.f32 %v1337, 0.2
      %v1466 = vmul.f32 %v1338, 0.2
      %v1467 = vmul.f32 %v1339, 0.2
      %v1468 = vmul.f32 %v1340, 0.2
      %v1469 = vmul.f32 %v1341, 0.2
      %v1470 = vmul.f32 %v1342, 0.2
      %v1471 = vmul.f32 %v1343, 0.2
      %v1472 = vmul.f32 %v1344, 0.2
      %v1473 = vmul.f32 %v1345, 0.2
      %v1474 = vmul.f32 %v1346, 0.2
      %v1475 = vmul.f32 %v1347, 0.2
      %v1476 = vmul.f32 %v1348, 0.2
      %v1477 = vmul.f32 %v1349, 0.2
      %v1478 = vmul.f32 %v1350, 0.2
      %v1479 = vmul.f32 %v1351, 0.2
      %v1480 = vmul.f32 %v1352, 0.2
      %v1481 = vmul.f32 %v1353, 0.2
      %v1482 = vmul.f32 %v1354, 0.2
      %v1483 = vmul.f32 %v1355, 0.2
      %v1484 = vmul.f32 %v1356, 0.2
      %v1485 = vmul.f32 %v1357, 0.2
      %v1486 = vmul.f32 %v1358, 0.2
      %v1487 = vmul.f32 %v1359, 0.2
      %v1488 = vmul.f32 %v1360, 0.2
      %v1489 = vmul.f32 %v1361, 0.2
      %v1490 = vmul.f32 %v1362, 0.2
      %v1491 = vmul.f32 %v1363, 0.2
      %v1492 = vmul.f32 %v1364, 0.2
      %v1493 = vmul.f32 %v1365, 0.2
      %v1494 = vmul.f32 %v1366, 0.2
      %v1495 = vmul.f32 %v1367, 0.2
      %v1496 = vmul.f32 %v1368, 0.2
      %v1497 = vmul.f32 %v1369, 0.2
      %v1498 = vmul.f32 %v1370, 0.2
      %v1499 = vmul.f32 %v1371, 0.2
      %v1500 = vmul.f32 %v1372, 0.2
      %v1501 = vmul.f32 %v1373, 0.2
      %v1502 = vmul.f32 %v1374, 0.2
      %v1503 = vmul.f32 %v1375, 0.2
      %v1504 = vmul.f32 %v1376, 0.2
      %v1505 = vmul.f32 %v1377, 0.2
      %v1506 = vmul.f32 %v1378, 0.2
      %v1507 = vmul.f32 %v1379, 0.2
      %v1508 = vmul.f32 %v1380, 0.2
      %v1509 = vmul.f32 %v1381, 0.2
      %v1510 = vmul.f32 %v1382, 0.2
      %v1511 = vmul.f32 %v1383, 0.2
      %v1512 = vmul.f32 %v1384, 0.2
      %v1513 = vmul.f32 %v1385, 0.2
      %v1514 = vmul.f32 %v1386, 0.2
      %v1515 = vmul.f32 %v1387, 0.2
      %v1516 = vsel %vm1388, %v1324, %v1452
      %v1517 = vsel %vm1389, %v1325, %v1453
      %v1518 = vsel %vm1390, %v1326, %v1454
      %v1519 = vsel %vm1391, %v1327, %v1455
      %v1520 = vsel %vm1392, %v1328, %v1456
      %v1521 = vsel %vm1393, %v1329, %v1457
      %v1522 = vsel %vm1394, %v1330, %v1458
      %v1523 = vsel %vm1395, %v1331, %v1459
      %v1524 = vsel %vm1396, %v1332, %v1460
      %v1525 = vsel %vm1397, %v1333, %v1461
      %v1526 = vsel %vm1398, %v1334, %v1462
      %v1527 = vsel %vm1399, %v1335, %v1463
      %v1528 = vsel %vm1400, %v1336, %v1464
      %v1529 = vsel %vm1401, %v1337, %v1465
      %v1530 = vsel %vm1402, %v1338, %v1466
      %v1531 = vsel %vm1403, %v1339, %v1467
      %v1532 = vsel %vm1404, %v1340, %v1468
      %v1533 = vsel %vm1405, %v1341, %v1469
      %v1534 = vsel %vm1406, %v1342, %v1470
      %v1535 = vsel %vm1407, %v1343, %v1471
      %v1536 = vsel %vm1408, %v1344, %v1472
      %v1537 = vsel %vm1409, %v1345, %v1473
      %v1538 = vsel %vm1410, %v1346, %v1474
      %v1539 = vsel %vm1411, %v1347, %v1475
      %v1540 = vsel %vm1412, %v1348, %v1476
      %v1541 = vsel %vm1413, %v1349, %v1477
      %v1542 = vsel %vm1414, %v1350, %v1478
      %v1543 = vsel %vm1415, %v1351, %v1479
      %v1544 = vsel %vm1416, %v1352, %v1480
      %v1545 = vsel %vm1417, %v1353, %v1481
      %v1546 = vsel %vm1418, %v1354, %v1482
      %v1547 = vsel %vm1419, %v1355, %v1483
      %v1548 = vsel %vm1420, %v1356, %v1484
      %v1549 = vsel %vm1421, %v1357, %v1485
      %v1550 = vsel %vm1422, %v1358, %v1486
      %v1551 = vsel %vm1423, %v1359, %v1487
      %v1552 = vsel %vm1424, %v1360, %v1488
      %v1553 = vsel %vm1425, %v1361, %v1489
      %v1554 = vsel %vm1426, %v1362, %v1490
      %v1555 = vsel %vm1427, %v1363, %v1491
      %v1556 = vsel %vm1428, %v1364, %v1492
      %v1557 = vsel %vm1429, %v1365, %v1493
      %v1558 = vsel %vm1430, %v1366, %v1494
      %v1559 = vsel %vm1431, %v1367, %v1495
      %v1560 = vsel %vm1432, %v1368, %v1496
      %v1561 = vsel %vm1433, %v1369, %v1497
      %v1562 = vsel %vm1434, %v1370, %v1498
      %v1563 = vsel %vm1435, %v1371, %v1499
      %v1564 = vsel %vm1436, %v1372, %v1500
      %v1565 = vsel %vm1437, %v1373, %v1501
      %v1566 = vsel %vm1438, %v1374, %v1502
      %v1567 = vsel %vm1439, %v1375, %v1503
      %v1568 = vsel %vm1440, %v1376, %v1504
      %v1569 = vsel %vm1441, %v1377, %v1505
      %v1570 = vsel %vm1442, %v1378, %v1506
      %v1571 = vsel %vm1443, %v1379, %v1507
      %v1572 = vsel %vm1444, %v1380, %v1508
      %v1573 = vsel %vm1445, %v1381, %v1509
      %v1574 = vsel %vm1446, %v1382, %v1510
      %v1575 = vsel %vm1447, %v1383, %v1511
      %v1576 = vsel %vm1448, %v1384, %v1512
      %v1577 = vsel %vm1449, %v1385, %v1513
      %v1578 = vsel %vm1450, %v1386, %v1514
      %v1579 = vsel %vm1451, %v1387, %v1515
      %v1580 = vld [vmem:[%s6] sm:$0x1]
      %v1582 = vperm.slane %v1580, 0
      %v1584 = vmul.f32 %v1516, %v1582
      %v1585 = vmul.f32 %v1517, %v1582
      %v1586 = vmul.f32 %v1518, %v1582
      %v1587 = vmul.f32 %v1519, %v1582
      %v1588 = vmul.f32 %v1520, %v1582
      %v1589 = vmul.f32 %v1521, %v1582
      %v1590 = vmul.f32 %v1522, %v1582
      %v1591 = vmul.f32 %v1523, %v1582
      %v1592 = vmul.f32 %v1524, %v1582
      %v1593 = vmul.f32 %v1525, %v1582
      %v1594 = vmul.f32 %v1526, %v1582
      %v1595 = vmul.f32 %v1527, %v1582
      %v1596 = vmul.f32 %v1528, %v1582
      %v1597 = vmul.f32 %v1529, %v1582
      %v1598 = vmul.f32 %v1530, %v1582
      %v1599 = vmul.f32 %v1531, %v1582
      %v1600 = vmul.f32 %v1532, %v1582
      %v1601 = vmul.f32 %v1533, %v1582
      %v1602 = vmul.f32 %v1534, %v1582
      %v1603 = vmul.f32 %v1535, %v1582
      %v1604 = vmul.f32 %v1536, %v1582
      %v1605 = vmul.f32 %v1537, %v1582
      %v1606 = vmul.f32 %v1538, %v1582
      %v1607 = vmul.f32 %v1539, %v1582
      %v1608 = vmul.f32 %v1540, %v1582
      %v1609 = vmul.f32 %v1541, %v1582
      %v1610 = vmul.f32 %v1542, %v1582
      %v1611 = vmul.f32 %v1543, %v1582
      %v1612 = vmul.f32 %v1544, %v1582
      %v1613 = vmul.f32 %v1545, %v1582
      %v1614 = vmul.f32 %v1546, %v1582
      %v1615 = vmul.f32 %v1547, %v1582
      %v1616 = vmul.f32 %v1548, %v1582
      %v1617 = vmul.f32 %v1549, %v1582
      %v1618 = vmul.f32 %v1550, %v1582
      %v1619 = vmul.f32 %v1551, %v1582
      %v1620 = vmul.f32 %v1552, %v1582
      %v1621 = vmul.f32 %v1553, %v1582
      %v1622 = vmul.f32 %v1554, %v1582
      %v1623 = vmul.f32 %v1555, %v1582
      %v1624 = vmul.f32 %v1556, %v1582
      %v1625 = vmul.f32 %v1557, %v1582
      %v1626 = vmul.f32 %v1558, %v1582
      %v1627 = vmul.f32 %v1559, %v1582
      %v1628 = vmul.f32 %v1560, %v1582
      %v1629 = vmul.f32 %v1561, %v1582
      %v1630 = vmul.f32 %v1562, %v1582
      %v1631 = vmul.f32 %v1563, %v1582
      %v1632 = vmul.f32 %v1564, %v1582
      %v1633 = vmul.f32 %v1565, %v1582
      %v1634 = vmul.f32 %v1566, %v1582
      %v1635 = vmul.f32 %v1567, %v1582
      %v1636 = vmul.f32 %v1568, %v1582
      %v1637 = vmul.f32 %v1569, %v1582
      %v1638 = vmul.f32 %v1570, %v1582
      %v1639 = vmul.f32 %v1571, %v1582
      %v1640 = vmul.f32 %v1572, %v1582
      %v1641 = vmul.f32 %v1573, %v1582
      %v1642 = vmul.f32 %v1574, %v1582
      %v1643 = vmul.f32 %v1575, %v1582
      %v1644 = vmul.f32 %v1576, %v1582
      %v1645 = vmul.f32 %v1577, %v1582
      %v1646 = vmul.f32 %v1578, %v1582
      %v1647 = vmul.f32 %v1579, %v1582
      %v1648 = vsel %vm429, %v1584, 0.0
      %1649 = vadd.xlane.f32.xlu0 %v1648
      %v1650 = vpop.xlane.xlu0 %1649
      %v1651 = vsel %vm429, %v1585, 0.0
      %1652 = vadd.xlane.f32.xlu0 %v1651
      %v1653 = vpop.xlane.xlu0 %1652
      %v1654 = vsel %vm429, %v1586, 0.0
      %1655 = vadd.xlane.f32.xlu0 %v1654
      %v1656 = vpop.xlane.xlu0 %1655
      %v1657 = vsel %vm429, %v1587, 0.0
      %1658 = vadd.xlane.f32.xlu0 %v1657
      %v1659 = vpop.xlane.xlu0 %1658
      %v1660 = vsel %vm429, %v1588, 0.0
      %1661 = vadd.xlane.f32.xlu0 %v1660
      %v1662 = vpop.xlane.xlu0 %1661
      %v1663 = vsel %vm429, %v1589, 0.0
      %1664 = vadd.xlane.f32.xlu0 %v1663
      %v1665 = vpop.xlane.xlu0 %1664
      %v1666 = vsel %vm429, %v1590, 0.0
      %1667 = vadd.xlane.f32.xlu0 %v1666
      %v1668 = vpop.xlane.xlu0 %1667
      %v1669 = vsel %vm429, %v1591, 0.0
      %1670 = vadd.xlane.f32.xlu0 %v1669
      %v1671 = vpop.xlane.xlu0 %1670
      %v1672 = vsel %vm429, %v1592, 0.0
      %1673 = vadd.xlane.f32.xlu0 %v1672
      %v1674 = vpop.xlane.xlu0 %1673
      %v1675 = vsel %vm429, %v1593, 0.0
      %1676 = vadd.xlane.f32.xlu0 %v1675
      %v1677 = vpop.xlane.xlu0 %1676
      %v1678 = vsel %vm429, %v1594, 0.0
      %1679 = vadd.xlane.f32.xlu0 %v1678
      %v1680 = vpop.xlane.xlu0 %1679
      %v1681 = vsel %vm429, %v1595, 0.0
      %1682 = vadd.xlane.f32.xlu0 %v1681
      %v1683 = vpop.xlane.xlu0 %1682
      %v1684 = vsel %vm429, %v1596, 0.0
      %1685 = vadd.xlane.f32.xlu0 %v1684
      %v1686 = vpop.xlane.xlu0 %1685
      %v1687 = vsel %vm429, %v1597, 0.0
      %1688 = vadd.xlane.f32.xlu0 %v1687
      %v1689 = vpop.xlane.xlu0 %1688
      %v1690 = vsel %vm429, %v1598, 0.0
      %1691 = vadd.xlane.f32.xlu0 %v1690
      %v1692 = vpop.xlane.xlu0 %1691
      %v1693 = vsel %vm429, %v1599, 0.0
      %1694 = vadd.xlane.f32.xlu0 %v1693
      %v1695 = vpop.xlane.xlu0 %1694
      %v1696 = vsel %vm429, %v1600, 0.0
      %1697 = vadd.xlane.f32.xlu0 %v1696
      %v1698 = vpop.xlane.xlu0 %1697
      %v1699 = vsel %vm429, %v1601, 0.0
      %1700 = vadd.xlane.f32.xlu0 %v1699
      %v1701 = vpop.xlane.xlu0 %1700
      %v1702 = vsel %vm429, %v1602, 0.0
      %1703 = vadd.xlane.f32.xlu0 %v1702
      %v1704 = vpop.xlane.xlu0 %1703
      %v1705 = vsel %vm429, %v1603, 0.0
      %1706 = vadd.xlane.f32.xlu0 %v1705
      %v1707 = vpop.xlane.xlu0 %1706
      %v1708 = vsel %vm429, %v1604, 0.0
      %1709 = vadd.xlane.f32.xlu0 %v1708
      %v1710 = vpop.xlane.xlu0 %1709
      %v1711 = vsel %vm429, %v1605, 0.0
      %1712 = vadd.xlane.f32.xlu0 %v1711
      %v1713 = vpop.xlane.xlu0 %1712
      %v1714 = vsel %vm429, %v1606, 0.0
      %1715 = vadd.xlane.f32.xlu0 %v1714
      %v1716 = vpop.xlane.xlu0 %1715
      %v1717 = vsel %vm429, %v1607, 0.0
      %1718 = vadd.xlane.f32.xlu0 %v1717
      %v1719 = vpop.xlane.xlu0 %1718
      %v1720 = vsel %vm429, %v1608, 0.0
      %1721 = vadd.xlane.f32.xlu0 %v1720
      %v1722 = vpop.xlane.xlu0 %1721
      %v1723 = vsel %vm429, %v1609, 0.0
      %1724 = vadd.xlane.f32.xlu0 %v1723
      %v1725 = vpop.xlane.xlu0 %1724
      %v1726 = vsel %vm429, %v1610, 0.0
      %1727 = vadd.xlane.f32.xlu0 %v1726
      %v1728 = vpop.xlane.xlu0 %1727
      %v1729 = vsel %vm429, %v1611, 0.0
      %1730 = vadd.xlane.f32.xlu0 %v1729
      %v1731 = vpop.xlane.xlu0 %1730
      %v1732 = vsel %vm429, %v1612, 0.0
      %1733 = vadd.xlane.f32.xlu0 %v1732
      %v1734 = vpop.xlane.xlu0 %1733
      %v1735 = vsel %vm429, %v1613, 0.0
      %1736 = vadd.xlane.f32.xlu0 %v1735
      %v1737 = vpop.xlane.xlu0 %1736
      %v1738 = vsel %vm429, %v1614, 0.0
      %1739 = vadd.xlane.f32.xlu0 %v1738
      %v1740 = vpop.xlane.xlu0 %1739
      %v1741 = vsel %vm429, %v1615, 0.0
      %1742 = vadd.xlane.f32.xlu0 %v1741
      %v1743 = vpop.xlane.xlu0 %1742
      %v1744 = vsel %vm429, %v1616, 0.0
      %1745 = vadd.xlane.f32.xlu0 %v1744
      %v1746 = vpop.xlane.xlu0 %1745
      %v1747 = vsel %vm429, %v1617, 0.0
      %1748 = vadd.xlane.f32.xlu0 %v1747
      %v1749 = vpop.xlane.xlu0 %1748
      %v1750 = vsel %vm429, %v1618, 0.0
      %1751 = vadd.xlane.f32.xlu0 %v1750
      %v1752 = vpop.xlane.xlu0 %1751
      %v1753 = vsel %vm429, %v1619, 0.0
      %1754 = vadd.xlane.f32.xlu0 %v1753
      %v1755 = vpop.xlane.xlu0 %1754
      %v1756 = vsel %vm429, %v1620, 0.0
      %1757 = vadd.xlane.f32.xlu0 %v1756
      %v1758 = vpop.xlane.xlu0 %1757
      %v1759 = vsel %vm429, %v1621, 0.0
      %1760 = vadd.xlane.f32.xlu0 %v1759
      %v1761 = vpop.xlane.xlu0 %1760
      %v1762 = vsel %vm429, %v1622, 0.0
      %1763 = vadd.xlane.f32.xlu0 %v1762
      %v1764 = vpop.xlane.xlu0 %1763
      %v1765 = vsel %vm429, %v1623, 0.0
      %1766 = vadd.xlane.f32.xlu0 %v1765
      %v1767 = vpop.xlane.xlu0 %1766
      %v1768 = vsel %vm429, %v1624, 0.0
      %1769 = vadd.xlane.f32.xlu0 %v1768
      %v1770 = vpop.xlane.xlu0 %1769
      %v1771 = vsel %vm429, %v1625, 0.0
      %1772 = vadd.xlane.f32.xlu0 %v1771
      %v1773 = vpop.xlane.xlu0 %1772
      %v1774 = vsel %vm429, %v1626, 0.0
      %1775 = vadd.xlane.f32.xlu0 %v1774
      %v1776 = vpop.xlane.xlu0 %1775
      %v1777 = vsel %vm429, %v1627, 0.0
      %1778 = vadd.xlane.f32.xlu0 %v1777
      %v1779 = vpop.xlane.xlu0 %1778
      %v1780 = vsel %vm429, %v1628, 0.0
      %1781 = vadd.xlane.f32.xlu0 %v1780
      %v1782 = vpop.xlane.xlu0 %1781
      %v1783 = vsel %vm429, %v1629, 0.0
      %1784 = vadd.xlane.f32.xlu0 %v1783
      %v1785 = vpop.xlane.xlu0 %1784
      %v1786 = vsel %vm429, %v1630, 0.0
      %1787 = vadd.xlane.f32.xlu0 %v1786
      %v1788 = vpop.xlane.xlu0 %1787
      %v1789 = vsel %vm429, %v1631, 0.0
      %1790 = vadd.xlane.f32.xlu0 %v1789
      %v1791 = vpop.xlane.xlu0 %1790
      %v1792 = vsel %vm429, %v1632, 0.0
      %1793 = vadd.xlane.f32.xlu0 %v1792
      %v1794 = vpop.xlane.xlu0 %1793
      %v1795 = vsel %vm429, %v1633, 0.0
      %1796 = vadd.xlane.f32.xlu0 %v1795
      %v1797 = vpop.xlane.xlu0 %1796
      %v1798 = vsel %vm429, %v1634, 0.0
      %1799 = vadd.xlane.f32.xlu0 %v1798
      %v1800 = vpop.xlane.xlu0 %1799
      %v1801 = vsel %vm429, %v1635, 0.0
      %1802 = vadd.xlane.f32.xlu0 %v1801
      %v1803 = vpop.xlane.xlu0 %1802
      %v1804 = vsel %vm429, %v1636, 0.0
      %1805 = vadd.xlane.f32.xlu0 %v1804
      %v1806 = vpop.xlane.xlu0 %1805
      %v1807 = vsel %vm429, %v1637, 0.0
      %1808 = vadd.xlane.f32.xlu0 %v1807
      %v1809 = vpop.xlane.xlu0 %1808
      %v1810 = vsel %vm429, %v1638, 0.0
      %1811 = vadd.xlane.f32.xlu0 %v1810
      %v1812 = vpop.xlane.xlu0 %1811
      %v1813 = vsel %vm429, %v1639, 0.0
      %1814 = vadd.xlane.f32.xlu0 %v1813
      %v1815 = vpop.xlane.xlu0 %1814
      %v1816 = vsel %vm429, %v1640, 0.0
      %1817 = vadd.xlane.f32.xlu0 %v1816
      %v1818 = vpop.xlane.xlu0 %1817
      %v1819 = vsel %vm429, %v1641, 0.0
      %1820 = vadd.xlane.f32.xlu0 %v1819
      %v1821 = vpop.xlane.xlu0 %1820
      %v1822 = vsel %vm429, %v1642, 0.0
      %1823 = vadd.xlane.f32.xlu0 %v1822
      %v1824 = vpop.xlane.xlu0 %1823
      %v1825 = vsel %vm429, %v1643, 0.0
      %1826 = vadd.xlane.f32.xlu0 %v1825
      %v1827 = vpop.xlane.xlu0 %1826
      %v1828 = vsel %vm429, %v1644, 0.0
      %1829 = vadd.xlane.f32.xlu0 %v1828
      %v1830 = vpop.xlane.xlu0 %1829
      %v1831 = vsel %vm429, %v1645, 0.0
      %1832 = vadd.xlane.f32.xlu0 %v1831
      %v1833 = vpop.xlane.xlu0 %1832
      %v1834 = vsel %vm429, %v1646, 0.0
      %1835 = vadd.xlane.f32.xlu0 %v1834
      %v1836 = vpop.xlane.xlu0 %1835
      %v1837 = vsel %vm429, %v1647, 0.0
      %1838 = vadd.xlane.f32.xlu0 %v1837
      %v1839 = vpop.xlane.xlu0 %1838
      %1904 = vrot.lane.b32.xlu0 %v1584, 96
      %v1905 = vpop.permute.xlu0 %1904
      %1906 = vrot.lane.b32.xlu0 %v1585, 96
      %v1907 = vpop.permute.xlu0 %1906
      %1908 = vrot.lane.b32.xlu0 %v1586, 96
      %v1909 = vpop.permute.xlu0 %1908
      %1910 = vrot.lane.b32.xlu0 %v1587, 96
      %v1911 = vpop.permute.xlu0 %1910
      %1912 = vrot.lane.b32.xlu0 %v1588, 96
      %v1913 = vpop.permute.xlu0 %1912
      %1914 = vrot.lane.b32.xlu0 %v1589, 96
      %v1915 = vpop.permute.xlu0 %1914
      %1916 = vrot.lane.b32.xlu0 %v1590, 96
      %v1917 = vpop.permute.xlu0 %1916
      %1918 = vrot.lane.b32.xlu0 %v1591, 96
      %v1919 = vpop.permute.xlu0 %1918
      %1920 = vrot.lane.b32.xlu0 %v1592, 96
      %v1921 = vpop.permute.xlu0 %1920
      %1922 = vrot.lane.b32.xlu0 %v1593, 96
      %v1923 = vpop.permute.xlu0 %1922
      %1924 = vrot.lane.b32.xlu0 %v1594, 96
      %v1925 = vpop.permute.xlu0 %1924
      %1926 = vrot.lane.b32.xlu0 %v1595, 96
      %v1927 = vpop.permute.xlu0 %1926
      %1928 = vrot.lane.b32.xlu0 %v1596, 96
      %v1929 = vpop.permute.xlu0 %1928
      %1930 = vrot.lane.b32.xlu0 %v1597, 96
      %v1931 = vpop.permute.xlu0 %1930
      %1932 = vrot.lane.b32.xlu0 %v1598, 96
      %v1933 = vpop.permute.xlu0 %1932
      %1934 = vrot.lane.b32.xlu0 %v1599, 96
      %v1935 = vpop.permute.xlu0 %1934
      %1936 = vrot.lane.b32.xlu0 %v1600, 96
      %v1937 = vpop.permute.xlu0 %1936
      %1938 = vrot.lane.b32.xlu0 %v1601, 96
      %v1939 = vpop.permute.xlu0 %1938
      %1940 = vrot.lane.b32.xlu0 %v1602, 96
      %v1941 = vpop.permute.xlu0 %1940
      %1942 = vrot.lane.b32.xlu0 %v1603, 96
      %v1943 = vpop.permute.xlu0 %1942
      %1944 = vrot.lane.b32.xlu0 %v1604, 96
      %v1945 = vpop.permute.xlu0 %1944
      %1946 = vrot.lane.b32.xlu0 %v1605, 96
      %v1947 = vpop.permute.xlu0 %1946
      %1948 = vrot.lane.b32.xlu0 %v1606, 96
      %v1949 = vpop.permute.xlu0 %1948
      %1950 = vrot.lane.b32.xlu0 %v1607, 96
      %v1951 = vpop.permute.xlu0 %1950
      %1952 = vrot.lane.b32.xlu0 %v1608, 96
      %v1953 = vpop.permute.xlu0 %1952
      %1954 = vrot.lane.b32.xlu0 %v1609, 96
      %v1955 = vpop.permute.xlu0 %1954
      %1956 = vrot.lane.b32.xlu0 %v1610, 96
      %v1957 = vpop.permute.xlu0 %1956
      %1958 = vrot.lane.b32.xlu0 %v1611, 96
      %v1959 = vpop.permute.xlu0 %1958
      %1960 = vrot.lane.b32.xlu0 %v1612, 96
      %v1961 = vpop.permute.xlu0 %1960
      %1962 = vrot.lane.b32.xlu0 %v1613, 96
      %v1963 = vpop.permute.xlu0 %1962
      %1964 = vrot.lane.b32.xlu0 %v1614, 96
      %v1965 = vpop.permute.xlu0 %1964
      %1966 = vrot.lane.b32.xlu0 %v1615, 96
      %v1967 = vpop.permute.xlu0 %1966
      %1968 = vrot.lane.b32.xlu0 %v1616, 96
      %v1969 = vpop.permute.xlu0 %1968
      %1970 = vrot.lane.b32.xlu0 %v1617, 96
      %v1971 = vpop.permute.xlu0 %1970
      %1972 = vrot.lane.b32.xlu0 %v1618, 96
      %v1973 = vpop.permute.xlu0 %1972
      %1974 = vrot.lane.b32.xlu0 %v1619, 96
      %v1975 = vpop.permute.xlu0 %1974
      %1976 = vrot.lane.b32.xlu0 %v1620, 96
      %v1977 = vpop.permute.xlu0 %1976
      %1978 = vrot.lane.b32.xlu0 %v1621, 96
      %v1979 = vpop.permute.xlu0 %1978
      %1980 = vrot.lane.b32.xlu0 %v1622, 96
      %v1981 = vpop.permute.xlu0 %1980
      %1982 = vrot.lane.b32.xlu0 %v1623, 96
      %v1983 = vpop.permute.xlu0 %1982
      %1984 = vrot.lane.b32.xlu0 %v1624, 96
      %v1985 = vpop.permute.xlu0 %1984
      %1986 = vrot.lane.b32.xlu0 %v1625, 96
      %v1987 = vpop.permute.xlu0 %1986
      %1988 = vrot.lane.b32.xlu0 %v1626, 96
      %v1989 = vpop.permute.xlu0 %1988
      %1990 = vrot.lane.b32.xlu0 %v1627, 96
      %v1991 = vpop.permute.xlu0 %1990
      %1992 = vrot.lane.b32.xlu0 %v1628, 96
      %v1993 = vpop.permute.xlu0 %1992
      %1994 = vrot.lane.b32.xlu0 %v1629, 96
      %v1995 = vpop.permute.xlu0 %1994
      %1996 = vrot.lane.b32.xlu0 %v1630, 96
      %v1997 = vpop.permute.xlu0 %1996
      %1998 = vrot.lane.b32.xlu0 %v1631, 96
      %v1999 = vpop.permute.xlu0 %1998
      %2000 = vrot.lane.b32.xlu0 %v1632, 96
      %v2001 = vpop.permute.xlu0 %2000
      %2002 = vrot.lane.b32.xlu0 %v1633, 96
      %v2003 = vpop.permute.xlu0 %2002
      %2004 = vrot.lane.b32.xlu0 %v1634, 96
      %v2005 = vpop.permute.xlu0 %2004
      %2006 = vrot.lane.b32.xlu0 %v1635, 96
      %v2007 = vpop.permute.xlu0 %2006
      %2008 = vrot.lane.b32.xlu0 %v1636, 96
      %v2009 = vpop.permute.xlu0 %2008
      %2010 = vrot.lane.b32.xlu0 %v1637, 96
      %v2011 = vpop.permute.xlu0 %2010
      %2012 = vrot.lane.b32.xlu0 %v1638, 96
      %v2013 = vpop.permute.xlu0 %2012
      %2014 = vrot.lane.b32.xlu0 %v1639, 96
      %v2015 = vpop.permute.xlu0 %2014
      %2016 = vrot.lane.b32.xlu0 %v1640, 96
      %v2017 = vpop.permute.xlu0 %2016
      %2018 = vrot.lane.b32.xlu0 %v1641, 96
      %v2019 = vpop.permute.xlu0 %2018
      %2020 = vrot.lane.b32.xlu0 %v1642, 96
      %v2021 = vpop.permute.xlu0 %2020
      %2022 = vrot.lane.b32.xlu0 %v1643, 96
      %v2023 = vpop.permute.xlu0 %2022
      %2024 = vrot.lane.b32.xlu0 %v1644, 96
      %v2025 = vpop.permute.xlu0 %2024
      %2026 = vrot.lane.b32.xlu0 %v1645, 96
      %v2027 = vpop.permute.xlu0 %2026
      %2028 = vrot.lane.b32.xlu0 %v1646, 96
      %v2029 = vpop.permute.xlu0 %2028
      %2030 = vrot.lane.b32.xlu0 %v1647, 96
      %v2031 = vpop.permute.xlu0 %2030
      %v2096 = vsel %vm429, %v1905, 0.0
      %2097 = vadd.xlane.f32.xlu0 %v2096
      %v2098 = vpop.xlane.xlu0 %2097
      %v2099 = vsel %vm429, %v1907, 0.0
      %2100 = vadd.xlane.f32.xlu0 %v2099
      %v2101 = vpop.xlane.xlu0 %2100
      %v2102 = vsel %vm429, %v1909, 0.0
      %2103 = vadd.xlane.f32.xlu0 %v2102
      %v2104 = vpop.xlane.xlu0 %2103
      %v2105 = vsel %vm429, %v1911, 0.0
      %2106 = vadd.xlane.f32.xlu0 %v2105
      %v2107 = vpop.xlane.xlu0 %2106
      %v2108 = vsel %vm429, %v1913, 0.0
      %2109 = vadd.xlane.f32.xlu0 %v2108
      %v2110 = vpop.xlane.xlu0 %2109
      %v2111 = vsel %vm429, %v1915, 0.0
      %2112 = vadd.xlane.f32.xlu0 %v2111
      %v2113 = vpop.xlane.xlu0 %2112
      %v2114 = vsel %vm429, %v1917, 0.0
      %2115 = vadd.xlane.f32.xlu0 %v2114
      %v2116 = vpop.xlane.xlu0 %2115
      %v2117 = vsel %vm429, %v1919, 0.0
      %2118 = vadd.xlane.f32.xlu0 %v2117
      %v2119 = vpop.xlane.xlu0 %2118
      %v2120 = vsel %vm429, %v1921, 0.0
      %2121 = vadd.xlane.f32.xlu0 %v2120
      %v2122 = vpop.xlane.xlu0 %2121
      %v2123 = vsel %vm429, %v1923, 0.0
      %2124 = vadd.xlane.f32.xlu0 %v2123
      %v2125 = vpop.xlane.xlu0 %2124
      %v2126 = vsel %vm429, %v1925, 0.0
      %2127 = vadd.xlane.f32.xlu0 %v2126
      %v2128 = vpop.xlane.xlu0 %2127
      %v2129 = vsel %vm429, %v1927, 0.0
      %2130 = vadd.xlane.f32.xlu0 %v2129
      %v2131 = vpop.xlane.xlu0 %2130
      %v2132 = vsel %vm429, %v1929, 0.0
      %2133 = vadd.xlane.f32.xlu0 %v2132
      %v2134 = vpop.xlane.xlu0 %2133
      %v2135 = vsel %vm429, %v1931, 0.0
      %2136 = vadd.xlane.f32.xlu0 %v2135
      %v2137 = vpop.xlane.xlu0 %2136
      %v2138 = vsel %vm429, %v1933, 0.0
      %2139 = vadd.xlane.f32.xlu0 %v2138
      %v2140 = vpop.xlane.xlu0 %2139
      %v2141 = vsel %vm429, %v1935, 0.0
      %2142 = vadd.xlane.f32.xlu0 %v2141
      %v2143 = vpop.xlane.xlu0 %2142
      %v2144 = vsel %vm429, %v1937, 0.0
      %2145 = vadd.xlane.f32.xlu0 %v2144
      %v2146 = vpop.xlane.xlu0 %2145
      %v2147 = vsel %vm429, %v1939, 0.0
      %2148 = vadd.xlane.f32.xlu0 %v2147
      %v2149 = vpop.xlane.xlu0 %2148
      %v2150 = vsel %vm429, %v1941, 0.0
      %2151 = vadd.xlane.f32.xlu0 %v2150
      %v2152 = vpop.xlane.xlu0 %2151
      %v2153 = vsel %vm429, %v1943, 0.0
      %2154 = vadd.xlane.f32.xlu0 %v2153
      %v2155 = vpop.xlane.xlu0 %2154
      %v2156 = vsel %vm429, %v1945, 0.0
      %2157 = vadd.xlane.f32.xlu0 %v2156
      %v2158 = vpop.xlane.xlu0 %2157
      %v2159 = vsel %vm429, %v1947, 0.0
      %2160 = vadd.xlane.f32.xlu0 %v2159
      %v2161 = vpop.xlane.xlu0 %2160
      %v2162 = vsel %vm429, %v1949, 0.0
      %2163 = vadd.xlane.f32.xlu0 %v2162
      %v2164 = vpop.xlane.xlu0 %2163
      %v2165 = vsel %vm429, %v1951, 0.0
      %2166 = vadd.xlane.f32.xlu0 %v2165
      %v2167 = vpop.xlane.xlu0 %2166
      %v2168 = vsel %vm429, %v1953, 0.0
      %2169 = vadd.xlane.f32.xlu0 %v2168
      %v2170 = vpop.xlane.xlu0 %2169
      %v2171 = vsel %vm429, %v1955, 0.0
      %2172 = vadd.xlane.f32.xlu0 %v2171
      %v2173 = vpop.xlane.xlu0 %2172
      %v2174 = vsel %vm429, %v1957, 0.0
      %2175 = vadd.xlane.f32.xlu0 %v2174
      %v2176 = vpop.xlane.xlu0 %2175
      %v2177 = vsel %vm429, %v1959, 0.0
      %2178 = vadd.xlane.f32.xlu0 %v2177
      %v2179 = vpop.xlane.xlu0 %2178
      %v2180 = vsel %vm429, %v1961, 0.0
      %2181 = vadd.xlane.f32.xlu0 %v2180
      %v2182 = vpop.xlane.xlu0 %2181
      %v2183 = vsel %vm429, %v1963, 0.0
      %2184 = vadd.xlane.f32.xlu0 %v2183
      %v2185 = vpop.xlane.xlu0 %2184
      %v2186 = vsel %vm429, %v1965, 0.0
      %2187 = vadd.xlane.f32.xlu0 %v2186
      %v2188 = vpop.xlane.xlu0 %2187
      %v2189 = vsel %vm429, %v1967, 0.0
      %2190 = vadd.xlane.f32.xlu0 %v2189
      %v2191 = vpop.xlane.xlu0 %2190
      %v2192 = vsel %vm429, %v1969, 0.0
      %2193 = vadd.xlane.f32.xlu0 %v2192
      %v2194 = vpop.xlane.xlu0 %2193
      %v2195 = vsel %vm429, %v1971, 0.0
      %2196 = vadd.xlane.f32.xlu0 %v2195
      %v2197 = vpop.xlane.xlu0 %2196
      %v2198 = vsel %vm429, %v1973, 0.0
      %2199 = vadd.xlane.f32.xlu0 %v2198
      %v2200 = vpop.xlane.xlu0 %2199
      %v2201 = vsel %vm429, %v1975, 0.0
      %2202 = vadd.xlane.f32.xlu0 %v2201
      %v2203 = vpop.xlane.xlu0 %2202
      %v2204 = vsel %vm429, %v1977, 0.0
      %2205 = vadd.xlane.f32.xlu0 %v2204
      %v2206 = vpop.xlane.xlu0 %2205
      %v2207 = vsel %vm429, %v1979, 0.0
      %2208 = vadd.xlane.f32.xlu0 %v2207
      %v2209 = vpop.xlane.xlu0 %2208
      %v2210 = vsel %vm429, %v1981, 0.0
      %2211 = vadd.xlane.f32.xlu0 %v2210
      %v2212 = vpop.xlane.xlu0 %2211
      %v2213 = vsel %vm429, %v1983, 0.0
      %2214 = vadd.xlane.f32.xlu0 %v2213
      %v2215 = vpop.xlane.xlu0 %2214
      %v2216 = vsel %vm429, %v1985, 0.0
      %2217 = vadd.xlane.f32.xlu0 %v2216
      %v2218 = vpop.xlane.xlu0 %2217
      %v2219 = vsel %vm429, %v1987, 0.0
      %2220 = vadd.xlane.f32.xlu0 %v2219
      %v2221 = vpop.xlane.xlu0 %2220
      %v2222 = vsel %vm429, %v1989, 0.0
      %2223 = vadd.xlane.f32.xlu0 %v2222
      %v2224 = vpop.xlane.xlu0 %2223
      %v2225 = vsel %vm429, %v1991, 0.0
      %2226 = vadd.xlane.f32.xlu0 %v2225
      %v2227 = vpop.xlane.xlu0 %2226
      %v2228 = vsel %vm429, %v1993, 0.0
      %2229 = vadd.xlane.f32.xlu0 %v2228
      %v2230 = vpop.xlane.xlu0 %2229
      %v2231 = vsel %vm429, %v1995, 0.0
      %2232 = vadd.xlane.f32.xlu0 %v2231
      %v2233 = vpop.xlane.xlu0 %2232
      %v2234 = vsel %vm429, %v1997, 0.0
      %2235 = vadd.xlane.f32.xlu0 %v2234
      %v2236 = vpop.xlane.xlu0 %2235
      %v2237 = vsel %vm429, %v1999, 0.0
      %2238 = vadd.xlane.f32.xlu0 %v2237
      %v2239 = vpop.xlane.xlu0 %2238
      %v2240 = vsel %vm429, %v2001, 0.0
      %2241 = vadd.xlane.f32.xlu0 %v2240
      %v2242 = vpop.xlane.xlu0 %2241
      %v2243 = vsel %vm429, %v2003, 0.0
      %2244 = vadd.xlane.f32.xlu0 %v2243
      %v2245 = vpop.xlane.xlu0 %2244
      %v2246 = vsel %vm429, %v2005, 0.0
      %2247 = vadd.xlane.f32.xlu0 %v2246
      %v2248 = vpop.xlane.xlu0 %2247
      %v2249 = vsel %vm429, %v2007, 0.0
      %2250 = vadd.xlane.f32.xlu0 %v2249
      %v2251 = vpop.xlane.xlu0 %2250
      %v2252 = vsel %vm429, %v2009, 0.0
      %2253 = vadd.xlane.f32.xlu0 %v2252
      %v2254 = vpop.xlane.xlu0 %2253
      %v2255 = vsel %vm429, %v2011, 0.0
      %2256 = vadd.xlane.f32.xlu0 %v2255
      %v2257 = vpop.xlane.xlu0 %2256
      %v2258 = vsel %vm429, %v2013, 0.0
      %2259 = vadd.xlane.f32.xlu0 %v2258
      %v2260 = vpop.xlane.xlu0 %2259
      %v2261 = vsel %vm429, %v2015, 0.0
      %2262 = vadd.xlane.f32.xlu0 %v2261
      %v2263 = vpop.xlane.xlu0 %2262
      %v2264 = vsel %vm429, %v2017, 0.0
      %2265 = vadd.xlane.f32.xlu0 %v2264
      %v2266 = vpop.xlane.xlu0 %2265
      %v2267 = vsel %vm429, %v2019, 0.0
      %2268 = vadd.xlane.f32.xlu0 %v2267
      %v2269 = vpop.xlane.xlu0 %2268
      %v2270 = vsel %vm429, %v2021, 0.0
      %2271 = vadd.xlane.f32.xlu0 %v2270
      %v2272 = vpop.xlane.xlu0 %2271
      %v2273 = vsel %vm429, %v2023, 0.0
      %2274 = vadd.xlane.f32.xlu0 %v2273
      %v2275 = vpop.xlane.xlu0 %2274
      %v2276 = vsel %vm429, %v2025, 0.0
      %2277 = vadd.xlane.f32.xlu0 %v2276
      %v2278 = vpop.xlane.xlu0 %2277
      %v2279 = vsel %vm429, %v2027, 0.0
      %2280 = vadd.xlane.f32.xlu0 %v2279
      %v2281 = vpop.xlane.xlu0 %2280
      %v2282 = vsel %vm429, %v2029, 0.0
      %2283 = vadd.xlane.f32.xlu0 %v2282
      %v2284 = vpop.xlane.xlu0 %2283
      %v2285 = vsel %vm429, %v2031, 0.0
      %2286 = vadd.xlane.f32.xlu0 %v2285
      %v2287 = vpop.xlane.xlu0 %2286
      %2288 = vrot.lane.b32.xlu0 %v1584, 64
      %v2289 = vpop.permute.xlu0 %2288
      %2290 = vrot.lane.b32.xlu0 %v1585, 64
      %v2291 = vpop.permute.xlu0 %2290
      %2292 = vrot.lane.b32.xlu0 %v1586, 64
      %v2293 = vpop.permute.xlu0 %2292
      %2294 = vrot.lane.b32.xlu0 %v1587, 64
      %v2295 = vpop.permute.xlu0 %2294
      %2296 = vrot.lane.b32.xlu0 %v1588, 64
      %v2297 = vpop.permute.xlu0 %2296
      %2298 = vrot.lane.b32.xlu0 %v1589, 64
      %v2299 = vpop.permute.xlu0 %2298
      %2300 = vrot.lane.b32.xlu0 %v1590, 64
      %v2301 = vpop.permute.xlu0 %2300
      %2302 = vrot.lane.b32.xlu0 %v1591, 64
      %v2303 = vpop.permute.xlu0 %2302
      %2304 = vrot.lane.b32.xlu0 %v1592, 64
      %v2305 = vpop.permute.xlu0 %2304
      %2306 = vrot.lane.b32.xlu0 %v1593, 64
      %v2307 = vpop.permute.xlu0 %2306
      %2308 = vrot.lane.b32.xlu0 %v1594, 64
      %v2309 = vpop.permute.xlu0 %2308
      %2310 = vrot.lane.b32.xlu0 %v1595, 64
      %v2311 = vpop.permute.xlu0 %2310
      %2312 = vrot.lane.b32.xlu0 %v1596, 64
      %v2313 = vpop.permute.xlu0 %2312
      %2314 = vrot.lane.b32.xlu0 %v1597, 64
      %v2315 = vpop.permute.xlu0 %2314
      %2316 = vrot.lane.b32.xlu0 %v1598, 64
      %v2317 = vpop.permute.xlu0 %2316
      %2318 = vrot.lane.b32.xlu0 %v1599, 64
      %v2319 = vpop.permute.xlu0 %2318
      %2320 = vrot.lane.b32.xlu0 %v1600, 64
      %v2321 = vpop.permute.xlu0 %2320
      %2322 = vrot.lane.b32.xlu0 %v1601, 64
      %v2323 = vpop.permute.xlu0 %2322
      %2324 = vrot.lane.b32.xlu0 %v1602, 64
      %v2325 = vpop.permute.xlu0 %2324
      %2326 = vrot.lane.b32.xlu0 %v1603, 64
      %v2327 = vpop.permute.xlu0 %2326
      %2328 = vrot.lane.b32.xlu0 %v1604, 64
      %v2329 = vpop.permute.xlu0 %2328
      %2330 = vrot.lane.b32.xlu0 %v1605, 64
      %v2331 = vpop.permute.xlu0 %2330
      %2332 = vrot.lane.b32.xlu0 %v1606, 64
      %v2333 = vpop.permute.xlu0 %2332
      %2334 = vrot.lane.b32.xlu0 %v1607, 64
      %v2335 = vpop.permute.xlu0 %2334
      %2336 = vrot.lane.b32.xlu0 %v1608, 64
      %v2337 = vpop.permute.xlu0 %2336
      %2338 = vrot.lane.b32.xlu0 %v1609, 64
      %v2339 = vpop.permute.xlu0 %2338
      %2340 = vrot.lane.b32.xlu0 %v1610, 64
      %v2341 = vpop.permute.xlu0 %2340
      %2342 = vrot.lane.b32.xlu0 %v1611, 64
      %v2343 = vpop.permute.xlu0 %2342
      %2344 = vrot.lane.b32.xlu0 %v1612, 64
      %v2345 = vpop.permute.xlu0 %2344
      %2346 = vrot.lane.b32.xlu0 %v1613, 64
      %v2347 = vpop.permute.xlu0 %2346
      %2348 = vrot.lane.b32.xlu0 %v1614, 64
      %v2349 = vpop.permute.xlu0 %2348
      %2350 = vrot.lane.b32.xlu0 %v1615, 64
      %v2351 = vpop.permute.xlu0 %2350
      %2352 = vrot.lane.b32.xlu0 %v1616, 64
      %v2353 = vpop.permute.xlu0 %2352
      %2354 = vrot.lane.b32.xlu0 %v1617, 64
      %v2355 = vpop.permute.xlu0 %2354
      %2356 = vrot.lane.b32.xlu0 %v1618, 64
      %v2357 = vpop.permute.xlu0 %2356
      %2358 = vrot.lane.b32.xlu0 %v1619, 64
      %v2359 = vpop.permute.xlu0 %2358
      %2360 = vrot.lane.b32.xlu0 %v1620, 64
      %v2361 = vpop.permute.xlu0 %2360
      %2362 = vrot.lane.b32.xlu0 %v1621, 64
      %v2363 = vpop.permute.xlu0 %2362
      %2364 = vrot.lane.b32.xlu0 %v1622, 64
      %v2365 = vpop.permute.xlu0 %2364
      %2366 = vrot.lane.b32.xlu0 %v1623, 64
      %v2367 = vpop.permute.xlu0 %2366
      %2368 = vrot.lane.b32.xlu0 %v1624, 64
      %v2369 = vpop.permute.xlu0 %2368
      %2370 = vrot.lane.b32.xlu0 %v1625, 64
      %v2371 = vpop.permute.xlu0 %2370
      %2372 = vrot.lane.b32.xlu0 %v1626, 64
      %v2373 = vpop.permute.xlu0 %2372
      %2374 = vrot.lane.b32.xlu0 %v1627, 64
      %v2375 = vpop.permute.xlu0 %2374
      %2376 = vrot.lane.b32.xlu0 %v1628, 64
      %v2377 = vpop.permute.xlu0 %2376
      %2378 = vrot.lane.b32.xlu0 %v1629, 64
      %v2379 = vpop.permute.xlu0 %2378
      %2380 = vrot.lane.b32.xlu0 %v1630, 64
      %v2381 = vpop.permute.xlu0 %2380
      %2382 = vrot.lane.b32.xlu0 %v1631, 64
      %v2383 = vpop.permute.xlu0 %2382
      %2384 = vrot.lane.b32.xlu0 %v1632, 64
      %v2385 = vpop.permute.xlu0 %2384
      %2386 = vrot.lane.b32.xlu0 %v1633, 64
      %v2387 = vpop.permute.xlu0 %2386
      %2388 = vrot.lane.b32.xlu0 %v1634, 64
      %v2389 = vpop.permute.xlu0 %2388
      %2390 = vrot.lane.b32.xlu0 %v1635, 64
      %v2391 = vpop.permute.xlu0 %2390
      %2392 = vrot.lane.b32.xlu0 %v1636, 64
      %v2393 = vpop.permute.xlu0 %2392
      %2394 = vrot.lane.b32.xlu0 %v1637, 64
      %v2395 = vpop.permute.xlu0 %2394
      %2396 = vrot.lane.b32.xlu0 %v1638, 64
      %v2397 = vpop.permute.xlu0 %2396
      %2398 = vrot.lane.b32.xlu0 %v1639, 64
      %v2399 = vpop.permute.xlu0 %2398
      %2400 = vrot.lane.b32.xlu0 %v1640, 64
      %v2401 = vpop.permute.xlu0 %2400
      %2402 = vrot.lane.b32.xlu0 %v1641, 64
      %v2403 = vpop.permute.xlu0 %2402
      %2404 = vrot.lane.b32.xlu0 %v1642, 64
      %v2405 = vpop.permute.xlu0 %2404
      %2406 = vrot.lane.b32.xlu0 %v1643, 64
      %v2407 = vpop.permute.xlu0 %2406
      %2408 = vrot.lane.b32.xlu0 %v1644, 64
      %v2409 = vpop.permute.xlu0 %2408
      %2410 = vrot.lane.b32.xlu0 %v1645, 64
      %v2411 = vpop.permute.xlu0 %2410
      %2412 = vrot.lane.b32.xlu0 %v1646, 64
      %v2413 = vpop.permute.xlu0 %2412
      %2414 = vrot.lane.b32.xlu0 %v1647, 64
      %v2415 = vpop.permute.xlu0 %2414
      %v2480 = vsel %vm429, %v2289, 0.0
      %2481 = vadd.xlane.f32.xlu0 %v2480
      %v2482 = vpop.xlane.xlu0 %2481
      %v2483 = vsel %vm429, %v2291, 0.0
      %2484 = vadd.xlane.f32.xlu0 %v2483
      %v2485 = vpop.xlane.xlu0 %2484
      %v2486 = vsel %vm429, %v2293, 0.0
      %2487 = vadd.xlane.f32.xlu0 %v2486
      %v2488 = vpop.xlane.xlu0 %2487
      %v2489 = vsel %vm429, %v2295, 0.0
      %2490 = vadd.xlane.f32.xlu0 %v2489
      %v2491 = vpop.xlane.xlu0 %2490
      %v2492 = vsel %vm429, %v2297, 0.0
      %2493 = vadd.xlane.f32.xlu0 %v2492
      %v2494 = vpop.xlane.xlu0 %2493
      %v2495 = vsel %vm429, %v2299, 0.0
      %2496 = vadd.xlane.f32.xlu0 %v2495
      %v2497 = vpop.xlane.xlu0 %2496
      %v2498 = vsel %vm429, %v2301, 0.0
      %2499 = vadd.xlane.f32.xlu0 %v2498
      %v2500 = vpop.xlane.xlu0 %2499
      %v2501 = vsel %vm429, %v2303, 0.0
      %2502 = vadd.xlane.f32.xlu0 %v2501
      %v2503 = vpop.xlane.xlu0 %2502
      %v2504 = vsel %vm429, %v2305, 0.0
      %2505 = vadd.xlane.f32.xlu0 %v2504
      %v2506 = vpop.xlane.xlu0 %2505
      %v2507 = vsel %vm429, %v2307, 0.0
      %2508 = vadd.xlane.f32.xlu0 %v2507
      %v2509 = vpop.xlane.xlu0 %2508
      %v2510 = vsel %vm429, %v2309, 0.0
      %2511 = vadd.xlane.f32.xlu0 %v2510
      %v2512 = vpop.xlane.xlu0 %2511
      %v2513 = vsel %vm429, %v2311, 0.0
      %2514 = vadd.xlane.f32.xlu0 %v2513
      %v2515 = vpop.xlane.xlu0 %2514
      %v2516 = vsel %vm429, %v2313, 0.0
      %2517 = vadd.xlane.f32.xlu0 %v2516
      %v2518 = vpop.xlane.xlu0 %2517
      %v2519 = vsel %vm429, %v2315, 0.0
      %2520 = vadd.xlane.f32.xlu0 %v2519
      %v2521 = vpop.xlane.xlu0 %2520
      %v2522 = vsel %vm429, %v2317, 0.0
      %2523 = vadd.xlane.f32.xlu0 %v2522
      %v2524 = vpop.xlane.xlu0 %2523
      %v2525 = vsel %vm429, %v2319, 0.0
      %2526 = vadd.xlane.f32.xlu0 %v2525
      %v2527 = vpop.xlane.xlu0 %2526
      %v2528 = vsel %vm429, %v2321, 0.0
      %2529 = vadd.xlane.f32.xlu0 %v2528
      %v2530 = vpop.xlane.xlu0 %2529
      %v2531 = vsel %vm429, %v2323, 0.0
      %2532 = vadd.xlane.f32.xlu0 %v2531
      %v2533 = vpop.xlane.xlu0 %2532
      %v2534 = vsel %vm429, %v2325, 0.0
      %2535 = vadd.xlane.f32.xlu0 %v2534
      %v2536 = vpop.xlane.xlu0 %2535
      %v2537 = vsel %vm429, %v2327, 0.0
      %2538 = vadd.xlane.f32.xlu0 %v2537
      %v2539 = vpop.xlane.xlu0 %2538
      %v2540 = vsel %vm429, %v2329, 0.0
      %2541 = vadd.xlane.f32.xlu0 %v2540
      %v2542 = vpop.xlane.xlu0 %2541
      %v2543 = vsel %vm429, %v2331, 0.0
      %2544 = vadd.xlane.f32.xlu0 %v2543
      %v2545 = vpop.xlane.xlu0 %2544
      %v2546 = vsel %vm429, %v2333, 0.0
      %2547 = vadd.xlane.f32.xlu0 %v2546
      %v2548 = vpop.xlane.xlu0 %2547
      %v2549 = vsel %vm429, %v2335, 0.0
      %2550 = vadd.xlane.f32.xlu0 %v2549
      %v2551 = vpop.xlane.xlu0 %2550
      %v2552 = vsel %vm429, %v2337, 0.0
      %2553 = vadd.xlane.f32.xlu0 %v2552
      %v2554 = vpop.xlane.xlu0 %2553
      %v2555 = vsel %vm429, %v2339, 0.0
      %2556 = vadd.xlane.f32.xlu0 %v2555
      %v2557 = vpop.xlane.xlu0 %2556
      %v2558 = vsel %vm429, %v2341, 0.0
      %2559 = vadd.xlane.f32.xlu0 %v2558
      %v2560 = vpop.xlane.xlu0 %2559
      %v2561 = vsel %vm429, %v2343, 0.0
      %2562 = vadd.xlane.f32.xlu0 %v2561
      %v2563 = vpop.xlane.xlu0 %2562
      %v2564 = vsel %vm429, %v2345, 0.0
      %2565 = vadd.xlane.f32.xlu0 %v2564
      %v2566 = vpop.xlane.xlu0 %2565
      %v2567 = vsel %vm429, %v2347, 0.0
      %2568 = vadd.xlane.f32.xlu0 %v2567
      %v2569 = vpop.xlane.xlu0 %2568
      %v2570 = vsel %vm429, %v2349, 0.0
      %2571 = vadd.xlane.f32.xlu0 %v2570
      %v2572 = vpop.xlane.xlu0 %2571
      %v2573 = vsel %vm429, %v2351, 0.0
      %2574 = vadd.xlane.f32.xlu0 %v2573
      %v2575 = vpop.xlane.xlu0 %2574
      %v2576 = vsel %vm429, %v2353, 0.0
      %2577 = vadd.xlane.f32.xlu0 %v2576
      %v2578 = vpop.xlane.xlu0 %2577
      %v2579 = vsel %vm429, %v2355, 0.0
      %2580 = vadd.xlane.f32.xlu0 %v2579
      %v2581 = vpop.xlane.xlu0 %2580
      %v2582 = vsel %vm429, %v2357, 0.0
      %2583 = vadd.xlane.f32.xlu0 %v2582
      %v2584 = vpop.xlane.xlu0 %2583
      %v2585 = vsel %vm429, %v2359, 0.0
      %2586 = vadd.xlane.f32.xlu0 %v2585
      %v2587 = vpop.xlane.xlu0 %2586
      %v2588 = vsel %vm429, %v2361, 0.0
      %2589 = vadd.xlane.f32.xlu0 %v2588
      %v2590 = vpop.xlane.xlu0 %2589
      %v2591 = vsel %vm429, %v2363, 0.0
      %2592 = vadd.xlane.f32.xlu0 %v2591
      %v2593 = vpop.xlane.xlu0 %2592
      %v2594 = vsel %vm429, %v2365, 0.0
      %2595 = vadd.xlane.f32.xlu0 %v2594
      %v2596 = vpop.xlane.xlu0 %2595
      %v2597 = vsel %vm429, %v2367, 0.0
      %2598 = vadd.xlane.f32.xlu0 %v2597
      %v2599 = vpop.xlane.xlu0 %2598
      %v2600 = vsel %vm429, %v2369, 0.0
      %2601 = vadd.xlane.f32.xlu0 %v2600
      %v2602 = vpop.xlane.xlu0 %2601
      %v2603 = vsel %vm429, %v2371, 0.0
      %2604 = vadd.xlane.f32.xlu0 %v2603
      %v2605 = vpop.xlane.xlu0 %2604
      %v2606 = vsel %vm429, %v2373, 0.0
      %2607 = vadd.xlane.f32.xlu0 %v2606
      %v2608 = vpop.xlane.xlu0 %2607
      %v2609 = vsel %vm429, %v2375, 0.0
      %2610 = vadd.xlane.f32.xlu0 %v2609
      %v2611 = vpop.xlane.xlu0 %2610
      %v2612 = vsel %vm429, %v2377, 0.0
      %2613 = vadd.xlane.f32.xlu0 %v2612
      %v2614 = vpop.xlane.xlu0 %2613
      %v2615 = vsel %vm429, %v2379, 0.0
      %2616 = vadd.xlane.f32.xlu0 %v2615
      %v2617 = vpop.xlane.xlu0 %2616
      %v2618 = vsel %vm429, %v2381, 0.0
      %2619 = vadd.xlane.f32.xlu0 %v2618
      %v2620 = vpop.xlane.xlu0 %2619
      %v2621 = vsel %vm429, %v2383, 0.0
      %2622 = vadd.xlane.f32.xlu0 %v2621
      %v2623 = vpop.xlane.xlu0 %2622
      %v2624 = vsel %vm429, %v2385, 0.0
      %2625 = vadd.xlane.f32.xlu0 %v2624
      %v2626 = vpop.xlane.xlu0 %2625
      %v2627 = vsel %vm429, %v2387, 0.0
      %2628 = vadd.xlane.f32.xlu0 %v2627
      %v2629 = vpop.xlane.xlu0 %2628
      %v2630 = vsel %vm429, %v2389, 0.0
      %2631 = vadd.xlane.f32.xlu0 %v2630
      %v2632 = vpop.xlane.xlu0 %2631
      %v2633 = vsel %vm429, %v2391, 0.0
      %2634 = vadd.xlane.f32.xlu0 %v2633
      %v2635 = vpop.xlane.xlu0 %2634
      %v2636 = vsel %vm429, %v2393, 0.0
      %2637 = vadd.xlane.f32.xlu0 %v2636
      %v2638 = vpop.xlane.xlu0 %2637
      %v2639 = vsel %vm429, %v2395, 0.0
      %2640 = vadd.xlane.f32.xlu0 %v2639
      %v2641 = vpop.xlane.xlu0 %2640
      %v2642 = vsel %vm429, %v2397, 0.0
      %2643 = vadd.xlane.f32.xlu0 %v2642
      %v2644 = vpop.xlane.xlu0 %2643
      %v2645 = vsel %vm429, %v2399, 0.0
      %2646 = vadd.xlane.f32.xlu0 %v2645
      %v2647 = vpop.xlane.xlu0 %2646
      %v2648 = vsel %vm429, %v2401, 0.0
      %2649 = vadd.xlane.f32.xlu0 %v2648
      %v2650 = vpop.xlane.xlu0 %2649
      %v2651 = vsel %vm429, %v2403, 0.0
      %2652 = vadd.xlane.f32.xlu0 %v2651
      %v2653 = vpop.xlane.xlu0 %2652
      %v2654 = vsel %vm429, %v2405, 0.0
      %2655 = vadd.xlane.f32.xlu0 %v2654
      %v2656 = vpop.xlane.xlu0 %2655
      %v2657 = vsel %vm429, %v2407, 0.0
      %2658 = vadd.xlane.f32.xlu0 %v2657
      %v2659 = vpop.xlane.xlu0 %2658
      %v2660 = vsel %vm429, %v2409, 0.0
      %2661 = vadd.xlane.f32.xlu0 %v2660
      %v2662 = vpop.xlane.xlu0 %2661
      %v2663 = vsel %vm429, %v2411, 0.0
      %2664 = vadd.xlane.f32.xlu0 %v2663
      %v2665 = vpop.xlane.xlu0 %2664
      %v2666 = vsel %vm429, %v2413, 0.0
      %2667 = vadd.xlane.f32.xlu0 %v2666
      %v2668 = vpop.xlane.xlu0 %2667
      %v2669 = vsel %vm429, %v2415, 0.0
      %2670 = vadd.xlane.f32.xlu0 %v2669
      %v2671 = vpop.xlane.xlu0 %2670
      %2672 = vrot.lane.b32.xlu0 %v1584, 32
      %v2673 = vpop.permute.xlu0 %2672
      %2674 = vrot.lane.b32.xlu0 %v1585, 32
      %v2675 = vpop.permute.xlu0 %2674
      %2676 = vrot.lane.b32.xlu0 %v1586, 32
      %v2677 = vpop.permute.xlu0 %2676
      %2678 = vrot.lane.b32.xlu0 %v1587, 32
      %v2679 = vpop.permute.xlu0 %2678
      %2680 = vrot.lane.b32.xlu0 %v1588, 32
      %v2681 = vpop.permute.xlu0 %2680
      %2682 = vrot.lane.b32.xlu0 %v1589, 32
      %v2683 = vpop.permute.xlu0 %2682
      %2684 = vrot.lane.b32.xlu0 %v1590, 32
      %v2685 = vpop.permute.xlu0 %2684
      %2686 = vrot.lane.b32.xlu0 %v1591, 32
      %v2687 = vpop.permute.xlu0 %2686
      %2688 = vrot.lane.b32.xlu0 %v1592, 32
      %v2689 = vpop.permute.xlu0 %2688
      %2690 = vrot.lane.b32.xlu0 %v1593, 32
      %v2691 = vpop.permute.xlu0 %2690
      %2692 = vrot.lane.b32.xlu0 %v1594, 32
      %v2693 = vpop.permute.xlu0 %2692
      %2694 = vrot.lane.b32.xlu0 %v1595, 32
      %v2695 = vpop.permute.xlu0 %2694
      %2696 = vrot.lane.b32.xlu0 %v1596, 32
      %v2697 = vpop.permute.xlu0 %2696
      %2698 = vrot.lane.b32.xlu0 %v1597, 32
      %v2699 = vpop.permute.xlu0 %2698
      %2700 = vrot.lane.b32.xlu0 %v1598, 32
      %v2701 = vpop.permute.xlu0 %2700
      %2702 = vrot.lane.b32.xlu0 %v1599, 32
      %v2703 = vpop.permute.xlu0 %2702
      %2704 = vrot.lane.b32.xlu0 %v1600, 32
      %v2705 = vpop.permute.xlu0 %2704
      %2706 = vrot.lane.b32.xlu0 %v1601, 32
      %v2707 = vpop.permute.xlu0 %2706
      %2708 = vrot.lane.b32.xlu0 %v1602, 32
      %v2709 = vpop.permute.xlu0 %2708
      %2710 = vrot.lane.b32.xlu0 %v1603, 32
      %v2711 = vpop.permute.xlu0 %2710
      %2712 = vrot.lane.b32.xlu0 %v1604, 32
      %v2713 = vpop.permute.xlu0 %2712
      %2714 = vrot.lane.b32.xlu0 %v1605, 32
      %v2715 = vpop.permute.xlu0 %2714
      %2716 = vrot.lane.b32.xlu0 %v1606, 32
      %v2717 = vpop.permute.xlu0 %2716
      %2718 = vrot.lane.b32.xlu0 %v1607, 32
      %v2719 = vpop.permute.xlu0 %2718
      %2720 = vrot.lane.b32.xlu0 %v1608, 32
      %v2721 = vpop.permute.xlu0 %2720
      %2722 = vrot.lane.b32.xlu0 %v1609, 32
      %v2723 = vpop.permute.xlu0 %2722
      %2724 = vrot.lane.b32.xlu0 %v1610, 32
      %v2725 = vpop.permute.xlu0 %2724
      %2726 = vrot.lane.b32.xlu0 %v1611, 32
      %v2727 = vpop.permute.xlu0 %2726
      %2728 = vrot.lane.b32.xlu0 %v1612, 32
      %v2729 = vpop.permute.xlu0 %2728
      %2730 = vrot.lane.b32.xlu0 %v1613, 32
      %v2731 = vpop.permute.xlu0 %2730
      %2732 = vrot.lane.b32.xlu0 %v1614, 32
      %v2733 = vpop.permute.xlu0 %2732
      %2734 = vrot.lane.b32.xlu0 %v1615, 32
      %v2735 = vpop.permute.xlu0 %2734
      %2736 = vrot.lane.b32.xlu0 %v1616, 32
      %v2737 = vpop.permute.xlu0 %2736
      %2738 = vrot.lane.b32.xlu0 %v1617, 32
      %v2739 = vpop.permute.xlu0 %2738
      %2740 = vrot.lane.b32.xlu0 %v1618, 32
      %v2741 = vpop.permute.xlu0 %2740
      %2742 = vrot.lane.b32.xlu0 %v1619, 32
      %v2743 = vpop.permute.xlu0 %2742
      %2744 = vrot.lane.b32.xlu0 %v1620, 32
      %v2745 = vpop.permute.xlu0 %2744
      %2746 = vrot.lane.b32.xlu0 %v1621, 32
      %v2747 = vpop.permute.xlu0 %2746
      %2748 = vrot.lane.b32.xlu0 %v1622, 32
      %v2749 = vpop.permute.xlu0 %2748
      %2750 = vrot.lane.b32.xlu0 %v1623, 32
      %v2751 = vpop.permute.xlu0 %2750
      %2752 = vrot.lane.b32.xlu0 %v1624, 32
      %v2753 = vpop.permute.xlu0 %2752
      %2754 = vrot.lane.b32.xlu0 %v1625, 32
      %v2755 = vpop.permute.xlu0 %2754
      %2756 = vrot.lane.b32.xlu0 %v1626, 32
      %v2757 = vpop.permute.xlu0 %2756
      %2758 = vrot.lane.b32.xlu0 %v1627, 32
      %v2759 = vpop.permute.xlu0 %2758
      %2760 = vrot.lane.b32.xlu0 %v1628, 32
      %v2761 = vpop.permute.xlu0 %2760
      %2762 = vrot.lane.b32.xlu0 %v1629, 32
      %v2763 = vpop.permute.xlu0 %2762
      %2764 = vrot.lane.b32.xlu0 %v1630, 32
      %v2765 = vpop.permute.xlu0 %2764
      %2766 = vrot.lane.b32.xlu0 %v1631, 32
      %v2767 = vpop.permute.xlu0 %2766
      %2768 = vrot.lane.b32.xlu0 %v1632, 32
      %v2769 = vpop.permute.xlu0 %2768
      %2770 = vrot.lane.b32.xlu0 %v1633, 32
      %v2771 = vpop.permute.xlu0 %2770
      %2772 = vrot.lane.b32.xlu0 %v1634, 32
      %v2773 = vpop.permute.xlu0 %2772
      %2774 = vrot.lane.b32.xlu0 %v1635, 32
      %v2775 = vpop.permute.xlu0 %2774
      %2776 = vrot.lane.b32.xlu0 %v1636, 32
      %v2777 = vpop.permute.xlu0 %2776
      %2778 = vrot.lane.b32.xlu0 %v1637, 32
      %v2779 = vpop.permute.xlu0 %2778
      %2780 = vrot.lane.b32.xlu0 %v1638, 32
      %v2781 = vpop.permute.xlu0 %2780
      %2782 = vrot.lane.b32.xlu0 %v1639, 32
      %v2783 = vpop.permute.xlu0 %2782
      %2784 = vrot.lane.b32.xlu0 %v1640, 32
      %v2785 = vpop.permute.xlu0 %2784
      %2786 = vrot.lane.b32.xlu0 %v1641, 32
      %v2787 = vpop.permute.xlu0 %2786
      %2788 = vrot.lane.b32.xlu0 %v1642, 32
      %v2789 = vpop.permute.xlu0 %2788
      %2790 = vrot.lane.b32.xlu0 %v1643, 32
      %v2791 = vpop.permute.xlu0 %2790
      %2792 = vrot.lane.b32.xlu0 %v1644, 32
      %v2793 = vpop.permute.xlu0 %2792
      %2794 = vrot.lane.b32.xlu0 %v1645, 32
      %v2795 = vpop.permute.xlu0 %2794
      %2796 = vrot.lane.b32.xlu0 %v1646, 32
      %v2797 = vpop.permute.xlu0 %2796
      %2798 = vrot.lane.b32.xlu0 %v1647, 32
      %v2799 = vpop.permute.xlu0 %2798
      %v2864 = vsel %vm429, %v2673, 0.0
      %2865 = vadd.xlane.f32.xlu0 %v2864
      %v2866 = vpop.xlane.xlu0 %2865
      %v2867 = vsel %vm429, %v2675, 0.0
      %2868 = vadd.xlane.f32.xlu0 %v2867
      %v2869 = vpop.xlane.xlu0 %2868
      %v2870 = vsel %vm429, %v2677, 0.0
      %2871 = vadd.xlane.f32.xlu0 %v2870
      %v2872 = vpop.xlane.xlu0 %2871
      %v2873 = vsel %vm429, %v2679, 0.0
      %2874 = vadd.xlane.f32.xlu0 %v2873
      %v2875 = vpop.xlane.xlu0 %2874
      %v2876 = vsel %vm429, %v2681, 0.0
      %2877 = vadd.xlane.f32.xlu0 %v2876
      %v2878 = vpop.xlane.xlu0 %2877
      %v2879 = vsel %vm429, %v2683, 0.0
      %2880 = vadd.xlane.f32.xlu0 %v2879
      %v2881 = vpop.xlane.xlu0 %2880
      %v2882 = vsel %vm429, %v2685, 0.0
      %2883 = vadd.xlane.f32.xlu0 %v2882
      %v2884 = vpop.xlane.xlu0 %2883
      %v2885 = vsel %vm429, %v2687, 0.0
      %2886 = vadd.xlane.f32.xlu0 %v2885
      %v2887 = vpop.xlane.xlu0 %2886
      %v2888 = vsel %vm429, %v2689, 0.0
      %2889 = vadd.xlane.f32.xlu0 %v2888
      %v2890 = vpop.xlane.xlu0 %2889
      %v2891 = vsel %vm429, %v2691, 0.0
      %2892 = vadd.xlane.f32.xlu0 %v2891
      %v2893 = vpop.xlane.xlu0 %2892
      %v2894 = vsel %vm429, %v2693, 0.0
      %2895 = vadd.xlane.f32.xlu0 %v2894
      %v2896 = vpop.xlane.xlu0 %2895
      %v2897 = vsel %vm429, %v2695, 0.0
      %2898 = vadd.xlane.f32.xlu0 %v2897
      %v2899 = vpop.xlane.xlu0 %2898
      %v2900 = vsel %vm429, %v2697, 0.0
      %2901 = vadd.xlane.f32.xlu0 %v2900
      %v2902 = vpop.xlane.xlu0 %2901
      %v2903 = vsel %vm429, %v2699, 0.0
      %2904 = vadd.xlane.f32.xlu0 %v2903
      %v2905 = vpop.xlane.xlu0 %2904
      %v2906 = vsel %vm429, %v2701, 0.0
      %2907 = vadd.xlane.f32.xlu0 %v2906
      %v2908 = vpop.xlane.xlu0 %2907
      %v2909 = vsel %vm429, %v2703, 0.0
      %2910 = vadd.xlane.f32.xlu0 %v2909
      %v2911 = vpop.xlane.xlu0 %2910
      %v2912 = vsel %vm429, %v2705, 0.0
      %2913 = vadd.xlane.f32.xlu0 %v2912
      %v2914 = vpop.xlane.xlu0 %2913
      %v2915 = vsel %vm429, %v2707, 0.0
      %2916 = vadd.xlane.f32.xlu0 %v2915
      %v2917 = vpop.xlane.xlu0 %2916
      %v2918 = vsel %vm429, %v2709, 0.0
      %2919 = vadd.xlane.f32.xlu0 %v2918
      %v2920 = vpop.xlane.xlu0 %2919
      %v2921 = vsel %vm429, %v2711, 0.0
      %2922 = vadd.xlane.f32.xlu0 %v2921
      %v2923 = vpop.xlane.xlu0 %2922
      %v2924 = vsel %vm429, %v2713, 0.0
      %2925 = vadd.xlane.f32.xlu0 %v2924
      %v2926 = vpop.xlane.xlu0 %2925
      %v2927 = vsel %vm429, %v2715, 0.0
      %2928 = vadd.xlane.f32.xlu0 %v2927
      %v2929 = vpop.xlane.xlu0 %2928
      %v2930 = vsel %vm429, %v2717, 0.0
      %2931 = vadd.xlane.f32.xlu0 %v2930
      %v2932 = vpop.xlane.xlu0 %2931
      %v2933 = vsel %vm429, %v2719, 0.0
      %2934 = vadd.xlane.f32.xlu0 %v2933
      %v2935 = vpop.xlane.xlu0 %2934
      %v2936 = vsel %vm429, %v2721, 0.0
      %2937 = vadd.xlane.f32.xlu0 %v2936
      %v2938 = vpop.xlane.xlu0 %2937
      %v2939 = vsel %vm429, %v2723, 0.0
      %2940 = vadd.xlane.f32.xlu0 %v2939
      %v2941 = vpop.xlane.xlu0 %2940
      %v2942 = vsel %vm429, %v2725, 0.0
      %2943 = vadd.xlane.f32.xlu0 %v2942
      %v2944 = vpop.xlane.xlu0 %2943
      %v2945 = vsel %vm429, %v2727, 0.0
      %2946 = vadd.xlane.f32.xlu0 %v2945
      %v2947 = vpop.xlane.xlu0 %2946
      %v2948 = vsel %vm429, %v2729, 0.0
      %2949 = vadd.xlane.f32.xlu0 %v2948
      %v2950 = vpop.xlane.xlu0 %2949
      %v2951 = vsel %vm429, %v2731, 0.0
      %2952 = vadd.xlane.f32.xlu0 %v2951
      %v2953 = vpop.xlane.xlu0 %2952
      %v2954 = vsel %vm429, %v2733, 0.0
      %2955 = vadd.xlane.f32.xlu0 %v2954
      %v2956 = vpop.xlane.xlu0 %2955
      %v2957 = vsel %vm429, %v2735, 0.0
      %2958 = vadd.xlane.f32.xlu0 %v2957
      %v2959 = vpop.xlane.xlu0 %2958
      %v2960 = vsel %vm429, %v2737, 0.0
      %2961 = vadd.xlane.f32.xlu0 %v2960
      %v2962 = vpop.xlane.xlu0 %2961
      %v2963 = vsel %vm429, %v2739, 0.0
      %2964 = vadd.xlane.f32.xlu0 %v2963
      %v2965 = vpop.xlane.xlu0 %2964
      %v2966 = vsel %vm429, %v2741, 0.0
      %2967 = vadd.xlane.f32.xlu0 %v2966
      %v2968 = vpop.xlane.xlu0 %2967
      %v2969 = vsel %vm429, %v2743, 0.0
      %2970 = vadd.xlane.f32.xlu0 %v2969
      %v2971 = vpop.xlane.xlu0 %2970
      %v2972 = vsel %vm429, %v2745, 0.0
      %2973 = vadd.xlane.f32.xlu0 %v2972
      %v2974 = vpop.xlane.xlu0 %2973
      %v2975 = vsel %vm429, %v2747, 0.0
      %2976 = vadd.xlane.f32.xlu0 %v2975
      %v2977 = vpop.xlane.xlu0 %2976
      %v2978 = vsel %vm429, %v2749, 0.0
      %2979 = vadd.xlane.f32.xlu0 %v2978
      %v2980 = vpop.xlane.xlu0 %2979
      %v2981 = vsel %vm429, %v2751, 0.0
      %2982 = vadd.xlane.f32.xlu0 %v2981
      %v2983 = vpop.xlane.xlu0 %2982
      %v2984 = vsel %vm429, %v2753, 0.0
      %2985 = vadd.xlane.f32.xlu0 %v2984
      %v2986 = vpop.xlane.xlu0 %2985
      %v2987 = vsel %vm429, %v2755, 0.0
      %2988 = vadd.xlane.f32.xlu0 %v2987
      %v2989 = vpop.xlane.xlu0 %2988
      %v2990 = vsel %vm429, %v2757, 0.0
      %2991 = vadd.xlane.f32.xlu0 %v2990
      %v2992 = vpop.xlane.xlu0 %2991
      %v2993 = vsel %vm429, %v2759, 0.0
      %2994 = vadd.xlane.f32.xlu0 %v2993
      %v2995 = vpop.xlane.xlu0 %2994
      %v2996 = vsel %vm429, %v2761, 0.0
      %2997 = vadd.xlane.f32.xlu0 %v2996
      %v2998 = vpop.xlane.xlu0 %2997
      %v2999 = vsel %vm429, %v2763, 0.0
      %3000 = vadd.xlane.f32.xlu0 %v2999
      %v3001 = vpop.xlane.xlu0 %3000
      %v3002 = vsel %vm429, %v2765, 0.0
      %3003 = vadd.xlane.f32.xlu0 %v3002
      %v3004 = vpop.xlane.xlu0 %3003
      %v3005 = vsel %vm429, %v2767, 0.0
      %3006 = vadd.xlane.f32.xlu0 %v3005
      %v3007 = vpop.xlane.xlu0 %3006
      %v3008 = vsel %vm429, %v2769, 0.0
      %3009 = vadd.xlane.f32.xlu0 %v3008
      %v3010 = vpop.xlane.xlu0 %3009
      %v3011 = vsel %vm429, %v2771, 0.0
      %3012 = vadd.xlane.f32.xlu0 %v3011
      %v3013 = vpop.xlane.xlu0 %3012
      %v3014 = vsel %vm429, %v2773, 0.0
      %3015 = vadd.xlane.f32.xlu0 %v3014
      %v3016 = vpop.xlane.xlu0 %3015
      %v3017 = vsel %vm429, %v2775, 0.0
      %3018 = vadd.xlane.f32.xlu0 %v3017
      %v3019 = vpop.xlane.xlu0 %3018
      %v3020 = vsel %vm429, %v2777, 0.0
      %3021 = vadd.xlane.f32.xlu0 %v3020
      %v3022 = vpop.xlane.xlu0 %3021
      %v3023 = vsel %vm429, %v2779, 0.0
      %3024 = vadd.xlane.f32.xlu0 %v3023
      %v3025 = vpop.xlane.xlu0 %3024
      %v3026 = vsel %vm429, %v2781, 0.0
      %3027 = vadd.xlane.f32.xlu0 %v3026
      %v3028 = vpop.xlane.xlu0 %3027
      %v3029 = vsel %vm429, %v2783, 0.0
      %3030 = vadd.xlane.f32.xlu0 %v3029
      %v3031 = vpop.xlane.xlu0 %3030
      %v3032 = vsel %vm429, %v2785, 0.0
      %3033 = vadd.xlane.f32.xlu0 %v3032
      %v3034 = vpop.xlane.xlu0 %3033
      %v3035 = vsel %vm429, %v2787, 0.0
      %3036 = vadd.xlane.f32.xlu0 %v3035
      %v3037 = vpop.xlane.xlu0 %3036
      %v3038 = vsel %vm429, %v2789, 0.0
      %3039 = vadd.xlane.f32.xlu0 %v3038
      %v3040 = vpop.xlane.xlu0 %3039
      %v3041 = vsel %vm429, %v2791, 0.0
      %3042 = vadd.xlane.f32.xlu0 %v3041
      %v3043 = vpop.xlane.xlu0 %3042
      %v3044 = vsel %vm429, %v2793, 0.0
      %3045 = vadd.xlane.f32.xlu0 %v3044
      %v3046 = vpop.xlane.xlu0 %3045
      %v3047 = vsel %vm429, %v2795, 0.0
      %3048 = vadd.xlane.f32.xlu0 %v3047
      %v3049 = vpop.xlane.xlu0 %3048
      %v3050 = vsel %vm429, %v2797, 0.0
      %3051 = vadd.xlane.f32.xlu0 %v3050
      %v3052 = vpop.xlane.xlu0 %3051
      %v3053 = vsel %vm429, %v2799, 0.0
      %3054 = vadd.xlane.f32.xlu0 %v3053
      %v3055 = vpop.xlane.xlu0 %3054
      %v3120 = vlaneseq
      %v3121 = vand.u32 %v3120, 127
      %v3122 = vperm.slane %v1650, %v3121
      %v3123 = vperm.slane %v1653, %v3121
      %v3124 = vperm.slane %v1656, %v3121
      %v3125 = vperm.slane %v1659, %v3121
      %v3126 = vperm.slane %v1662, %v3121
      %v3127 = vperm.slane %v1665, %v3121
      %v3128 = vperm.slane %v1668, %v3121
      %v3129 = vperm.slane %v1671, %v3121
      %v3130 = vperm.slane %v1674, %v3121
      %v3131 = vperm.slane %v1677, %v3121
      %v3132 = vperm.slane %v1680, %v3121
      %v3133 = vperm.slane %v1683, %v3121
      %v3134 = vperm.slane %v1686, %v3121
      %v3135 = vperm.slane %v1689, %v3121
      %v3136 = vperm.slane %v1692, %v3121
      %v3137 = vperm.slane %v1695, %v3121
      %v3138 = vperm.slane %v1698, %v3121
      %v3139 = vperm.slane %v1701, %v3121
      %v3140 = vperm.slane %v1704, %v3121
      %v3141 = vperm.slane %v1707, %v3121
      %v3142 = vperm.slane %v1710, %v3121
      %v3143 = vperm.slane %v1713, %v3121
      %v3144 = vperm.slane %v1716, %v3121
      %v3145 = vperm.slane %v1719, %v3121
      %v3146 = vperm.slane %v1722, %v3121
      %v3147 = vperm.slane %v1725, %v3121
      %v3148 = vperm.slane %v1728, %v3121
      %v3149 = vperm.slane %v1731, %v3121
      %v3150 = vperm.slane %v1734, %v3121
      %v3151 = vperm.slane %v1737, %v3121
      %v3152 = vperm.slane %v1740, %v3121
      %v3153 = vperm.slane %v1743, %v3121
      %v3154 = vperm.slane %v1746, %v3121
      %v3155 = vperm.slane %v1749, %v3121
      %v3156 = vperm.slane %v1752, %v3121
      %v3157 = vperm.slane %v1755, %v3121
      %v3158 = vperm.slane %v1758, %v3121
      %v3159 = vperm.slane %v1761, %v3121
      %v3160 = vperm.slane %v1764, %v3121
      %v3161 = vperm.slane %v1767, %v3121
      %v3162 = vperm.slane %v1770, %v3121
      %v3163 = vperm.slane %v1773, %v3121
      %v3164 = vperm.slane %v1776, %v3121
      %v3165 = vperm.slane %v1779, %v3121
      %v3166 = vperm.slane %v1782, %v3121
      %v3167 = vperm.slane %v1785, %v3121
      %v3168 = vperm.slane %v1788, %v3121
      %v3169 = vperm.slane %v1791, %v3121
      %v3170 = vperm.slane %v1794, %v3121
      %v3171 = vperm.slane %v1797, %v3121
      %v3172 = vperm.slane %v1800, %v3121
      %v3173 = vperm.slane %v1803, %v3121
      %v3174 = vperm.slane %v1806, %v3121
      %v3175 = vperm.slane %v1809, %v3121
      %v3176 = vperm.slane %v1812, %v3121
      %v3177 = vperm.slane %v1815, %v3121
      %v3178 = vperm.slane %v1818, %v3121
      %v3179 = vperm.slane %v1821, %v3121
      %v3180 = vperm.slane %v1824, %v3121
      %v3181 = vperm.slane %v1827, %v3121
      %v3182 = vperm.slane %v1830, %v3121
      %v3183 = vperm.slane %v1833, %v3121
      %v3184 = vperm.slane %v1836, %v3121
      %v3185 = vperm.slane %v1839, %v3121
      %vm3186 = vcmask 1041409
      %v3187 = vsel %vm3186, %v3123, %v3122
      %vm3188 = vcmask 1042434
      %v3189 = vsel %vm3188, %v3124, %v3187
      %vm3190 = vcmask 1043459
      %v3191 = vsel %vm3190, %v3125, %v3189
      %vm3192 = vcmask 1044484
      %v3193 = vsel %vm3192, %v3126, %v3191
      %vm3194 = vcmask 1045509
      %v3195 = vsel %vm3194, %v3127, %v3193
      %vm3196 = vcmask 1046534
      %v3197 = vsel %vm3196, %v3128, %v3195
      %vm3198 = vcmask 1047559
      %v3199 = vsel %vm3198, %v3129, %v3197
      %v3200 = vsel %vm3186, %v3131, %v3130
      %v3201 = vsel %vm3188, %v3132, %v3200
      %v3202 = vsel %vm3190, %v3133, %v3201
      %v3203 = vsel %vm3192, %v3134, %v3202
      %v3204 = vsel %vm3194, %v3135, %v3203
      %v3205 = vsel %vm3196, %v3136, %v3204
      %v3206 = vsel %vm3198, %v3137, %v3205
      %v3207 = vsel %vm3186, %v3139, %v3138
      %v3208 = vsel %vm3188, %v3140, %v3207
      %v3209 = vsel %vm3190, %v3141, %v3208
      %v3210 = vsel %vm3192, %v3142, %v3209
      %v3211 = vsel %vm3194, %v3143, %v3210
      %v3212 = vsel %vm3196, %v3144, %v3211
      %v3213 = vsel %vm3198, %v3145, %v3212
      %v3214 = vsel %vm3186, %v3147, %v3146
      %v3215 = vsel %vm3188, %v3148, %v3214
      %v3216 = vsel %vm3190, %v3149, %v3215
      %v3217 = vsel %vm3192, %v3150, %v3216
      %v3218 = vsel %vm3194, %v3151, %v3217
      %v3219 = vsel %vm3196, %v3152, %v3218
      %v3220 = vsel %vm3198, %v3153, %v3219
      %v3221 = vsel %vm3186, %v3155, %v3154
      %v3222 = vsel %vm3188, %v3156, %v3221
      %v3223 = vsel %vm3190, %v3157, %v3222
      %v3224 = vsel %vm3192, %v3158, %v3223
      %v3225 = vsel %vm3194, %v3159, %v3224
      %v3226 = vsel %vm3196, %v3160, %v3225
      %v3227 = vsel %vm3198, %v3161, %v3226
      %v3228 = vsel %vm3186, %v3163, %v3162
      %v3229 = vsel %vm3188, %v3164, %v3228
      %v3230 = vsel %vm3190, %v3165, %v3229
      %v3231 = vsel %vm3192, %v3166, %v3230
      %v3232 = vsel %vm3194, %v3167, %v3231
      %v3233 = vsel %vm3196, %v3168, %v3232
      %v3234 = vsel %vm3198, %v3169, %v3233
      %v3235 = vsel %vm3186, %v3171, %v3170
      %v3236 = vsel %vm3188, %v3172, %v3235
      %v3237 = vsel %vm3190, %v3173, %v3236
      %v3238 = vsel %vm3192, %v3174, %v3237
      %v3239 = vsel %vm3194, %v3175, %v3238
      %v3240 = vsel %vm3196, %v3176, %v3239
      %v3241 = vsel %vm3198, %v3177, %v3240
      %v3242 = vsel %vm3186, %v3179, %v3178
      %v3243 = vsel %vm3188, %v3180, %v3242
      %v3244 = vsel %vm3190, %v3181, %v3243
      %v3245 = vsel %vm3192, %v3182, %v3244
      %v3246 = vsel %vm3194, %v3183, %v3245
      %v3247 = vsel %vm3196, %v3184, %v3246
      %v3248 = vsel %vm3198, %v3185, %v3247
      %v3321 = vperm.slane %v2098, %v3121
      %v3322 = vperm.slane %v2101, %v3121
      %v3323 = vperm.slane %v2104, %v3121
      %v3324 = vperm.slane %v2107, %v3121
      %v3325 = vperm.slane %v2110, %v3121
      %v3326 = vperm.slane %v2113, %v3121
      %v3327 = vperm.slane %v2116, %v3121
      %v3328 = vperm.slane %v2119, %v3121
      %v3329 = vperm.slane %v2122, %v3121
      %v3330 = vperm.slane %v2125, %v3121
      %v3331 = vperm.slane %v2128, %v3121
      %v3332 = vperm.slane %v2131, %v3121
      %v3333 = vperm.slane %v2134, %v3121
      %v3334 = vperm.slane %v2137, %v3121
      %v3335 = vperm.slane %v2140, %v3121
      %v3336 = vperm.slane %v2143, %v3121
      %v3337 = vperm.slane %v2146, %v3121
      %v3338 = vperm.slane %v2149, %v3121
      %v3339 = vperm.slane %v2152, %v3121
      %v3340 = vperm.slane %v2155, %v3121
      %v3341 = vperm.slane %v2158, %v3121
      %v3342 = vperm.slane %v2161, %v3121
      %v3343 = vperm.slane %v2164, %v3121
      %v3344 = vperm.slane %v2167, %v3121
      %v3345 = vperm.slane %v2170, %v3121
      %v3346 = vperm.slane %v2173, %v3121
      %v3347 = vperm.slane %v2176, %v3121
      %v3348 = vperm.slane %v2179, %v3121
      %v3349 = vperm.slane %v2182, %v3121
      %v3350 = vperm.slane %v2185, %v3121
      %v3351 = vperm.slane %v2188, %v3121
      %v3352 = vperm.slane %v2191, %v3121
      %v3353 = vperm.slane %v2194, %v3121
      %v3354 = vperm.slane %v2197, %v3121
      %v3355 = vperm.slane %v2200, %v3121
      %v3356 = vperm.slane %v2203, %v3121
      %v3357 = vperm.slane %v2206, %v3121
      %v3358 = vperm.slane %v2209, %v3121
      %v3359 = vperm.slane %v2212, %v3121
      %v3360 = vperm.slane %v2215, %v3121
      %v3361 = vperm.slane %v2218, %v3121
      %v3362 = vperm.slane %v2221, %v3121
      %v3363 = vperm.slane %v2224, %v3121
      %v3364 = vperm.slane %v2227, %v3121
      %v3365 = vperm.slane %v2230, %v3121
      %v3366 = vperm.slane %v2233, %v3121
      %v3367 = vperm.slane %v2236, %v3121
      %v3368 = vperm.slane %v2239, %v3121
      %v3369 = vperm.slane %v2242, %v3121
      %v3370 = vperm.slane %v2245, %v3121
      %v3371 = vperm.slane %v2248, %v3121
      %v3372 = vperm.slane %v2251, %v3121
      %v3373 = vperm.slane %v2254, %v3121
      %v3374 = vperm.slane %v2257, %v3121
      %v3375 = vperm.slane %v2260, %v3121
      %v3376 = vperm.slane %v2263, %v3121
      %v3377 = vperm.slane %v2266, %v3121
      %v3378 = vperm.slane %v2269, %v3121
      %v3379 = vperm.slane %v2272, %v3121
      %v3380 = vperm.slane %v2275, %v3121
      %v3381 = vperm.slane %v2278, %v3121
      %v3382 = vperm.slane %v2281, %v3121
      %v3383 = vperm.slane %v2284, %v3121
      %v3384 = vperm.slane %v2287, %v3121
      %v3385 = vsel %vm3186, %v3322, %v3321
      %v3386 = vsel %vm3188, %v3323, %v3385
      %v3387 = vsel %vm3190, %v3324, %v3386
      %v3388 = vsel %vm3192, %v3325, %v3387
      %v3389 = vsel %vm3194, %v3326, %v3388
      %v3390 = vsel %vm3196, %v3327, %v3389
      %v3391 = vsel %vm3198, %v3328, %v3390
      %v3392 = vsel %vm3186, %v3330, %v3329
      %v3393 = vsel %vm3188, %v3331, %v3392
      %v3394 = vsel %vm3190, %v3332, %v3393
      %v3395 = vsel %vm3192, %v3333, %v3394
      %v3396 = vsel %vm3194, %v3334, %v3395
      %v3397 = vsel %vm3196, %v3335, %v3396
      %v3398 = vsel %vm3198, %v3336, %v3397
      %v3399 = vsel %vm3186, %v3338, %v3337
      %v3400 = vsel %vm3188, %v3339, %v3399
      %v3401 = vsel %vm3190, %v3340, %v3400
      %v3402 = vsel %vm3192, %v3341, %v3401
      %v3403 = vsel %vm3194, %v3342, %v3402
      %v3404 = vsel %vm3196, %v3343, %v3403
      %v3405 = vsel %vm3198, %v3344, %v3404
      %v3406 = vsel %vm3186, %v3346, %v3345
      %v3407 = vsel %vm3188, %v3347, %v3406
      %v3408 = vsel %vm3190, %v3348, %v3407
      %v3409 = vsel %vm3192, %v3349, %v3408
      %v3410 = vsel %vm3194, %v3350, %v3409
      %v3411 = vsel %vm3196, %v3351, %v3410
      %v3412 = vsel %vm3198, %v3352, %v3411
      %v3413 = vsel %vm3186, %v3354, %v3353
      %v3414 = vsel %vm3188, %v3355, %v3413
      %v3415 = vsel %vm3190, %v3356, %v3414
      %v3416 = vsel %vm3192, %v3357, %v3415
      %v3417 = vsel %vm3194, %v3358, %v3416
      %v3418 = vsel %vm3196, %v3359, %v3417
      %v3419 = vsel %vm3198, %v3360, %v3418
      %v3420 = vsel %vm3186, %v3362, %v3361
      %v3421 = vsel %vm3188, %v3363, %v3420
      %v3422 = vsel %vm3190, %v3364, %v3421
      %v3423 = vsel %vm3192, %v3365, %v3422
      %v3424 = vsel %vm3194, %v3366, %v3423
      %v3425 = vsel %vm3196, %v3367, %v3424
      %v3426 = vsel %vm3198, %v3368, %v3425
      %v3427 = vsel %vm3186, %v3370, %v3369
      %v3428 = vsel %vm3188, %v3371, %v3427
      %v3429 = vsel %vm3190, %v3372, %v3428
      %v3430 = vsel %vm3192, %v3373, %v3429
      %v3431 = vsel %vm3194, %v3374, %v3430
      %v3432 = vsel %vm3196, %v3375, %v3431
      %v3433 = vsel %vm3198, %v3376, %v3432
      %v3434 = vsel %vm3186, %v3378, %v3377
      %v3435 = vsel %vm3188, %v3379, %v3434
      %v3436 = vsel %vm3190, %v3380, %v3435
      %v3437 = vsel %vm3192, %v3381, %v3436
      %v3438 = vsel %vm3194, %v3382, %v3437
      %v3439 = vsel %vm3196, %v3383, %v3438
      %v3440 = vsel %vm3198, %v3384, %v3439
      %v3513 = vperm.slane %v2482, %v3121
      %v3514 = vperm.slane %v2485, %v3121
      %v3515 = vperm.slane %v2488, %v3121
      %v3516 = vperm.slane %v2491, %v3121
      %v3517 = vperm.slane %v2494, %v3121
      %v3518 = vperm.slane %v2497, %v3121
      %v3519 = vperm.slane %v2500, %v3121
      %v3520 = vperm.slane %v2503, %v3121
      %v3521 = vperm.slane %v2506, %v3121
      %v3522 = vperm.slane %v2509, %v3121
      %v3523 = vperm.slane %v2512, %v3121
      %v3524 = vperm.slane %v2515, %v3121
      %v3525 = vperm.slane %v2518, %v3121
      %v3526 = vperm.slane %v2521, %v3121
      %v3527 = vperm.slane %v2524, %v3121
      %v3528 = vperm.slane %v2527, %v3121
      %v3529 = vperm.slane %v2530, %v3121
      %v3530 = vperm.slane %v2533, %v3121
      %v3531 = vperm.slane %v2536, %v3121
      %v3532 = vperm.slane %v2539, %v3121
      %v3533 = vperm.slane %v2542, %v3121
      %v3534 = vperm.slane %v2545, %v3121
      %v3535 = vperm.slane %v2548, %v3121
      %v3536 = vperm.slane %v2551, %v3121
      %v3537 = vperm.slane %v2554, %v3121
      %v3538 = vperm.slane %v2557, %v3121
      %v3539 = vperm.slane %v2560, %v3121
      %v3540 = vperm.slane %v2563, %v3121
      %v3541 = vperm.slane %v2566, %v3121
      %v3542 = vperm.slane %v2569, %v3121
      %v3543 = vperm.slane %v2572, %v3121
      %v3544 = vperm.slane %v2575, %v3121
      %v3545 = vperm.slane %v2578, %v3121
      %v3546 = vperm.slane %v2581, %v3121
      %v3547 = vperm.slane %v2584, %v3121
      %v3548 = vperm.slane %v2587, %v3121
      %v3549 = vperm.slane %v2590, %v3121
      %v3550 = vperm.slane %v2593, %v3121
      %v3551 = vperm.slane %v2596, %v3121
      %v3552 = vperm.slane %v2599, %v3121
      %v3553 = vperm.slane %v2602, %v3121
      %v3554 = vperm.slane %v2605, %v3121
      %v3555 = vperm.slane %v2608, %v3121
      %v3556 = vperm.slane %v2611, %v3121
      %v3557 = vperm.slane %v2614, %v3121
      %v3558 = vperm.slane %v2617, %v3121
      %v3559 = vperm.slane %v2620, %v3121
      %v3560 = vperm.slane %v2623, %v3121
      %v3561 = vperm.slane %v2626, %v3121
      %v3562 = vperm.slane %v2629, %v3121
      %v3563 = vperm.slane %v2632, %v3121
      %v3564 = vperm.slane %v2635, %v3121
      %v3565 = vperm.slane %v2638, %v3121
      %v3566 = vperm.slane %v2641, %v3121
      %v3567 = vperm.slane %v2644, %v3121
      %v3568 = vperm.slane %v2647, %v3121
      %v3569 = vperm.slane %v2650, %v3121
      %v3570 = vperm.slane %v2653, %v3121
      %v3571 = vperm.slane %v2656, %v3121
      %v3572 = vperm.slane %v2659, %v3121
      %v3573 = vperm.slane %v2662, %v3121
      %v3574 = vperm.slane %v2665, %v3121
      %v3575 = vperm.slane %v2668, %v3121
      %v3576 = vperm.slane %v2671, %v3121
      %v3577 = vsel %vm3186, %v3514, %v3513
      %v3578 = vsel %vm3188, %v3515, %v3577
      %v3579 = vsel %vm3190, %v3516, %v3578
      %v3580 = vsel %vm3192, %v3517, %v3579
      %v3581 = vsel %vm3194, %v3518, %v3580
      %v3582 = vsel %vm3196, %v3519, %v3581
      %v3583 = vsel %vm3198, %v3520, %v3582
      %v3584 = vsel %vm3186, %v3522, %v3521
      %v3585 = vsel %vm3188, %v3523, %v3584
      %v3586 = vsel %vm3190, %v3524, %v3585
      %v3587 = vsel %vm3192, %v3525, %v3586
      %v3588 = vsel %vm3194, %v3526, %v3587
      %v3589 = vsel %vm3196, %v3527, %v3588
      %v3590 = vsel %vm3198, %v3528, %v3589
      %v3591 = vsel %vm3186, %v3530, %v3529
      %v3592 = vsel %vm3188, %v3531, %v3591
      %v3593 = vsel %vm3190, %v3532, %v3592
      %v3594 = vsel %vm3192, %v3533, %v3593
      %v3595 = vsel %vm3194, %v3534, %v3594
      %v3596 = vsel %vm3196, %v3535, %v3595
      %v3597 = vsel %vm3198, %v3536, %v3596
      %v3598 = vsel %vm3186, %v3538, %v3537
      %v3599 = vsel %vm3188, %v3539, %v3598
      %v3600 = vsel %vm3190, %v3540, %v3599
      %v3601 = vsel %vm3192, %v3541, %v3600
      %v3602 = vsel %vm3194, %v3542, %v3601
      %v3603 = vsel %vm3196, %v3543, %v3602
      %v3604 = vsel %vm3198, %v3544, %v3603
      %v3605 = vsel %vm3186, %v3546, %v3545
      %v3606 = vsel %vm3188, %v3547, %v3605
      %v3607 = vsel %vm3190, %v3548, %v3606
      %v3608 = vsel %vm3192, %v3549, %v3607
      %v3609 = vsel %vm3194, %v3550, %v3608
      %v3610 = vsel %vm3196, %v3551, %v3609
      %v3611 = vsel %vm3198, %v3552, %v3610
      %v3612 = vsel %vm3186, %v3554, %v3553
      %v3613 = vsel %vm3188, %v3555, %v3612
      %v3614 = vsel %vm3190, %v3556, %v3613
      %v3615 = vsel %vm3192, %v3557, %v3614
      %v3616 = vsel %vm3194, %v3558, %v3615
      %v3617 = vsel %vm3196, %v3559, %v3616
      %v3618 = vsel %vm3198, %v3560, %v3617
      %v3619 = vsel %vm3186, %v3562, %v3561
      %v3620 = vsel %vm3188, %v3563, %v3619
      %v3621 = vsel %vm3190, %v3564, %v3620
      %v3622 = vsel %vm3192, %v3565, %v3621
      %v3623 = vsel %vm3194, %v3566, %v3622
      %v3624 = vsel %vm3196, %v3567, %v3623
      %v3625 = vsel %vm3198, %v3568, %v3624
      %v3626 = vsel %vm3186, %v3570, %v3569
      %v3627 = vsel %vm3188, %v3571, %v3626
      %v3628 = vsel %vm3190, %v3572, %v3627
      %v3629 = vsel %vm3192, %v3573, %v3628
      %v3630 = vsel %vm3194, %v3574, %v3629
      %v3631 = vsel %vm3196, %v3575, %v3630
      %v3632 = vsel %vm3198, %v3576, %v3631
      %v3705 = vperm.slane %v2866, %v3121
      %v3706 = vperm.slane %v2869, %v3121
      %v3707 = vperm.slane %v2872, %v3121
      %v3708 = vperm.slane %v2875, %v3121
      %v3709 = vperm.slane %v2878, %v3121
      %v3710 = vperm.slane %v2881, %v3121
      %v3711 = vperm.slane %v2884, %v3121
      %v3712 = vperm.slane %v2887, %v3121
      %v3713 = vperm.slane %v2890, %v3121
      %v3714 = vperm.slane %v2893, %v3121
      %v3715 = vperm.slane %v2896, %v3121
      %v3716 = vperm.slane %v2899, %v3121
      %v3717 = vperm.slane %v2902, %v3121
      %v3718 = vperm.slane %v2905, %v3121
      %v3719 = vperm.slane %v2908, %v3121
      %v3720 = vperm.slane %v2911, %v3121
      %v3721 = vperm.slane %v2914, %v3121
      %v3722 = vperm.slane %v2917, %v3121
      %v3723 = vperm.slane %v2920, %v3121
      %v3724 = vperm.slane %v2923, %v3121
      %v3725 = vperm.slane %v2926, %v3121
      %v3726 = vperm.slane %v2929, %v3121
      %v3727 = vperm.slane %v2932, %v3121
      %v3728 = vperm.slane %v2935, %v3121
      %v3729 = vperm.slane %v2938, %v3121
      %v3730 = vperm.slane %v2941, %v3121
      %v3731 = vperm.slane %v2944, %v3121
      %v3732 = vperm.slane %v2947, %v3121
      %v3733 = vperm.slane %v2950, %v3121
      %v3734 = vperm.slane %v2953, %v3121
      %v3735 = vperm.slane %v2956, %v3121
      %v3736 = vperm.slane %v2959, %v3121
      %v3737 = vperm.slane %v2962, %v3121
      %v3738 = vperm.slane %v2965, %v3121
      %v3739 = vperm.slane %v2968, %v3121
      %v3740 = vperm.slane %v2971, %v3121
      %v3741 = vperm.slane %v2974, %v3121
      %v3742 = vperm.slane %v2977, %v3121
      %v3743 = vperm.slane %v2980, %v3121
      %v3744 = vperm.slane %v2983, %v3121
      %v3745 = vperm.slane %v2986, %v3121
      %v3746 = vperm.slane %v2989, %v3121
      %v3747 = vperm.slane %v2992, %v3121
      %v3748 = vperm.slane %v2995, %v3121
      %v3749 = vperm.slane %v2998, %v3121
      %v3750 = vperm.slane %v3001, %v3121
      %v3751 = vperm.slane %v3004, %v3121
      %v3752 = vperm.slane %v3007, %v3121
      %v3753 = vperm.slane %v3010, %v3121
      %v3754 = vperm.slane %v3013, %v3121
      %v3755 = vperm.slane %v3016, %v3121
      %v3756 = vperm.slane %v3019, %v3121
      %v3757 = vperm.slane %v3022, %v3121
      %v3758 = vperm.slane %v3025, %v3121
      %v3759 = vperm.slane %v3028, %v3121
      %v3760 = vperm.slane %v3031, %v3121
      %v3761 = vperm.slane %v3034, %v3121
      %v3762 = vperm.slane %v3037, %v3121
      %v3763 = vperm.slane %v3040, %v3121
      %v3764 = vperm.slane %v3043, %v3121
      %v3765 = vperm.slane %v3046, %v3121
      %v3766 = vperm.slane %v3049, %v3121
      %v3767 = vperm.slane %v3052, %v3121
      %v3768 = vperm.slane %v3055, %v3121
      %v3769 = vsel %vm3186, %v3706, %v3705
      %v3770 = vsel %vm3188, %v3707, %v3769
      %v3771 = vsel %vm3190, %v3708, %v3770
      %v3772 = vsel %vm3192, %v3709, %v3771
      %v3773 = vsel %vm3194, %v3710, %v3772
      %v3774 = vsel %vm3196, %v3711, %v3773
      %v3775 = vsel %vm3198, %v3712, %v3774
      %v3776 = vsel %vm3186, %v3714, %v3713
      %v3777 = vsel %vm3188, %v3715, %v3776
      %v3778 = vsel %vm3190, %v3716, %v3777
      %v3779 = vsel %vm3192, %v3717, %v3778
      %v3780 = vsel %vm3194, %v3718, %v3779
      %v3781 = vsel %vm3196, %v3719, %v3780
      %v3782 = vsel %vm3198, %v3720, %v3781
      %v3783 = vsel %vm3186, %v3722, %v3721
      %v3784 = vsel %vm3188, %v3723, %v3783
      %v3785 = vsel %vm3190, %v3724, %v3784
      %v3786 = vsel %vm3192, %v3725, %v3785
      %v3787 = vsel %vm3194, %v3726, %v3786
      %v3788 = vsel %vm3196, %v3727, %v3787
      %v3789 = vsel %vm3198, %v3728, %v3788
      %v3790 = vsel %vm3186, %v3730, %v3729
      %v3791 = vsel %vm3188, %v3731, %v3790
      %v3792 = vsel %vm3190, %v3732, %v3791
      %v3793 = vsel %vm3192, %v3733, %v3792
      %v3794 = vsel %vm3194, %v3734, %v3793
      %v3795 = vsel %vm3196, %v3735, %v3794
      %v3796 = vsel %vm3198, %v3736, %v3795
      %v3797 = vsel %vm3186, %v3738, %v3737
      %v3798 = vsel %vm3188, %v3739, %v3797
      %v3799 = vsel %vm3190, %v3740, %v3798
      %v3800 = vsel %vm3192, %v3741, %v3799
      %v3801 = vsel %vm3194, %v3742, %v3800
      %v3802 = vsel %vm3196, %v3743, %v3801
      %v3803 = vsel %vm3198, %v3744, %v3802
      %v3804 = vsel %vm3186, %v3746, %v3745
      %v3805 = vsel %vm3188, %v3747, %v3804
      %v3806 = vsel %vm3190, %v3748, %v3805
      %v3807 = vsel %vm3192, %v3749, %v3806
      %v3808 = vsel %vm3194, %v3750, %v3807
      %v3809 = vsel %vm3196, %v3751, %v3808
      %v3810 = vsel %vm3198, %v3752, %v3809
      %v3811 = vsel %vm3186, %v3754, %v3753
      %v3812 = vsel %vm3188, %v3755, %v3811
      %v3813 = vsel %vm3190, %v3756, %v3812
      %v3814 = vsel %vm3192, %v3757, %v3813
      %v3815 = vsel %vm3194, %v3758, %v3814
      %v3816 = vsel %vm3196, %v3759, %v3815
      %v3817 = vsel %vm3198, %v3760, %v3816
      %v3818 = vsel %vm3186, %v3762, %v3761
      %v3819 = vsel %vm3188, %v3763, %v3818
      %v3820 = vsel %vm3190, %v3764, %v3819
      %v3821 = vsel %vm3192, %v3765, %v3820
      %v3822 = vsel %vm3194, %v3766, %v3821
      %v3823 = vsel %vm3196, %v3767, %v3822
      %v3824 = vsel %vm3198, %v3768, %v3823
      %vm3833 = vcmp.gt.f32.partialorder %v536, 0.0
      %vm3834 = vcmp.gt.f32.partialorder %v537, 0.0
      %vm3835 = vcmp.gt.f32.partialorder %v538, 0.0
      %vm3836 = vcmp.gt.f32.partialorder %v539, 0.0
      %vm3837 = vcmp.gt.f32.partialorder %v540, 0.0
      %vm3838 = vcmp.gt.f32.partialorder %v541, 0.0
      %vm3839 = vcmp.gt.f32.partialorder %v542, 0.0
      %vm3840 = vcmp.gt.f32.partialorder %v543, 0.0
      %v3841 = vsel %vm3833, %v3199, -1e+30
      %v3842 = vsel %vm3833, %v3391, -1e+30
      %v3843 = vsel %vm3833, %v3583, -1e+30
      %v3844 = vsel %vm3833, %v3775, -1e+30
      %v3845 = vsel %vm3834, %v3206, -1e+30
      %v3846 = vsel %vm3834, %v3398, -1e+30
      %v3847 = vsel %vm3834, %v3590, -1e+30
      %v3848 = vsel %vm3834, %v3782, -1e+30
      %v3849 = vsel %vm3835, %v3213, -1e+30
      %v3850 = vsel %vm3835, %v3405, -1e+30
      %v3851 = vsel %vm3835, %v3597, -1e+30
      %v3852 = vsel %vm3835, %v3789, -1e+30
      %v3853 = vsel %vm3836, %v3220, -1e+30
      %v3854 = vsel %vm3836, %v3412, -1e+30
      %v3855 = vsel %vm3836, %v3604, -1e+30
      %v3856 = vsel %vm3836, %v3796, -1e+30
      %v3857 = vsel %vm3837, %v3227, -1e+30
      %v3858 = vsel %vm3837, %v3419, -1e+30
      %v3859 = vsel %vm3837, %v3611, -1e+30
      %v3860 = vsel %vm3837, %v3803, -1e+30
      %v3861 = vsel %vm3838, %v3234, -1e+30
      %v3862 = vsel %vm3838, %v3426, -1e+30
      %v3863 = vsel %vm3838, %v3618, -1e+30
      %v3864 = vsel %vm3838, %v3810, -1e+30
      %v3865 = vsel %vm3839, %v3241, -1e+30
      %v3866 = vsel %vm3839, %v3433, -1e+30
      %v3867 = vsel %vm3839, %v3625, -1e+30
      %v3868 = vsel %vm3839, %v3817, -1e+30
      %v3869 = vsel %vm3840, %v3248, -1e+30
      %v3870 = vsel %vm3840, %v3440, -1e+30
      %v3871 = vsel %vm3840, %v3632, -1e+30
      %v3872 = vsel %vm3840, %v3824, -1e+30
      %vm3873 = vcmask 64512
      %v3874 = vsel %vm3873, %v3841, -inf
      %3875 = vmax.xlane.f32.xlu0 %v3874
      %v3876 = vpop.xlane.xlu0 %3875
      %v3877 = vsel %vm3873, %v3842, -inf
      %3878 = vmax.xlane.f32.xlu0 %v3877
      %v3879 = vpop.xlane.xlu0 %3878
      %v3880 = vsel %vm3873, %v3843, -inf
      %3881 = vmax.xlane.f32.xlu0 %v3880
      %v3882 = vpop.xlane.xlu0 %3881
      %v3883 = vsel %vm3873, %v3844, -inf
      %3884 = vmax.xlane.f32.xlu0 %v3883
      %v3885 = vpop.xlane.xlu0 %3884
      %v3886 = vsel %vm3873, %v3845, -inf
      %3887 = vmax.xlane.f32.xlu0 %v3886
      %v3888 = vpop.xlane.xlu0 %3887
      %v3889 = vsel %vm3873, %v3846, -inf
      %3890 = vmax.xlane.f32.xlu0 %v3889
      %v3891 = vpop.xlane.xlu0 %3890
      %v3892 = vsel %vm3873, %v3847, -inf
      %3893 = vmax.xlane.f32.xlu0 %v3892
      %v3894 = vpop.xlane.xlu0 %3893
      %v3895 = vsel %vm3873, %v3848, -inf
      %3896 = vmax.xlane.f32.xlu0 %v3895
      %v3897 = vpop.xlane.xlu0 %3896
      %v3898 = vsel %vm3873, %v3849, -inf
      %3899 = vmax.xlane.f32.xlu0 %v3898
      %v3900 = vpop.xlane.xlu0 %3899
      %v3901 = vsel %vm3873, %v3850, -inf
      %3902 = vmax.xlane.f32.xlu0 %v3901
      %v3903 = vpop.xlane.xlu0 %3902
      %v3904 = vsel %vm3873, %v3851, -inf
      %3905 = vmax.xlane.f32.xlu0 %v3904
      %v3906 = vpop.xlane.xlu0 %3905
      %v3907 = vsel %vm3873, %v3852, -inf
      %3908 = vmax.xlane.f32.xlu0 %v3907
      %v3909 = vpop.xlane.xlu0 %3908
      %v3910 = vsel %vm3873, %v3853, -inf
      %3911 = vmax.xlane.f32.xlu0 %v3910
      %v3912 = vpop.xlane.xlu0 %3911
      %v3913 = vsel %vm3873, %v3854, -inf
      %3914 = vmax.xlane.f32.xlu0 %v3913
      %v3915 = vpop.xlane.xlu0 %3914
      %v3916 = vsel %vm3873, %v3855, -inf
      %3917 = vmax.xlane.f32.xlu0 %v3916
      %v3918 = vpop.xlane.xlu0 %3917
      %v3919 = vsel %vm3873, %v3856, -inf
      %3920 = vmax.xlane.f32.xlu0 %v3919
      %v3921 = vpop.xlane.xlu0 %3920
      %v3922 = vsel %vm3873, %v3857, -inf
      %3923 = vmax.xlane.f32.xlu0 %v3922
      %v3924 = vpop.xlane.xlu0 %3923
      %v3925 = vsel %vm3873, %v3858, -inf
      %3926 = vmax.xlane.f32.xlu0 %v3925
      %v3927 = vpop.xlane.xlu0 %3926
      %v3928 = vsel %vm3873, %v3859, -inf
      %3929 = vmax.xlane.f32.xlu0 %v3928
      %v3930 = vpop.xlane.xlu0 %3929
      %v3931 = vsel %vm3873, %v3860, -inf
      %3932 = vmax.xlane.f32.xlu0 %v3931
      %v3933 = vpop.xlane.xlu0 %3932
      %v3934 = vsel %vm3873, %v3861, -inf
      %3935 = vmax.xlane.f32.xlu0 %v3934
      %v3936 = vpop.xlane.xlu0 %3935
      %v3937 = vsel %vm3873, %v3862, -inf
      %3938 = vmax.xlane.f32.xlu0 %v3937
      %v3939 = vpop.xlane.xlu0 %3938
      %v3940 = vsel %vm3873, %v3863, -inf
      %3941 = vmax.xlane.f32.xlu0 %v3940
      %v3942 = vpop.xlane.xlu0 %3941
      %v3943 = vsel %vm3873, %v3864, -inf
      %3944 = vmax.xlane.f32.xlu0 %v3943
      %v3945 = vpop.xlane.xlu0 %3944
      %v3946 = vsel %vm3873, %v3865, -inf
      %3947 = vmax.xlane.f32.xlu0 %v3946
      %v3948 = vpop.xlane.xlu0 %3947
      %v3949 = vsel %vm3873, %v3866, -inf
      %3950 = vmax.xlane.f32.xlu0 %v3949
      %v3951 = vpop.xlane.xlu0 %3950
      %v3952 = vsel %vm3873, %v3867, -inf
      %3953 = vmax.xlane.f32.xlu0 %v3952
      %v3954 = vpop.xlane.xlu0 %3953
      %v3955 = vsel %vm3873, %v3868, -inf
      %3956 = vmax.xlane.f32.xlu0 %v3955
      %v3957 = vpop.xlane.xlu0 %3956
      %v3958 = vsel %vm3873, %v3869, -inf
      %3959 = vmax.xlane.f32.xlu0 %v3958
      %v3960 = vpop.xlane.xlu0 %3959
      %v3961 = vsel %vm3873, %v3870, -inf
      %3962 = vmax.xlane.f32.xlu0 %v3961
      %v3963 = vpop.xlane.xlu0 %3962
      %v3964 = vsel %vm3873, %v3871, -inf
      %3965 = vmax.xlane.f32.xlu0 %v3964
      %v3966 = vpop.xlane.xlu0 %3965
      %v3967 = vsel %vm3873, %v3872, -inf
      %3968 = vmax.xlane.f32.xlu0 %v3967
      %v3969 = vpop.xlane.xlu0 %3968
      %v3970 = vsub.f32 %v3841, %v3876
      %v3971 = vsub.f32 %v3842, %v3879
      %v3972 = vsub.f32 %v3843, %v3882
      %v3973 = vsub.f32 %v3844, %v3885
      %v3974 = vsub.f32 %v3845, %v3888
      %v3975 = vsub.f32 %v3846, %v3891
      %v3976 = vsub.f32 %v3847, %v3894
      %v3977 = vsub.f32 %v3848, %v3897
      %v3978 = vsub.f32 %v3849, %v3900
      %v3979 = vsub.f32 %v3850, %v3903
      %v3980 = vsub.f32 %v3851, %v3906
      %v3981 = vsub.f32 %v3852, %v3909
      %v3982 = vsub.f32 %v3853, %v3912
      %v3983 = vsub.f32 %v3854, %v3915
      %v3984 = vsub.f32 %v3855, %v3918
      %v3985 = vsub.f32 %v3856, %v3921
      %v3986 = vsub.f32 %v3857, %v3924
      %v3987 = vsub.f32 %v3858, %v3927
      %v3988 = vsub.f32 %v3859, %v3930
      %v3989 = vsub.f32 %v3860, %v3933
      %v3990 = vsub.f32 %v3861, %v3936
      %v3991 = vsub.f32 %v3862, %v3939
      %v3992 = vsub.f32 %v3863, %v3942
      %v3993 = vsub.f32 %v3864, %v3945
      %v3994 = vsub.f32 %v3865, %v3948
      %v3995 = vsub.f32 %v3866, %v3951
      %v3996 = vsub.f32 %v3867, %v3954
      %v3997 = vsub.f32 %v3868, %v3957
      %v3998 = vsub.f32 %v3869, %v3960
      %v3999 = vsub.f32 %v3870, %v3963
      %v4000 = vsub.f32 %v3871, %v3966
      %v4001 = vsub.f32 %v3872, %v3969
      %v4002 = vmul.f32 %v3970, 1.442695
      %v4003 = vpow.pop %v4002
      %v4004 = vmul.f32 %v3971, 1.442695
      %v4005 = vpow.pop %v4004
      %v4006 = vmul.f32 %v3972, 1.442695
      %v4007 = vpow.pop %v4006
      %v4008 = vmul.f32 %v3973, 1.442695
      %v4009 = vpow.pop %v4008
      %v4010 = vmul.f32 %v3974, 1.442695
      %v4011 = vpow.pop %v4010
      %v4012 = vmul.f32 %v3975, 1.442695
      %v4013 = vpow.pop %v4012
      %v4014 = vmul.f32 %v3976, 1.442695
      %v4015 = vpow.pop %v4014
      %v4016 = vmul.f32 %v3977, 1.442695
      %v4017 = vpow.pop %v4016
      %v4018 = vmul.f32 %v3978, 1.442695
      %v4019 = vpow.pop %v4018
      %v4020 = vmul.f32 %v3979, 1.442695
      %v4021 = vpow.pop %v4020
      %v4022 = vmul.f32 %v3980, 1.442695
      %v4023 = vpow.pop %v4022
      %v4024 = vmul.f32 %v3981, 1.442695
      %v4025 = vpow.pop %v4024
      %v4026 = vmul.f32 %v3982, 1.442695
      %v4027 = vpow.pop %v4026
      %v4028 = vmul.f32 %v3983, 1.442695
      %v4029 = vpow.pop %v4028
      %v4030 = vmul.f32 %v3984, 1.442695
      %v4031 = vpow.pop %v4030
      %v4032 = vmul.f32 %v3985, 1.442695
      %v4033 = vpow.pop %v4032
      %v4034 = vmul.f32 %v3986, 1.442695
      %v4035 = vpow.pop %v4034
      %v4036 = vmul.f32 %v3987, 1.442695
      %v4037 = vpow.pop %v4036
      %v4038 = vmul.f32 %v3988, 1.442695
      %v4039 = vpow.pop %v4038
      %v4040 = vmul.f32 %v3989, 1.442695
      %v4041 = vpow.pop %v4040
      %v4042 = vmul.f32 %v3990, 1.442695
      %v4043 = vpow.pop %v4042
      %v4044 = vmul.f32 %v3991, 1.442695
      %v4045 = vpow.pop %v4044
      %v4046 = vmul.f32 %v3992, 1.442695
      %v4047 = vpow.pop %v4046
      %v4048 = vmul.f32 %v3993, 1.442695
      %v4049 = vpow.pop %v4048
      %v4050 = vmul.f32 %v3994, 1.442695
      %v4051 = vpow.pop %v4050
      %v4052 = vmul.f32 %v3995, 1.442695
      %v4053 = vpow.pop %v4052
      %v4054 = vmul.f32 %v3996, 1.442695
      %v4055 = vpow.pop %v4054
      %v4056 = vmul.f32 %v3997, 1.442695
      %v4057 = vpow.pop %v4056
      %v4058 = vmul.f32 %v3998, 1.442695
      %v4059 = vpow.pop %v4058
      %v4060 = vmul.f32 %v3999, 1.442695
      %v4061 = vpow.pop %v4060
      %v4062 = vmul.f32 %v4000, 1.442695
      %v4063 = vpow.pop %v4062
      %v4064 = vmul.f32 %v4001, 1.442695
      %v4065 = vpow.pop %v4064
      %v4066 = vmul.f32 %v4003, %v536
      %v4067 = vmul.f32 %v4005, %v536
      %v4068 = vmul.f32 %v4007, %v536
      %v4069 = vmul.f32 %v4009, %v536
      %v4070 = vmul.f32 %v4011, %v537
      %v4071 = vmul.f32 %v4013, %v537
      %v4072 = vmul.f32 %v4015, %v537
      %v4073 = vmul.f32 %v4017, %v537
      %v4074 = vmul.f32 %v4019, %v538
      %v4075 = vmul.f32 %v4021, %v538
      %v4076 = vmul.f32 %v4023, %v538
      %v4077 = vmul.f32 %v4025, %v538
      %v4078 = vmul.f32 %v4027, %v539
      %v4079 = vmul.f32 %v4029, %v539
      %v4080 = vmul.f32 %v4031, %v539
      %v4081 = vmul.f32 %v4033, %v539
      %v4082 = vmul.f32 %v4035, %v540
      %v4083 = vmul.f32 %v4037, %v540
      %v4084 = vmul.f32 %v4039, %v540
      %v4085 = vmul.f32 %v4041, %v540
      %v4086 = vmul.f32 %v4043, %v541
      %v4087 = vmul.f32 %v4045, %v541
      %v4088 = vmul.f32 %v4047, %v541
      %v4089 = vmul.f32 %v4049, %v541
      %v4090 = vmul.f32 %v4051, %v542
      %v4091 = vmul.f32 %v4053, %v542
      %v4092 = vmul.f32 %v4055, %v542
      %v4093 = vmul.f32 %v4057, %v542
      %v4094 = vmul.f32 %v4059, %v543
      %v4095 = vmul.f32 %v4061, %v543
      %v4096 = vmul.f32 %v4063, %v543
      %v4097 = vmul.f32 %v4065, %v543
      %v4098 = vsel %vm3873, %v4066, 0.0
      %4099 = vadd.xlane.f32.xlu0 %v4098
      %v4100 = vpop.xlane.xlu0 %4099
      %v4101 = vsel %vm3873, %v4067, 0.0
      %4102 = vadd.xlane.f32.xlu0 %v4101
      %v4103 = vpop.xlane.xlu0 %4102
      %v4104 = vsel %vm3873, %v4068, 0.0
      %4105 = vadd.xlane.f32.xlu0 %v4104
      %v4106 = vpop.xlane.xlu0 %4105
      %v4107 = vsel %vm3873, %v4069, 0.0
      %4108 = vadd.xlane.f32.xlu0 %v4107
      %v4109 = vpop.xlane.xlu0 %4108
      %v4110 = vsel %vm3873, %v4070, 0.0
      %4111 = vadd.xlane.f32.xlu0 %v4110
      %v4112 = vpop.xlane.xlu0 %4111
      %v4113 = vsel %vm3873, %v4071, 0.0
      %4114 = vadd.xlane.f32.xlu0 %v4113
      %v4115 = vpop.xlane.xlu0 %4114
      %v4116 = vsel %vm3873, %v4072, 0.0
      %4117 = vadd.xlane.f32.xlu0 %v4116
      %v4118 = vpop.xlane.xlu0 %4117
      %v4119 = vsel %vm3873, %v4073, 0.0
      %4120 = vadd.xlane.f32.xlu0 %v4119
      %v4121 = vpop.xlane.xlu0 %4120
      %v4122 = vsel %vm3873, %v4074, 0.0
      %4123 = vadd.xlane.f32.xlu0 %v4122
      %v4124 = vpop.xlane.xlu0 %4123
      %v4125 = vsel %vm3873, %v4075, 0.0
      %4126 = vadd.xlane.f32.xlu0 %v4125
      %v4127 = vpop.xlane.xlu0 %4126
      %v4128 = vsel %vm3873, %v4076, 0.0
      %4129 = vadd.xlane.f32.xlu0 %v4128
      %v4130 = vpop.xlane.xlu0 %4129
      %v4131 = vsel %vm3873, %v4077, 0.0
      %4132 = vadd.xlane.f32.xlu0 %v4131
      %v4133 = vpop.xlane.xlu0 %4132
      %v4134 = vsel %vm3873, %v4078, 0.0
      %4135 = vadd.xlane.f32.xlu0 %v4134
      %v4136 = vpop.xlane.xlu0 %4135
      %v4137 = vsel %vm3873, %v4079, 0.0
      %4138 = vadd.xlane.f32.xlu0 %v4137
      %v4139 = vpop.xlane.xlu0 %4138
      %v4140 = vsel %vm3873, %v4080, 0.0
      %4141 = vadd.xlane.f32.xlu0 %v4140
      %v4142 = vpop.xlane.xlu0 %4141
      %v4143 = vsel %vm3873, %v4081, 0.0
      %4144 = vadd.xlane.f32.xlu0 %v4143
      %v4145 = vpop.xlane.xlu0 %4144
      %v4146 = vsel %vm3873, %v4082, 0.0
      %4147 = vadd.xlane.f32.xlu0 %v4146
      %v4148 = vpop.xlane.xlu0 %4147
      %v4149 = vsel %vm3873, %v4083, 0.0
      %4150 = vadd.xlane.f32.xlu0 %v4149
      %v4151 = vpop.xlane.xlu0 %4150
      %v4152 = vsel %vm3873, %v4084, 0.0
      %4153 = vadd.xlane.f32.xlu0 %v4152
      %v4154 = vpop.xlane.xlu0 %4153
      %v4155 = vsel %vm3873, %v4085, 0.0
      %4156 = vadd.xlane.f32.xlu0 %v4155
      %v4157 = vpop.xlane.xlu0 %4156
      %v4158 = vsel %vm3873, %v4086, 0.0
      %4159 = vadd.xlane.f32.xlu0 %v4158
      %v4160 = vpop.xlane.xlu0 %4159
      %v4161 = vsel %vm3873, %v4087, 0.0
      %4162 = vadd.xlane.f32.xlu0 %v4161
      %v4163 = vpop.xlane.xlu0 %4162
      %v4164 = vsel %vm3873, %v4088, 0.0
      %4165 = vadd.xlane.f32.xlu0 %v4164
      %v4166 = vpop.xlane.xlu0 %4165
      %v4167 = vsel %vm3873, %v4089, 0.0
      %4168 = vadd.xlane.f32.xlu0 %v4167
      %v4169 = vpop.xlane.xlu0 %4168
      %v4170 = vsel %vm3873, %v4090, 0.0
      %4171 = vadd.xlane.f32.xlu0 %v4170
      %v4172 = vpop.xlane.xlu0 %4171
      %v4173 = vsel %vm3873, %v4091, 0.0
      %4174 = vadd.xlane.f32.xlu0 %v4173
      %v4175 = vpop.xlane.xlu0 %4174
      %v4176 = vsel %vm3873, %v4092, 0.0
      %4177 = vadd.xlane.f32.xlu0 %v4176
      %v4178 = vpop.xlane.xlu0 %4177
      %v4179 = vsel %vm3873, %v4093, 0.0
      %4180 = vadd.xlane.f32.xlu0 %v4179
      %v4181 = vpop.xlane.xlu0 %4180
      %v4182 = vsel %vm3873, %v4094, 0.0
      %4183 = vadd.xlane.f32.xlu0 %v4182
      %v4184 = vpop.xlane.xlu0 %4183
      %v4185 = vsel %vm3873, %v4095, 0.0
      %4186 = vadd.xlane.f32.xlu0 %v4185
      %v4187 = vpop.xlane.xlu0 %4186
      %v4188 = vsel %vm3873, %v4096, 0.0
      %4189 = vadd.xlane.f32.xlu0 %v4188
      %v4190 = vpop.xlane.xlu0 %4189
      %v4191 = vsel %vm3873, %v4097, 0.0
      %4192 = vadd.xlane.f32.xlu0 %v4191
      %v4193 = vpop.xlane.xlu0 %4192
      %v4194 = vmax.f32 %v4100, 1e-20
      %v4195 = vmax.f32 %v4103, 1e-20
      %v4196 = vmax.f32 %v4106, 1e-20
      %v4197 = vmax.f32 %v4109, 1e-20
      %v4198 = vmax.f32 %v4112, 1e-20
      %v4199 = vmax.f32 %v4115, 1e-20
      %v4200 = vmax.f32 %v4118, 1e-20
      %v4201 = vmax.f32 %v4121, 1e-20
      %v4202 = vmax.f32 %v4124, 1e-20
      %v4203 = vmax.f32 %v4127, 1e-20
      %v4204 = vmax.f32 %v4130, 1e-20
      %v4205 = vmax.f32 %v4133, 1e-20
      %v4206 = vmax.f32 %v4136, 1e-20
      %v4207 = vmax.f32 %v4139, 1e-20
      %v4208 = vmax.f32 %v4142, 1e-20
      %v4209 = vmax.f32 %v4145, 1e-20
      %v4210 = vmax.f32 %v4148, 1e-20
      %v4211 = vmax.f32 %v4151, 1e-20
      %v4212 = vmax.f32 %v4154, 1e-20
      %v4213 = vmax.f32 %v4157, 1e-20
      %v4214 = vmax.f32 %v4160, 1e-20
      %v4215 = vmax.f32 %v4163, 1e-20
      %v4216 = vmax.f32 %v4166, 1e-20
      %v4217 = vmax.f32 %v4169, 1e-20
      %v4218 = vmax.f32 %v4172, 1e-20
      %v4219 = vmax.f32 %v4175, 1e-20
      %v4220 = vmax.f32 %v4178, 1e-20
      %v4221 = vmax.f32 %v4181, 1e-20
      %v4222 = vmax.f32 %v4184, 1e-20
      %v4223 = vmax.f32 %v4187, 1e-20
      %v4224 = vmax.f32 %v4190, 1e-20
      %v4225 = vmax.f32 %v4193, 1e-20
      %v4226 = vrcp.pop %v4194
      %v4227 = vrcp.pop %v4195
      %v4228 = vrcp.pop %v4196
      %v4229 = vrcp.pop %v4197
      %v4230 = vrcp.pop %v4198
      %v4231 = vrcp.pop %v4199
      %v4232 = vrcp.pop %v4200
      %v4233 = vrcp.pop %v4201
      %v4234 = vrcp.pop %v4202
      %v4235 = vrcp.pop %v4203
      %v4236 = vrcp.pop %v4204
      %v4237 = vrcp.pop %v4205
      %v4238 = vrcp.pop %v4206
      %v4239 = vrcp.pop %v4207
      %v4240 = vrcp.pop %v4208
      %v4241 = vrcp.pop %v4209
      %v4242 = vrcp.pop %v4210
      %v4243 = vrcp.pop %v4211
      %v4244 = vrcp.pop %v4212
      %v4245 = vrcp.pop %v4213
      %v4246 = vrcp.pop %v4214
      %v4247 = vrcp.pop %v4215
      %v4248 = vrcp.pop %v4216
      %v4249 = vrcp.pop %v4217
      %v4250 = vrcp.pop %v4218
      %v4251 = vrcp.pop %v4219
      %v4252 = vrcp.pop %v4220
      %v4253 = vrcp.pop %v4221
      %v4254 = vrcp.pop %v4222
      %v4255 = vrcp.pop %v4223
      %v4256 = vrcp.pop %v4224
      %v4257 = vrcp.pop %v4225
      %v4258 = vmul.f32 %v4194, %v4226
      %v4259 = vmul.f32 %v4195, %v4227
      %v4260 = vmul.f32 %v4196, %v4228
      %v4261 = vmul.f32 %v4197, %v4229
      %v4262 = vmul.f32 %v4198, %v4230
      %v4263 = vmul.f32 %v4199, %v4231
      %v4264 = vmul.f32 %v4200, %v4232
      %v4265 = vmul.f32 %v4201, %v4233
      %v4266 = vmul.f32 %v4202, %v4234
      %v4267 = vmul.f32 %v4203, %v4235
      %v4268 = vmul.f32 %v4204, %v4236
      %v4269 = vmul.f32 %v4205, %v4237
      %v4270 = vmul.f32 %v4206, %v4238
      %v4271 = vmul.f32 %v4207, %v4239
      %v4272 = vmul.f32 %v4208, %v4240
      %v4273 = vmul.f32 %v4209, %v4241
      %v4274 = vmul.f32 %v4210, %v4242
      %v4275 = vmul.f32 %v4211, %v4243
      %v4276 = vmul.f32 %v4212, %v4244
      %v4277 = vmul.f32 %v4213, %v4245
      %v4278 = vmul.f32 %v4214, %v4246
      %v4279 = vmul.f32 %v4215, %v4247
      %v4280 = vmul.f32 %v4216, %v4248
      %v4281 = vmul.f32 %v4217, %v4249
      %v4282 = vmul.f32 %v4218, %v4250
      %v4283 = vmul.f32 %v4219, %v4251
      %v4284 = vmul.f32 %v4220, %v4252
      %v4285 = vmul.f32 %v4221, %v4253
      %v4286 = vmul.f32 %v4222, %v4254
      %v4287 = vmul.f32 %v4223, %v4255
      %v4288 = vmul.f32 %v4224, %v4256
      %v4289 = vmul.f32 %v4225, %v4257
      %v4290 = vsub.f32 2.0, %v4258
      %v4291 = vsub.f32 2.0, %v4259
      %v4292 = vsub.f32 2.0, %v4260
      %v4293 = vsub.f32 2.0, %v4261
      %v4294 = vsub.f32 2.0, %v4262
      %v4295 = vsub.f32 2.0, %v4263
      %v4296 = vsub.f32 2.0, %v4264
      %v4297 = vsub.f32 2.0, %v4265
      %v4298 = vsub.f32 2.0, %v4266
      %v4299 = vsub.f32 2.0, %v4267
      %v4300 = vsub.f32 2.0, %v4268
      %v4301 = vsub.f32 2.0, %v4269
      %v4302 = vsub.f32 2.0, %v4270
      %v4303 = vsub.f32 2.0, %v4271
      %v4304 = vsub.f32 2.0, %v4272
      %v4305 = vsub.f32 2.0, %v4273
      %v4306 = vsub.f32 2.0, %v4274
      %v4307 = vsub.f32 2.0, %v4275
      %v4308 = vsub.f32 2.0, %v4276
      %v4309 = vsub.f32 2.0, %v4277
      %v4310 = vsub.f32 2.0, %v4278
      %v4311 = vsub.f32 2.0, %v4279
      %v4312 = vsub.f32 2.0, %v4280
      %v4313 = vsub.f32 2.0, %v4281
      %v4314 = vsub.f32 2.0, %v4282
      %v4315 = vsub.f32 2.0, %v4283
      %v4316 = vsub.f32 2.0, %v4284
      %v4317 = vsub.f32 2.0, %v4285
      %v4318 = vsub.f32 2.0, %v4286
      %v4319 = vsub.f32 2.0, %v4287
      %v4320 = vsub.f32 2.0, %v4288
      %v4321 = vsub.f32 2.0, %v4289
      %v4322 = vmul.f32 %v4226, %v4290
      %v4323 = vmul.f32 %v4227, %v4291
      %v4324 = vmul.f32 %v4228, %v4292
      %v4325 = vmul.f32 %v4229, %v4293
      %v4326 = vmul.f32 %v4230, %v4294
      %v4327 = vmul.f32 %v4231, %v4295
      %v4328 = vmul.f32 %v4232, %v4296
      %v4329 = vmul.f32 %v4233, %v4297
      %v4330 = vmul.f32 %v4234, %v4298
      %v4331 = vmul.f32 %v4235, %v4299
      %v4332 = vmul.f32 %v4236, %v4300
      %v4333 = vmul.f32 %v4237, %v4301
      %v4334 = vmul.f32 %v4238, %v4302
      %v4335 = vmul.f32 %v4239, %v4303
      %v4336 = vmul.f32 %v4240, %v4304
      %v4337 = vmul.f32 %v4241, %v4305
      %v4338 = vmul.f32 %v4242, %v4306
      %v4339 = vmul.f32 %v4243, %v4307
      %v4340 = vmul.f32 %v4244, %v4308
      %v4341 = vmul.f32 %v4245, %v4309
      %v4342 = vmul.f32 %v4246, %v4310
      %v4343 = vmul.f32 %v4247, %v4311
      %v4344 = vmul.f32 %v4248, %v4312
      %v4345 = vmul.f32 %v4249, %v4313
      %v4346 = vmul.f32 %v4250, %v4314
      %v4347 = vmul.f32 %v4251, %v4315
      %v4348 = vmul.f32 %v4252, %v4316
      %v4349 = vmul.f32 %v4253, %v4317
      %v4350 = vmul.f32 %v4254, %v4318
      %v4351 = vmul.f32 %v4255, %v4319
      %v4352 = vmul.f32 %v4256, %v4320
      %v4353 = vmul.f32 %v4257, %v4321
      %v4354 = vmul.f32 %v4066, %v4322
      %v4355 = vmul.f32 %v4067, %v4323
      %v4356 = vmul.f32 %v4068, %v4324
      %v4357 = vmul.f32 %v4069, %v4325
      %v4358 = vmul.f32 %v4070, %v4326
      %v4359 = vmul.f32 %v4071, %v4327
      %v4360 = vmul.f32 %v4072, %v4328
      %v4361 = vmul.f32 %v4073, %v4329
      %v4362 = vmul.f32 %v4074, %v4330
      %v4363 = vmul.f32 %v4075, %v4331
      %v4364 = vmul.f32 %v4076, %v4332
      %v4365 = vmul.f32 %v4077, %v4333
      %v4366 = vmul.f32 %v4078, %v4334
      %v4367 = vmul.f32 %v4079, %v4335
      %v4368 = vmul.f32 %v4080, %v4336
      %v4369 = vmul.f32 %v4081, %v4337
      %v4370 = vmul.f32 %v4082, %v4338
      %v4371 = vmul.f32 %v4083, %v4339
      %v4372 = vmul.f32 %v4084, %v4340
      %v4373 = vmul.f32 %v4085, %v4341
      %v4374 = vmul.f32 %v4086, %v4342
      %v4375 = vmul.f32 %v4087, %v4343
      %v4376 = vmul.f32 %v4088, %v4344
      %v4377 = vmul.f32 %v4089, %v4345
      %v4378 = vmul.f32 %v4090, %v4346
      %v4379 = vmul.f32 %v4091, %v4347
      %v4380 = vmul.f32 %v4092, %v4348
      %v4381 = vmul.f32 %v4093, %v4349
      %v4382 = vmul.f32 %v4094, %v4350
      %v4383 = vmul.f32 %v4095, %v4351
      %v4384 = vmul.f32 %v4096, %v4352
      %v4385 = vmul.f32 %v4097, %v4353
      %4387 = vrot.lane.b32.xlu0 %v472, 96
      %v4388 = vpop.permute.xlu0 %4387
      %v4391 = vsel %vm3873, %v4355, 0
      %4393 = vmatpush.msra.mxu0 0.0
      %4394 = vmatpush.msra.mxu0 0.0
      %4395 = vmatpush.msra.mxu0 0.0
      %4396 = vmatpush.msra.mxu0 0.0
      %4397 = vmatpush.msra.mxu0 0.0
      %4398 = vmatpush.msra.mxu0 0.0
      %4399 = vmatpush.msra.mxu0 0.0
      %4400 = vmatpush.msra.mxu0 0.0
      %4401 = vmatpush.msra.mxu0 0.0
      %4402 = vmatpush.msra.mxu0 0.0
      %4403 = vmatpush.msra.mxu0 0.0
      %4404 = vmatpush.msra.mxu0 0.0
      %4405 = vmatpush.msra.mxu0 0.0
      %4406 = vmatpush.msra.mxu0 0.0
      %4407 = vmatpush.msra.mxu0 0.0
      %4408 = vmatpush.msra.mxu0 %v4388
      %4409 = vmatmul.f32.gmra.mxu0 %v4391
      %v4410 = vpop.f32.mrf.mxu0
      %v4411 = vadd.f32 0.0, %v4410
      %4412 = vdwg.mxu0
      %4414 = vrot.lane.b32.xlu0 %v475, 96
      %v4415 = vpop.permute.xlu0 %4414
      %v4418 = vsel %vm3873, %v4359, 0
      %4420 = vmatpush.msra.mxu0 0.0
      %4421 = vmatpush.msra.mxu0 0.0
      %4422 = vmatpush.msra.mxu0 0.0
      %4423 = vmatpush.msra.mxu0 0.0
      %4424 = vmatpush.msra.mxu0 0.0
      %4425 = vmatpush.msra.mxu0 0.0
      %4426 = vmatpush.msra.mxu0 0.0
      %4427 = vmatpush.msra.mxu0 0.0
      %4428 = vmatpush.msra.mxu0 0.0
      %4429 = vmatpush.msra.mxu0 0.0
      %4430 = vmatpush.msra.mxu0 0.0
      %4431 = vmatpush.msra.mxu0 0.0
      %4432 = vmatpush.msra.mxu0 0.0
      %4433 = vmatpush.msra.mxu0 0.0
      %4434 = vmatpush.msra.mxu0 0.0
      %4435 = vmatpush.msra.mxu0 %v4415
      %4436 = vmatmul.f32.gmra.mxu0 %v4418
      %v4437 = vpop.f32.mrf.mxu0
      %v4438 = vadd.f32 0.0, %v4437
      %4439 = vdwg.mxu0
      %4441 = vrot.lane.b32.xlu0 %v478, 96
      %v4442 = vpop.permute.xlu0 %4441
      %v4445 = vsel %vm3873, %v4363, 0
      %4447 = vmatpush.msra.mxu0 0.0
      %4448 = vmatpush.msra.mxu0 0.0
      %4449 = vmatpush.msra.mxu0 0.0
      %4450 = vmatpush.msra.mxu0 0.0
      %4451 = vmatpush.msra.mxu0 0.0
      %4452 = vmatpush.msra.mxu0 0.0
      %4453 = vmatpush.msra.mxu0 0.0
      %4454 = vmatpush.msra.mxu0 0.0
      %4455 = vmatpush.msra.mxu0 0.0
      %4456 = vmatpush.msra.mxu0 0.0
      %4457 = vmatpush.msra.mxu0 0.0
      %4458 = vmatpush.msra.mxu0 0.0
      %4459 = vmatpush.msra.mxu0 0.0
      %4460 = vmatpush.msra.mxu0 0.0
      %4461 = vmatpush.msra.mxu0 0.0
      %4462 = vmatpush.msra.mxu0 %v4442
      %4463 = vmatmul.f32.gmra.mxu0 %v4445
      %v4464 = vpop.f32.mrf.mxu0
      %v4465 = vadd.f32 0.0, %v4464
      %4466 = vdwg.mxu0
      %4468 = vrot.lane.b32.xlu0 %v481, 96
      %v4469 = vpop.permute.xlu0 %4468
      %v4472 = vsel %vm3873, %v4367, 0
      %4474 = vmatpush.msra.mxu0 0.0
      %4475 = vmatpush.msra.mxu0 0.0
      %4476 = vmatpush.msra.mxu0 0.0
      %4477 = vmatpush.msra.mxu0 0.0
      %4478 = vmatpush.msra.mxu0 0.0
      %4479 = vmatpush.msra.mxu0 0.0
      %4480 = vmatpush.msra.mxu0 0.0
      %4481 = vmatpush.msra.mxu0 0.0
      %4482 = vmatpush.msra.mxu0 0.0
      %4483 = vmatpush.msra.mxu0 0.0
      %4484 = vmatpush.msra.mxu0 0.0
      %4485 = vmatpush.msra.mxu0 0.0
      %4486 = vmatpush.msra.mxu0 0.0
      %4487 = vmatpush.msra.mxu0 0.0
      %4488 = vmatpush.msra.mxu0 0.0
      %4489 = vmatpush.msra.mxu0 %v4469
      %4490 = vmatmul.f32.gmra.mxu0 %v4472
      %v4491 = vpop.f32.mrf.mxu0
      %v4492 = vadd.f32 0.0, %v4491
      %4493 = vdwg.mxu0
      %4495 = vrot.lane.b32.xlu0 %v484, 96
      %v4496 = vpop.permute.xlu0 %4495
      %v4499 = vsel %vm3873, %v4371, 0
      %4501 = vmatpush.msra.mxu0 0.0
      %4502 = vmatpush.msra.mxu0 0.0
      %4503 = vmatpush.msra.mxu0 0.0
      %4504 = vmatpush.msra.mxu0 0.0
      %4505 = vmatpush.msra.mxu0 0.0
      %4506 = vmatpush.msra.mxu0 0.0
      %4507 = vmatpush.msra.mxu0 0.0
      %4508 = vmatpush.msra.mxu0 0.0
      %4509 = vmatpush.msra.mxu0 0.0
      %4510 = vmatpush.msra.mxu0 0.0
      %4511 = vmatpush.msra.mxu0 0.0
      %4512 = vmatpush.msra.mxu0 0.0
      %4513 = vmatpush.msra.mxu0 0.0
      %4514 = vmatpush.msra.mxu0 0.0
      %4515 = vmatpush.msra.mxu0 0.0
      %4516 = vmatpush.msra.mxu0 %v4496
      %4517 = vmatmul.f32.gmra.mxu0 %v4499
      %v4518 = vpop.f32.mrf.mxu0
      %v4519 = vadd.f32 0.0, %v4518
      %4520 = vdwg.mxu0
      %4522 = vrot.lane.b32.xlu0 %v487, 96
      %v4523 = vpop.permute.xlu0 %4522
      %v4526 = vsel %vm3873, %v4375, 0
      %4528 = vmatpush.msra.mxu0 0.0
      %4529 = vmatpush.msra.mxu0 0.0
      %4530 = vmatpush.msra.mxu0 0.0
      %4531 = vmatpush.msra.mxu0 0.0
      %4532 = vmatpush.msra.mxu0 0.0
      %4533 = vmatpush.msra.mxu0 0.0
      %4534 = vmatpush.msra.mxu0 0.0
      %4535 = vmatpush.msra.mxu0 0.0
      %4536 = vmatpush.msra.mxu0 0.0
      %4537 = vmatpush.msra.mxu0 0.0
      %4538 = vmatpush.msra.mxu0 0.0
      %4539 = vmatpush.msra.mxu0 0.0
      %4540 = vmatpush.msra.mxu0 0.0
      %4541 = vmatpush.msra.mxu0 0.0
      %4542 = vmatpush.msra.mxu0 0.0
      %4543 = vmatpush.msra.mxu0 %v4523
      %4544 = vmatmul.f32.gmra.mxu0 %v4526
      %v4545 = vpop.f32.mrf.mxu0
      %v4546 = vadd.f32 0.0, %v4545
      %4547 = vdwg.mxu0
      %4549 = vrot.lane.b32.xlu0 %v490, 96
      %v4550 = vpop.permute.xlu0 %4549
      %v4553 = vsel %vm3873, %v4379, 0
      %4555 = vmatpush.msra.mxu0 0.0
      %4556 = vmatpush.msra.mxu0 0.0
      %4557 = vmatpush.msra.mxu0 0.0
      %4558 = vmatpush.msra.mxu0 0.0
      %4559 = vmatpush.msra.mxu0 0.0
      %4560 = vmatpush.msra.mxu0 0.0
      %4561 = vmatpush.msra.mxu0 0.0
      %4562 = vmatpush.msra.mxu0 0.0
      %4563 = vmatpush.msra.mxu0 0.0
      %4564 = vmatpush.msra.mxu0 0.0
      %4565 = vmatpush.msra.mxu0 0.0
      %4566 = vmatpush.msra.mxu0 0.0
      %4567 = vmatpush.msra.mxu0 0.0
      %4568 = vmatpush.msra.mxu0 0.0
      %4569 = vmatpush.msra.mxu0 0.0
      %4570 = vmatpush.msra.mxu0 %v4550
      %4571 = vmatmul.f32.gmra.mxu0 %v4553
      %v4572 = vpop.f32.mrf.mxu0
      %v4573 = vadd.f32 0.0, %v4572
      %4574 = vdwg.mxu0
      %4576 = vrot.lane.b32.xlu0 %v493, 96
      %v4577 = vpop.permute.xlu0 %4576
      %v4580 = vsel %vm3873, %v4383, 0
      %4582 = vmatpush.msra.mxu0 0.0
      %4583 = vmatpush.msra.mxu0 0.0
      %4584 = vmatpush.msra.mxu0 0.0
      %4585 = vmatpush.msra.mxu0 0.0
      %4586 = vmatpush.msra.mxu0 0.0
      %4587 = vmatpush.msra.mxu0 0.0
      %4588 = vmatpush.msra.mxu0 0.0
      %4589 = vmatpush.msra.mxu0 0.0
      %4590 = vmatpush.msra.mxu0 0.0
      %4591 = vmatpush.msra.mxu0 0.0
      %4592 = vmatpush.msra.mxu0 0.0
      %4593 = vmatpush.msra.mxu0 0.0
      %4594 = vmatpush.msra.mxu0 0.0
      %4595 = vmatpush.msra.mxu0 0.0
      %4596 = vmatpush.msra.mxu0 0.0
      %4597 = vmatpush.msra.mxu0 %v4577
      %4598 = vmatmul.f32.gmra.mxu0 %v4580
      %v4599 = vpop.f32.mrf.mxu0
      %v4600 = vadd.f32 0.0, %v4599
      %4601 = vdwg.mxu0
      %v4603 = vsel %vm3873, %v4354, 0
      %4605 = vmatpush.msra.mxu0 0.0
      %4606 = vmatpush.msra.mxu0 0.0
      %4607 = vmatpush.msra.mxu0 0.0
      %4608 = vmatpush.msra.mxu0 0.0
      %4609 = vmatpush.msra.mxu0 0.0
      %4610 = vmatpush.msra.mxu0 0.0
      %4611 = vmatpush.msra.mxu0 0.0
      %4612 = vmatpush.msra.mxu0 0.0
      %4613 = vmatpush.msra.mxu0 0.0
      %4614 = vmatpush.msra.mxu0 0.0
      %4615 = vmatpush.msra.mxu0 0.0
      %4616 = vmatpush.msra.mxu0 0.0
      %4617 = vmatpush.msra.mxu0 0.0
      %4618 = vmatpush.msra.mxu0 0.0
      %4619 = vmatpush.msra.mxu0 0.0
      %4620 = vmatpush.msra.mxu0 %v472
      %4621 = vmatmul.f32.gmra.mxu0 %v4603
      %v4622 = vpop.f32.mrf.mxu0
      %v4623 = vadd.f32 %v4411, %v4622
      %4624 = vdwg.mxu0
      %v4626 = vsel %vm3873, %v4358, 0
      %4628 = vmatpush.msra.mxu0 0.0
      %4629 = vmatpush.msra.mxu0 0.0
      %4630 = vmatpush.msra.mxu0 0.0
      %4631 = vmatpush.msra.mxu0 0.0
      %4632 = vmatpush.msra.mxu0 0.0
      %4633 = vmatpush.msra.mxu0 0.0
      %4634 = vmatpush.msra.mxu0 0.0
      %4635 = vmatpush.msra.mxu0 0.0
      %4636 = vmatpush.msra.mxu0 0.0
      %4637 = vmatpush.msra.mxu0 0.0
      %4638 = vmatpush.msra.mxu0 0.0
      %4639 = vmatpush.msra.mxu0 0.0
      %4640 = vmatpush.msra.mxu0 0.0
      %4641 = vmatpush.msra.mxu0 0.0
      %4642 = vmatpush.msra.mxu0 0.0
      %4643 = vmatpush.msra.mxu0 %v475
      %4644 = vmatmul.f32.gmra.mxu0 %v4626
      %v4645 = vpop.f32.mrf.mxu0
      %v4646 = vadd.f32 %v4438, %v4645
      %4647 = vdwg.mxu0
      %v4649 = vsel %vm3873, %v4362, 0
      %4651 = vmatpush.msra.mxu0 0.0
      %4652 = vmatpush.msra.mxu0 0.0
      %4653 = vmatpush.msra.mxu0 0.0
      %4654 = vmatpush.msra.mxu0 0.0
      %4655 = vmatpush.msra.mxu0 0.0
      %4656 = vmatpush.msra.mxu0 0.0
      %4657 = vmatpush.msra.mxu0 0.0
      %4658 = vmatpush.msra.mxu0 0.0
      %4659 = vmatpush.msra.mxu0 0.0
      %4660 = vmatpush.msra.mxu0 0.0
      %4661 = vmatpush.msra.mxu0 0.0
      %4662 = vmatpush.msra.mxu0 0.0
      %4663 = vmatpush.msra.mxu0 0.0
      %4664 = vmatpush.msra.mxu0 0.0
      %4665 = vmatpush.msra.mxu0 0.0
      %4666 = vmatpush.msra.mxu0 %v478
      %4667 = vmatmul.f32.gmra.mxu0 %v4649
      %v4668 = vpop.f32.mrf.mxu0
      %v4669 = vadd.f32 %v4465, %v4668
      %4670 = vdwg.mxu0
      %v4672 = vsel %vm3873, %v4366, 0
      %4674 = vmatpush.msra.mxu0 0.0
      %4675 = vmatpush.msra.mxu0 0.0
      %4676 = vmatpush.msra.mxu0 0.0
      %4677 = vmatpush.msra.mxu0 0.0
      %4678 = vmatpush.msra.mxu0 0.0
      %4679 = vmatpush.msra.mxu0 0.0
      %4680 = vmatpush.msra.mxu0 0.0
      %4681 = vmatpush.msra.mxu0 0.0
      %4682 = vmatpush.msra.mxu0 0.0
      %4683 = vmatpush.msra.mxu0 0.0
      %4684 = vmatpush.msra.mxu0 0.0
      %4685 = vmatpush.msra.mxu0 0.0
      %4686 = vmatpush.msra.mxu0 0.0
      %4687 = vmatpush.msra.mxu0 0.0
      %4688 = vmatpush.msra.mxu0 0.0
      %4689 = vmatpush.msra.mxu0 %v481
      %4690 = vmatmul.f32.gmra.mxu0 %v4672
      %v4691 = vpop.f32.mrf.mxu0
      %v4692 = vadd.f32 %v4492, %v4691
      %4693 = vdwg.mxu0
      %v4695 = vsel %vm3873, %v4370, 0
      %4697 = vmatpush.msra.mxu0 0.0
      %4698 = vmatpush.msra.mxu0 0.0
      %4699 = vmatpush.msra.mxu0 0.0
      %4700 = vmatpush.msra.mxu0 0.0
      %4701 = vmatpush.msra.mxu0 0.0
      %4702 = vmatpush.msra.mxu0 0.0
      %4703 = vmatpush.msra.mxu0 0.0
      %4704 = vmatpush.msra.mxu0 0.0
      %4705 = vmatpush.msra.mxu0 0.0
      %4706 = vmatpush.msra.mxu0 0.0
      %4707 = vmatpush.msra.mxu0 0.0
      %4708 = vmatpush.msra.mxu0 0.0
      %4709 = vmatpush.msra.mxu0 0.0
      %4710 = vmatpush.msra.mxu0 0.0
      %4711 = vmatpush.msra.mxu0 0.0
      %4712 = vmatpush.msra.mxu0 %v484
      %4713 = vmatmul.f32.gmra.mxu0 %v4695
      %v4714 = vpop.f32.mrf.mxu0
      %v4715 = vadd.f32 %v4519, %v4714
      %4716 = vdwg.mxu0
      %v4718 = vsel %vm3873, %v4374, 0
      %4720 = vmatpush.msra.mxu0 0.0
      %4721 = vmatpush.msra.mxu0 0.0
      %4722 = vmatpush.msra.mxu0 0.0
      %4723 = vmatpush.msra.mxu0 0.0
      %4724 = vmatpush.msra.mxu0 0.0
      %4725 = vmatpush.msra.mxu0 0.0
      %4726 = vmatpush.msra.mxu0 0.0
      %4727 = vmatpush.msra.mxu0 0.0
      %4728 = vmatpush.msra.mxu0 0.0
      %4729 = vmatpush.msra.mxu0 0.0
      %4730 = vmatpush.msra.mxu0 0.0
      %4731 = vmatpush.msra.mxu0 0.0
      %4732 = vmatpush.msra.mxu0 0.0
      %4733 = vmatpush.msra.mxu0 0.0
      %4734 = vmatpush.msra.mxu0 0.0
      %4735 = vmatpush.msra.mxu0 %v487
      %4736 = vmatmul.f32.gmra.mxu0 %v4718
      %v4737 = vpop.f32.mrf.mxu0
      %v4738 = vadd.f32 %v4546, %v4737
      %4739 = vdwg.mxu0
      %v4741 = vsel %vm3873, %v4378, 0
      %4743 = vmatpush.msra.mxu0 0.0
      %4744 = vmatpush.msra.mxu0 0.0
      %4745 = vmatpush.msra.mxu0 0.0
      %4746 = vmatpush.msra.mxu0 0.0
      %4747 = vmatpush.msra.mxu0 0.0
      %4748 = vmatpush.msra.mxu0 0.0
      %4749 = vmatpush.msra.mxu0 0.0
      %4750 = vmatpush.msra.mxu0 0.0
      %4751 = vmatpush.msra.mxu0 0.0
      %4752 = vmatpush.msra.mxu0 0.0
      %4753 = vmatpush.msra.mxu0 0.0
      %4754 = vmatpush.msra.mxu0 0.0
      %4755 = vmatpush.msra.mxu0 0.0
      %4756 = vmatpush.msra.mxu0 0.0
      %4757 = vmatpush.msra.mxu0 0.0
      %4758 = vmatpush.msra.mxu0 %v490
      %4759 = vmatmul.f32.gmra.mxu0 %v4741
      %v4760 = vpop.f32.mrf.mxu0
      %v4761 = vadd.f32 %v4573, %v4760
      %4762 = vdwg.mxu0
      %v4764 = vsel %vm3873, %v4382, 0
      %4766 = vmatpush.msra.mxu0 0.0
      %4767 = vmatpush.msra.mxu0 0.0
      %4768 = vmatpush.msra.mxu0 0.0
      %4769 = vmatpush.msra.mxu0 0.0
      %4770 = vmatpush.msra.mxu0 0.0
      %4771 = vmatpush.msra.mxu0 0.0
      %4772 = vmatpush.msra.mxu0 0.0
      %4773 = vmatpush.msra.mxu0 0.0
      %4774 = vmatpush.msra.mxu0 0.0
      %4775 = vmatpush.msra.mxu0 0.0
      %4776 = vmatpush.msra.mxu0 0.0
      %4777 = vmatpush.msra.mxu0 0.0
      %4778 = vmatpush.msra.mxu0 0.0
      %4779 = vmatpush.msra.mxu0 0.0
      %4780 = vmatpush.msra.mxu0 0.0
      %4781 = vmatpush.msra.mxu0 %v493
      %4782 = vmatmul.f32.gmra.mxu0 %v4764
      %v4783 = vpop.f32.mrf.mxu0
      %v4784 = vadd.f32 %v4600, %v4783
      %4785 = vdwg.mxu0
      %v4786 = vmul.f32 %v4623, 0.5
      %v4787 = vmul.f32 %v4646, 0.5
      %v4788 = vmul.f32 %v4669, 0.5
      %v4789 = vmul.f32 %v4692, 0.5
      %v4790 = vmul.f32 %v4715, 0.5
      %v4791 = vmul.f32 %v4738, 0.5
      %v4792 = vmul.f32 %v4761, 0.5
      %v4793 = vmul.f32 %v4784, 0.5
      %4794 = vrot.lane.b32.xlu0 %v472, 32
      %v4795 = vpop.permute.xlu0 %4794
      %v4798 = vsel %vm3873, %v4357, 0
      %4800 = vmatpush.msra.mxu0 0.0
      %4801 = vmatpush.msra.mxu0 0.0
      %4802 = vmatpush.msra.mxu0 0.0
      %4803 = vmatpush.msra.mxu0 0.0
      %4804 = vmatpush.msra.mxu0 0.0
      %4805 = vmatpush.msra.mxu0 0.0
      %4806 = vmatpush.msra.mxu0 0.0
      %4807 = vmatpush.msra.mxu0 0.0
      %4808 = vmatpush.msra.mxu0 0.0
      %4809 = vmatpush.msra.mxu0 0.0
      %4810 = vmatpush.msra.mxu0 0.0
      %4811 = vmatpush.msra.mxu0 0.0
      %4812 = vmatpush.msra.mxu0 0.0
      %4813 = vmatpush.msra.mxu0 0.0
      %4814 = vmatpush.msra.mxu0 0.0
      %4815 = vmatpush.msra.mxu0 %v4795
      %4816 = vmatmul.f32.gmra.mxu0 %v4798
      %v4817 = vpop.f32.mrf.mxu0
      %v4818 = vadd.f32 0.0, %v4817
      %4819 = vdwg.mxu0
      %4820 = vrot.lane.b32.xlu0 %v475, 32
      %v4821 = vpop.permute.xlu0 %4820
      %v4824 = vsel %vm3873, %v4361, 0
      %4826 = vmatpush.msra.mxu0 0.0
      %4827 = vmatpush.msra.mxu0 0.0
      %4828 = vmatpush.msra.mxu0 0.0
      %4829 = vmatpush.msra.mxu0 0.0
      %4830 = vmatpush.msra.mxu0 0.0
      %4831 = vmatpush.msra.mxu0 0.0
      %4832 = vmatpush.msra.mxu0 0.0
      %4833 = vmatpush.msra.mxu0 0.0
      %4834 = vmatpush.msra.mxu0 0.0
      %4835 = vmatpush.msra.mxu0 0.0
      %4836 = vmatpush.msra.mxu0 0.0
      %4837 = vmatpush.msra.mxu0 0.0
      %4838 = vmatpush.msra.mxu0 0.0
      %4839 = vmatpush.msra.mxu0 0.0
      %4840 = vmatpush.msra.mxu0 0.0
      %4841 = vmatpush.msra.mxu0 %v4821
      %4842 = vmatmul.f32.gmra.mxu0 %v4824
      %v4843 = vpop.f32.mrf.mxu0
      %v4844 = vadd.f32 0.0, %v4843
      %4845 = vdwg.mxu0
      %4846 = vrot.lane.b32.xlu0 %v478, 32
      %v4847 = vpop.permute.xlu0 %4846
      %v4850 = vsel %vm3873, %v4365, 0
      %4852 = vmatpush.msra.mxu0 0.0
      %4853 = vmatpush.msra.mxu0 0.0
      %4854 = vmatpush.msra.mxu0 0.0
      %4855 = vmatpush.msra.mxu0 0.0
      %4856 = vmatpush.msra.mxu0 0.0
      %4857 = vmatpush.msra.mxu0 0.0
      %4858 = vmatpush.msra.mxu0 0.0
      %4859 = vmatpush.msra.mxu0 0.0
      %4860 = vmatpush.msra.mxu0 0.0
      %4861 = vmatpush.msra.mxu0 0.0
      %4862 = vmatpush.msra.mxu0 0.0
      %4863 = vmatpush.msra.mxu0 0.0
      %4864 = vmatpush.msra.mxu0 0.0
      %4865 = vmatpush.msra.mxu0 0.0
      %4866 = vmatpush.msra.mxu0 0.0
      %4867 = vmatpush.msra.mxu0 %v4847
      %4868 = vmatmul.f32.gmra.mxu0 %v4850
      %v4869 = vpop.f32.mrf.mxu0
      %v4870 = vadd.f32 0.0, %v4869
      %4871 = vdwg.mxu0
      %4872 = vrot.lane.b32.xlu0 %v481, 32
      %v4873 = vpop.permute.xlu0 %4872
      %v4876 = vsel %vm3873, %v4369, 0
      %4878 = vmatpush.msra.mxu0 0.0
      %4879 = vmatpush.msra.mxu0 0.0
      %4880 = vmatpush.msra.mxu0 0.0
      %4881 = vmatpush.msra.mxu0 0.0
      %4882 = vmatpush.msra.mxu0 0.0
      %4883 = vmatpush.msra.mxu0 0.0
      %4884 = vmatpush.msra.mxu0 0.0
      %4885 = vmatpush.msra.mxu0 0.0
      %4886 = vmatpush.msra.mxu0 0.0
      %4887 = vmatpush.msra.mxu0 0.0
      %4888 = vmatpush.msra.mxu0 0.0
      %4889 = vmatpush.msra.mxu0 0.0
      %4890 = vmatpush.msra.mxu0 0.0
      %4891 = vmatpush.msra.mxu0 0.0
      %4892 = vmatpush.msra.mxu0 0.0
      %4893 = vmatpush.msra.mxu0 %v4873
      %4894 = vmatmul.f32.gmra.mxu0 %v4876
      %v4895 = vpop.f32.mrf.mxu0
      %v4896 = vadd.f32 0.0, %v4895
      %4897 = vdwg.mxu0
      %4898 = vrot.lane.b32.xlu0 %v484, 32
      %v4899 = vpop.permute.xlu0 %4898
      %v4902 = vsel %vm3873, %v4373, 0
      %4904 = vmatpush.msra.mxu0 0.0
      %4905 = vmatpush.msra.mxu0 0.0
      %4906 = vmatpush.msra.mxu0 0.0
      %4907 = vmatpush.msra.mxu0 0.0
      %4908 = vmatpush.msra.mxu0 0.0
      %4909 = vmatpush.msra.mxu0 0.0
      %4910 = vmatpush.msra.mxu0 0.0
      %4911 = vmatpush.msra.mxu0 0.0
      %4912 = vmatpush.msra.mxu0 0.0
      %4913 = vmatpush.msra.mxu0 0.0
      %4914 = vmatpush.msra.mxu0 0.0
      %4915 = vmatpush.msra.mxu0 0.0
      %4916 = vmatpush.msra.mxu0 0.0
      %4917 = vmatpush.msra.mxu0 0.0
      %4918 = vmatpush.msra.mxu0 0.0
      %4919 = vmatpush.msra.mxu0 %v4899
      %4920 = vmatmul.f32.gmra.mxu0 %v4902
      %v4921 = vpop.f32.mrf.mxu0
      %v4922 = vadd.f32 0.0, %v4921
      %4923 = vdwg.mxu0
      %4924 = vrot.lane.b32.xlu0 %v487, 32
      %v4925 = vpop.permute.xlu0 %4924
      %v4928 = vsel %vm3873, %v4377, 0
      %4930 = vmatpush.msra.mxu0 0.0
      %4931 = vmatpush.msra.mxu0 0.0
      %4932 = vmatpush.msra.mxu0 0.0
      %4933 = vmatpush.msra.mxu0 0.0
      %4934 = vmatpush.msra.mxu0 0.0
      %4935 = vmatpush.msra.mxu0 0.0
      %4936 = vmatpush.msra.mxu0 0.0
      %4937 = vmatpush.msra.mxu0 0.0
      %4938 = vmatpush.msra.mxu0 0.0
      %4939 = vmatpush.msra.mxu0 0.0
      %4940 = vmatpush.msra.mxu0 0.0
      %4941 = vmatpush.msra.mxu0 0.0
      %4942 = vmatpush.msra.mxu0 0.0
      %4943 = vmatpush.msra.mxu0 0.0
      %4944 = vmatpush.msra.mxu0 0.0
      %4945 = vmatpush.msra.mxu0 %v4925
      %4946 = vmatmul.f32.gmra.mxu0 %v4928
      %v4947 = vpop.f32.mrf.mxu0
      %v4948 = vadd.f32 0.0, %v4947
      %4949 = vdwg.mxu0
      %4950 = vrot.lane.b32.xlu0 %v490, 32
      %v4951 = vpop.permute.xlu0 %4950
      %v4954 = vsel %vm3873, %v4381, 0
      %4956 = vmatpush.msra.mxu0 0.0
      %4957 = vmatpush.msra.mxu0 0.0
      %4958 = vmatpush.msra.mxu0 0.0
      %4959 = vmatpush.msra.mxu0 0.0
      %4960 = vmatpush.msra.mxu0 0.0
      %4961 = vmatpush.msra.mxu0 0.0
      %4962 = vmatpush.msra.mxu0 0.0
      %4963 = vmatpush.msra.mxu0 0.0
      %4964 = vmatpush.msra.mxu0 0.0
      %4965 = vmatpush.msra.mxu0 0.0
      %4966 = vmatpush.msra.mxu0 0.0
      %4967 = vmatpush.msra.mxu0 0.0
      %4968 = vmatpush.msra.mxu0 0.0
      %4969 = vmatpush.msra.mxu0 0.0
      %4970 = vmatpush.msra.mxu0 0.0
      %4971 = vmatpush.msra.mxu0 %v4951
      %4972 = vmatmul.f32.gmra.mxu0 %v4954
      %v4973 = vpop.f32.mrf.mxu0
      %v4974 = vadd.f32 0.0, %v4973
      %4975 = vdwg.mxu0
      %4976 = vrot.lane.b32.xlu0 %v493, 32
      %v4977 = vpop.permute.xlu0 %4976
      %v4980 = vsel %vm3873, %v4385, 0
      %4982 = vmatpush.msra.mxu0 0.0
      %4983 = vmatpush.msra.mxu0 0.0
      %4984 = vmatpush.msra.mxu0 0.0
      %4985 = vmatpush.msra.mxu0 0.0
      %4986 = vmatpush.msra.mxu0 0.0
      %4987 = vmatpush.msra.mxu0 0.0
      %4988 = vmatpush.msra.mxu0 0.0
      %4989 = vmatpush.msra.mxu0 0.0
      %4990 = vmatpush.msra.mxu0 0.0
      %4991 = vmatpush.msra.mxu0 0.0
      %4992 = vmatpush.msra.mxu0 0.0
      %4993 = vmatpush.msra.mxu0 0.0
      %4994 = vmatpush.msra.mxu0 0.0
      %4995 = vmatpush.msra.mxu0 0.0
      %4996 = vmatpush.msra.mxu0 0.0
      %4997 = vmatpush.msra.mxu0 %v4977
      %4998 = vmatmul.f32.gmra.mxu0 %v4980
      %v4999 = vpop.f32.mrf.mxu0
      %v5000 = vadd.f32 0.0, %v4999
      %5001 = vdwg.mxu0
      %5002 = vrot.lane.b32.xlu0 %v472, 64
      %v5003 = vpop.permute.xlu0 %5002
      %v5006 = vsel %vm3873, %v4356, 0
      %5008 = vmatpush.msra.mxu0 0.0
      %5009 = vmatpush.msra.mxu0 0.0
      %5010 = vmatpush.msra.mxu0 0.0
      %5011 = vmatpush.msra.mxu0 0.0
      %5012 = vmatpush.msra.mxu0 0.0
      %5013 = vmatpush.msra.mxu0 0.0
      %5014 = vmatpush.msra.mxu0 0.0
      %5015 = vmatpush.msra.mxu0 0.0
      %5016 = vmatpush.msra.mxu0 0.0
      %5017 = vmatpush.msra.mxu0 0.0
      %5018 = vmatpush.msra.mxu0 0.0
      %5019 = vmatpush.msra.mxu0 0.0
      %5020 = vmatpush.msra.mxu0 0.0
      %5021 = vmatpush.msra.mxu0 0.0
      %5022 = vmatpush.msra.mxu0 0.0
      %5023 = vmatpush.msra.mxu0 %v5003
      %5024 = vmatmul.f32.gmra.mxu0 %v5006
      %v5025 = vpop.f32.mrf.mxu0
      %v5026 = vadd.f32 %v4818, %v5025
      %5027 = vdwg.mxu0
      %5028 = vrot.lane.b32.xlu0 %v475, 64
      %v5029 = vpop.permute.xlu0 %5028
      %v5032 = vsel %vm3873, %v4360, 0
      %5034 = vmatpush.msra.mxu0 0.0
      %5035 = vmatpush.msra.mxu0 0.0
      %5036 = vmatpush.msra.mxu0 0.0
      %5037 = vmatpush.msra.mxu0 0.0
      %5038 = vmatpush.msra.mxu0 0.0
      %5039 = vmatpush.msra.mxu0 0.0
      %5040 = vmatpush.msra.mxu0 0.0
      %5041 = vmatpush.msra.mxu0 0.0
      %5042 = vmatpush.msra.mxu0 0.0
      %5043 = vmatpush.msra.mxu0 0.0
      %5044 = vmatpush.msra.mxu0 0.0
      %5045 = vmatpush.msra.mxu0 0.0
      %5046 = vmatpush.msra.mxu0 0.0
      %5047 = vmatpush.msra.mxu0 0.0
      %5048 = vmatpush.msra.mxu0 0.0
      %5049 = vmatpush.msra.mxu0 %v5029
      %5050 = vmatmul.f32.gmra.mxu0 %v5032
      %v5051 = vpop.f32.mrf.mxu0
      %v5052 = vadd.f32 %v4844, %v5051
      %5053 = vdwg.mxu0
      %5054 = vrot.lane.b32.xlu0 %v478, 64
      %v5055 = vpop.permute.xlu0 %5054
      %v5058 = vsel %vm3873, %v4364, 0
      %5060 = vmatpush.msra.mxu0 0.0
      %5061 = vmatpush.msra.mxu0 0.0
      %5062 = vmatpush.msra.mxu0 0.0
      %5063 = vmatpush.msra.mxu0 0.0
      %5064 = vmatpush.msra.mxu0 0.0
      %5065 = vmatpush.msra.mxu0 0.0
      %5066 = vmatpush.msra.mxu0 0.0
      %5067 = vmatpush.msra.mxu0 0.0
      %5068 = vmatpush.msra.mxu0 0.0
      %5069 = vmatpush.msra.mxu0 0.0
      %5070 = vmatpush.msra.mxu0 0.0
      %5071 = vmatpush.msra.mxu0 0.0
      %5072 = vmatpush.msra.mxu0 0.0
      %5073 = vmatpush.msra.mxu0 0.0
      %5074 = vmatpush.msra.mxu0 0.0
      %5075 = vmatpush.msra.mxu0 %v5055
      %5076 = vmatmul.f32.gmra.mxu0 %v5058
      %v5077 = vpop.f32.mrf.mxu0
      %v5078 = vadd.f32 %v4870, %v5077
      %5079 = vdwg.mxu0
      %5080 = vrot.lane.b32.xlu0 %v481, 64
      %v5081 = vpop.permute.xlu0 %5080
      %v5084 = vsel %vm3873, %v4368, 0
      %5086 = vmatpush.msra.mxu0 0.0
      %5087 = vmatpush.msra.mxu0 0.0
      %5088 = vmatpush.msra.mxu0 0.0
      %5089 = vmatpush.msra.mxu0 0.0
      %5090 = vmatpush.msra.mxu0 0.0
      %5091 = vmatpush.msra.mxu0 0.0
      %5092 = vmatpush.msra.mxu0 0.0
      %5093 = vmatpush.msra.mxu0 0.0
      %5094 = vmatpush.msra.mxu0 0.0
      %5095 = vmatpush.msra.mxu0 0.0
      %5096 = vmatpush.msra.mxu0 0.0
      %5097 = vmatpush.msra.mxu0 0.0
      %5098 = vmatpush.msra.mxu0 0.0
      %5099 = vmatpush.msra.mxu0 0.0
      %5100 = vmatpush.msra.mxu0 0.0
      %5101 = vmatpush.msra.mxu0 %v5081
      %5102 = vmatmul.f32.gmra.mxu0 %v5084
      %v5103 = vpop.f32.mrf.mxu0
      %v5104 = vadd.f32 %v4896, %v5103
      %5105 = vdwg.mxu0
      %5106 = vrot.lane.b32.xlu0 %v484, 64
      %v5107 = vpop.permute.xlu0 %5106
      %v5110 = vsel %vm3873, %v4372, 0
      %5112 = vmatpush.msra.mxu0 0.0
      %5113 = vmatpush.msra.mxu0 0.0
      %5114 = vmatpush.msra.mxu0 0.0
      %5115 = vmatpush.msra.mxu0 0.0
      %5116 = vmatpush.msra.mxu0 0.0
      %5117 = vmatpush.msra.mxu0 0.0
      %5118 = vmatpush.msra.mxu0 0.0
      %5119 = vmatpush.msra.mxu0 0.0
      %5120 = vmatpush.msra.mxu0 0.0
      %5121 = vmatpush.msra.mxu0 0.0
      %5122 = vmatpush.msra.mxu0 0.0
      %5123 = vmatpush.msra.mxu0 0.0
      %5124 = vmatpush.msra.mxu0 0.0
      %5125 = vmatpush.msra.mxu0 0.0
      %5126 = vmatpush.msra.mxu0 0.0
      %5127 = vmatpush.msra.mxu0 %v5107
      %5128 = vmatmul.f32.gmra.mxu0 %v5110
      %v5129 = vpop.f32.mrf.mxu0
      %v5130 = vadd.f32 %v4922, %v5129
      %5131 = vdwg.mxu0
      %5132 = vrot.lane.b32.xlu0 %v487, 64
      %v5133 = vpop.permute.xlu0 %5132
      %v5136 = vsel %vm3873, %v4376, 0
      %5138 = vmatpush.msra.mxu0 0.0
      %5139 = vmatpush.msra.mxu0 0.0
      %5140 = vmatpush.msra.mxu0 0.0
      %5141 = vmatpush.msra.mxu0 0.0
      %5142 = vmatpush.msra.mxu0 0.0
      %5143 = vmatpush.msra.mxu0 0.0
      %5144 = vmatpush.msra.mxu0 0.0
      %5145 = vmatpush.msra.mxu0 0.0
      %5146 = vmatpush.msra.mxu0 0.0
      %5147 = vmatpush.msra.mxu0 0.0
      %5148 = vmatpush.msra.mxu0 0.0
      %5149 = vmatpush.msra.mxu0 0.0
      %5150 = vmatpush.msra.mxu0 0.0
      %5151 = vmatpush.msra.mxu0 0.0
      %5152 = vmatpush.msra.mxu0 0.0
      %5153 = vmatpush.msra.mxu0 %v5133
      %5154 = vmatmul.f32.gmra.mxu0 %v5136
      %v5155 = vpop.f32.mrf.mxu0
      %v5156 = vadd.f32 %v4948, %v5155
      %5157 = vdwg.mxu0
      %5158 = vrot.lane.b32.xlu0 %v490, 64
      %v5159 = vpop.permute.xlu0 %5158
      %v5162 = vsel %vm3873, %v4380, 0
      %5164 = vmatpush.msra.mxu0 0.0
      %5165 = vmatpush.msra.mxu0 0.0
      %5166 = vmatpush.msra.mxu0 0.0
      %5167 = vmatpush.msra.mxu0 0.0
      %5168 = vmatpush.msra.mxu0 0.0
      %5169 = vmatpush.msra.mxu0 0.0
      %5170 = vmatpush.msra.mxu0 0.0
      %5171 = vmatpush.msra.mxu0 0.0
      %5172 = vmatpush.msra.mxu0 0.0
      %5173 = vmatpush.msra.mxu0 0.0
      %5174 = vmatpush.msra.mxu0 0.0
      %5175 = vmatpush.msra.mxu0 0.0
      %5176 = vmatpush.msra.mxu0 0.0
      %5177 = vmatpush.msra.mxu0 0.0
      %5178 = vmatpush.msra.mxu0 0.0
      %5179 = vmatpush.msra.mxu0 %v5159
      %5180 = vmatmul.f32.gmra.mxu0 %v5162
      %v5181 = vpop.f32.mrf.mxu0
      %v5182 = vadd.f32 %v4974, %v5181
      %5183 = vdwg.mxu0
      %5184 = vrot.lane.b32.xlu0 %v493, 64
      %v5185 = vpop.permute.xlu0 %5184
      %v5188 = vsel %vm3873, %v4384, 0
      %5190 = vmatpush.msra.mxu0 0.0
      %5191 = vmatpush.msra.mxu0 0.0
      %5192 = vmatpush.msra.mxu0 0.0
      %5193 = vmatpush.msra.mxu0 0.0
      %5194 = vmatpush.msra.mxu0 0.0
      %5195 = vmatpush.msra.mxu0 0.0
      %5196 = vmatpush.msra.mxu0 0.0
      %5197 = vmatpush.msra.mxu0 0.0
      %5198 = vmatpush.msra.mxu0 0.0
      %5199 = vmatpush.msra.mxu0 0.0
      %5200 = vmatpush.msra.mxu0 0.0
      %5201 = vmatpush.msra.mxu0 0.0
      %5202 = vmatpush.msra.mxu0 0.0
      %5203 = vmatpush.msra.mxu0 0.0
      %5204 = vmatpush.msra.mxu0 0.0
      %5205 = vmatpush.msra.mxu0 %v5185
      %5206 = vmatmul.f32.gmra.mxu0 %v5188
      %v5207 = vpop.f32.mrf.mxu0
      %v5208 = vadd.f32 %v5000, %v5207
      %5209 = vdwg.mxu0
      %v5210 = vmul.f32 %v5026, 0.5
      %v5211 = vmul.f32 %v5052, 0.5
      %v5212 = vmul.f32 %v5078, 0.5
      %v5213 = vmul.f32 %v5104, 0.5
      %v5214 = vmul.f32 %v5130, 0.5
      %v5215 = vmul.f32 %v5156, 0.5
      %v5216 = vmul.f32 %v5182, 0.5
      %v5217 = vmul.f32 %v5208, 0.5
      %5226 = vrot.lane.b32.xlu0 %v5210, 32
      %v5227 = vpop.permute.xlu0 %5226
      %5228 = vrot.lane.b32.xlu0 %v5211, 32
      %v5229 = vpop.permute.xlu0 %5228
      %5230 = vrot.lane.b32.xlu0 %v5212, 32
      %v5231 = vpop.permute.xlu0 %5230
      %5232 = vrot.lane.b32.xlu0 %v5213, 32
      %v5233 = vpop.permute.xlu0 %5232
      %5234 = vrot.lane.b32.xlu0 %v5214, 32
      %v5235 = vpop.permute.xlu0 %5234
      %5236 = vrot.lane.b32.xlu0 %v5215, 32
      %v5237 = vpop.permute.xlu0 %5236
      %5238 = vrot.lane.b32.xlu0 %v5216, 32
      %v5239 = vpop.permute.xlu0 %5238
      %5240 = vrot.lane.b32.xlu0 %v5217, 32
      %v5241 = vpop.permute.xlu0 %5240
      %v5250 = vsel %vm429, %v4786, %v5227
      %v5251 = vsel %vm429, %v4787, %v5229
      %v5252 = vsel %vm429, %v4788, %v5231
      %v5253 = vsel %vm429, %v4789, %v5233
      %v5254 = vsel %vm429, %v4790, %v5235
      %v5255 = vsel %vm429, %v4791, %v5237
      %v5256 = vsel %vm429, %v4792, %v5239
      %v5257 = vsel %vm429, %v4793, %v5241
      %v5258 = vld [vmem:[%s7] sm:$0x1]
      %v5260 = vperm.slane %v5258, 0
      %v5262 = vadd.f32 %v5250, %v5260
      %v5263 = vadd.f32 %v5251, %v5260
      %v5264 = vadd.f32 %v5252, %v5260
      %v5265 = vadd.f32 %v5253, %v5260
      %v5266 = vadd.f32 %v5254, %v5260
      %v5267 = vadd.f32 %v5255, %v5260
      %v5268 = vadd.f32 %v5256, %v5260
      %v5269 = vadd.f32 %v5257, %v5260
      %vm5270 = vcmp.gt.f32.partialorder %v5262, 0.0
      %vm5271 = vcmp.gt.f32.partialorder %v5263, 0.0
      %vm5272 = vcmp.gt.f32.partialorder %v5264, 0.0
      %vm5273 = vcmp.gt.f32.partialorder %v5265, 0.0
      %vm5274 = vcmp.gt.f32.partialorder %v5266, 0.0
      %vm5275 = vcmp.gt.f32.partialorder %v5267, 0.0
      %vm5276 = vcmp.gt.f32.partialorder %v5268, 0.0
      %vm5277 = vcmp.gt.f32.partialorder %v5269, 0.0
      %v5278 = vmul.f32 %v5262, 0.2
      %v5279 = vmul.f32 %v5263, 0.2
      %v5280 = vmul.f32 %v5264, 0.2
      %v5281 = vmul.f32 %v5265, 0.2
      %v5282 = vmul.f32 %v5266, 0.2
      %v5283 = vmul.f32 %v5267, 0.2
      %v5284 = vmul.f32 %v5268, 0.2
      %v5285 = vmul.f32 %v5269, 0.2
      %v5286 = vsel %vm5270, %v5262, %v5278
      %v5287 = vsel %vm5271, %v5263, %v5279
      %v5288 = vsel %vm5272, %v5264, %v5280
      %v5289 = vsel %vm5273, %v5265, %v5281
      %v5290 = vsel %vm5274, %v5266, %v5282
      %v5291 = vsel %vm5275, %v5267, %v5283
      %v5292 = vsel %vm5276, %v5268, %v5284
      %v5293 = vsel %vm5277, %v5269, %v5285
      %v5294 = vld [vmem:[%s8] sm:$0xff]
      %v5295 = vld [vmem:[%s8 + $0x8] sm:$0xff]
      %v5296 = vld [vmem:[%s8 + $0x10] sm:$0xff]
      %v5297 = vld [vmem:[%s8 + $0x18] sm:$0xff]
      %v5298 = vld [vmem:[%s8 + $0x20] sm:$0xff]
      %v5299 = vld [vmem:[%s8 + $0x28] sm:$0xff]
      %v5300 = vld [vmem:[%s8 + $0x30] sm:$0xff]
      %v5301 = vld [vmem:[%s8 + $0x38] sm:$0xff]
      %v5302 = vld [vmem:[%s9] sm:$0x1]
      %v5304 = vperm.slane %v5302, 0
      %vm5306 = vcmask 523264
      %v5308 = vsel %vm5306, %v5286, 0
      %v5311 = vsel %vm5306, %v5287, 0
      %v5314 = vsel %vm5306, %v5288, 0
      %v5317 = vsel %vm5306, %v5289, 0
      %v5320 = vsel %vm5306, %v5290, 0
      %v5323 = vsel %vm5306, %v5291, 0
      %v5326 = vsel %vm5306, %v5292, 0
      %v5329 = vsel %vm5306, %v5293, 0
      %5331 = vmatpush.msra.mxu0 0.0
      %5332 = vmatpush.msra.mxu0 0.0
      %5333 = vmatpush.msra.mxu0 0.0
      %5334 = vmatpush.msra.mxu0 0.0
      %5335 = vmatpush.msra.mxu0 0.0
      %5336 = vmatpush.msra.mxu0 0.0
      %5337 = vmatpush.msra.mxu0 0.0
      %5338 = vmatpush.msra.mxu0 0.0
      %5339 = vmatpush.msra.mxu0 %v5301
      %5340 = vmatpush.msra.mxu0 %v5300
      %5341 = vmatpush.msra.mxu0 %v5299
      %5342 = vmatpush.msra.mxu0 %v5298
      %5343 = vmatpush.msra.mxu0 %v5297
      %5344 = vmatpush.msra.mxu0 %v5296
      %5345 = vmatpush.msra.mxu0 %v5295
      %5346 = vmatpush.msra.mxu0 %v5294
      %5347 = vmatmul.f32.gmra.mxu0 %v5308
      %v5348 = vpop.f32.mrf.mxu0
      %v5349 = vadd.f32 %v5304, %v5348
      %5350 = vmatmul.f32.gmra.mxu0 %v5311
      %v5351 = vpop.f32.mrf.mxu0
      %v5352 = vadd.f32 %v5304, %v5351
      %5353 = vmatmul.f32.gmra.mxu0 %v5314
      %v5354 = vpop.f32.mrf.mxu0
      %v5355 = vadd.f32 %v5304, %v5354
      %5356 = vmatmul.f32.gmra.mxu0 %v5317
      %v5357 = vpop.f32.mrf.mxu0
      %v5358 = vadd.f32 %v5304, %v5357
      %5359 = vmatmul.f32.gmra.mxu0 %v5320
      %v5360 = vpop.f32.mrf.mxu0
      %v5361 = vadd.f32 %v5304, %v5360
      %5362 = vmatmul.f32.gmra.mxu0 %v5323
      %v5363 = vpop.f32.mrf.mxu0
      %v5364 = vadd.f32 %v5304, %v5363
      %5365 = vmatmul.f32.gmra.mxu0 %v5326
      %v5366 = vpop.f32.mrf.mxu0
      %v5367 = vadd.f32 %v5304, %v5366
      %5368 = vmatmul.f32.gmra.mxu0 %v5329
      %v5369 = vpop.f32.mrf.mxu0
      %v5370 = vadd.f32 %v5304, %v5369
      %5371 = vdwg.mxu0
      %5380 = vrot.lane.b32.xlu0 %v5349, 96
      %v5381 = vpop.permute.xlu0 %5380
      %5382 = vrot.lane.b32.xlu0 %v5352, 96
      %v5383 = vpop.permute.xlu0 %5382
      %5384 = vrot.lane.b32.xlu0 %v5355, 96
      %v5385 = vpop.permute.xlu0 %5384
      %5386 = vrot.lane.b32.xlu0 %v5358, 96
      %v5387 = vpop.permute.xlu0 %5386
      %5388 = vrot.lane.b32.xlu0 %v5361, 96
      %v5389 = vpop.permute.xlu0 %5388
      %5390 = vrot.lane.b32.xlu0 %v5364, 96
      %v5391 = vpop.permute.xlu0 %5390
      %5392 = vrot.lane.b32.xlu0 %v5367, 96
      %v5393 = vpop.permute.xlu0 %5392
      %5394 = vrot.lane.b32.xlu0 %v5370, 96
      %v5395 = vpop.permute.xlu0 %5394
      %v5404 = vmax.f32 %v5349, %v5381
      %v5405 = vmax.f32 %v5352, %v5383
      %v5406 = vmax.f32 %v5355, %v5385
      %v5407 = vmax.f32 %v5358, %v5387
      %v5408 = vmax.f32 %v5361, %v5389
      %v5409 = vmax.f32 %v5364, %v5391
      %v5410 = vmax.f32 %v5367, %v5393
      %v5411 = vmax.f32 %v5370, %v5395
      %v5412 = vsub.f32 %v5349, %v5404
      %v5413 = vsub.f32 %v5352, %v5405
      %v5414 = vsub.f32 %v5355, %v5406
      %v5415 = vsub.f32 %v5358, %v5407
      %v5416 = vsub.f32 %v5361, %v5408
      %v5417 = vsub.f32 %v5364, %v5409
      %v5418 = vsub.f32 %v5367, %v5410
      %v5419 = vsub.f32 %v5370, %v5411
      %v5420 = vmul.f32 %v5412, 1.442695
      %v5421 = vpow.pop %v5420
      %v5422 = vmul.f32 %v5413, 1.442695
      %v5423 = vpow.pop %v5422
      %v5424 = vmul.f32 %v5414, 1.442695
      %v5425 = vpow.pop %v5424
      %v5426 = vmul.f32 %v5415, 1.442695
      %v5427 = vpow.pop %v5426
      %v5428 = vmul.f32 %v5416, 1.442695
      %v5429 = vpow.pop %v5428
      %v5430 = vmul.f32 %v5417, 1.442695
      %v5431 = vpow.pop %v5430
      %v5432 = vmul.f32 %v5418, 1.442695
      %v5433 = vpow.pop %v5432
      %v5434 = vmul.f32 %v5419, 1.442695
      %v5435 = vpow.pop %v5434
      %5444 = vrot.lane.b32.xlu0 %v5404, 32
      %v5445 = vpop.permute.xlu0 %5444
      %5446 = vrot.lane.b32.xlu0 %v5405, 32
      %v5447 = vpop.permute.xlu0 %5446
      %5448 = vrot.lane.b32.xlu0 %v5406, 32
      %v5449 = vpop.permute.xlu0 %5448
      %5450 = vrot.lane.b32.xlu0 %v5407, 32
      %v5451 = vpop.permute.xlu0 %5450
      %5452 = vrot.lane.b32.xlu0 %v5408, 32
      %v5453 = vpop.permute.xlu0 %5452
      %5454 = vrot.lane.b32.xlu0 %v5409, 32
      %v5455 = vpop.permute.xlu0 %5454
      %5456 = vrot.lane.b32.xlu0 %v5410, 32
      %v5457 = vpop.permute.xlu0 %5456
      %5458 = vrot.lane.b32.xlu0 %v5411, 32
      %v5459 = vpop.permute.xlu0 %5458
      %v5468 = vsub.f32 %v5349, %v5445
      %v5469 = vsub.f32 %v5352, %v5447
      %v5470 = vsub.f32 %v5355, %v5449
      %v5471 = vsub.f32 %v5358, %v5451
      %v5472 = vsub.f32 %v5361, %v5453
      %v5473 = vsub.f32 %v5364, %v5455
      %v5474 = vsub.f32 %v5367, %v5457
      %v5475 = vsub.f32 %v5370, %v5459
      %v5476 = vmul.f32 %v5468, 1.442695
      %v5477 = vpow.pop %v5476
      %v5478 = vmul.f32 %v5469, 1.442695
      %v5479 = vpow.pop %v5478
      %v5480 = vmul.f32 %v5470, 1.442695
      %v5481 = vpow.pop %v5480
      %v5482 = vmul.f32 %v5471, 1.442695
      %v5483 = vpow.pop %v5482
      %v5484 = vmul.f32 %v5472, 1.442695
      %v5485 = vpow.pop %v5484
      %v5486 = vmul.f32 %v5473, 1.442695
      %v5487 = vpow.pop %v5486
      %v5488 = vmul.f32 %v5474, 1.442695
      %v5489 = vpow.pop %v5488
      %v5490 = vmul.f32 %v5475, 1.442695
      %v5491 = vpow.pop %v5490
      %5500 = vrot.lane.b32.xlu0 %v5477, 96
      %v5501 = vpop.permute.xlu0 %5500
      %5502 = vrot.lane.b32.xlu0 %v5479, 96
      %v5503 = vpop.permute.xlu0 %5502
      %5504 = vrot.lane.b32.xlu0 %v5481, 96
      %v5505 = vpop.permute.xlu0 %5504
      %5506 = vrot.lane.b32.xlu0 %v5483, 96
      %v5507 = vpop.permute.xlu0 %5506
      %5508 = vrot.lane.b32.xlu0 %v5485, 96
      %v5509 = vpop.permute.xlu0 %5508
      %5510 = vrot.lane.b32.xlu0 %v5487, 96
      %v5511 = vpop.permute.xlu0 %5510
      %5512 = vrot.lane.b32.xlu0 %v5489, 96
      %v5513 = vpop.permute.xlu0 %5512
      %5514 = vrot.lane.b32.xlu0 %v5491, 96
      %v5515 = vpop.permute.xlu0 %5514
      %v5524 = vadd.f32 %v5421, %v5501
      %v5525 = vadd.f32 %v5423, %v5503
      %v5526 = vadd.f32 %v5425, %v5505
      %v5527 = vadd.f32 %v5427, %v5507
      %v5528 = vadd.f32 %v5429, %v5509
      %v5529 = vadd.f32 %v5431, %v5511
      %v5530 = vadd.f32 %v5433, %v5513
      %v5531 = vadd.f32 %v5435, %v5515
      %v5532 = vrcp.pop %v5524
      %v5533 = vrcp.pop %v5525
      %v5534 = vrcp.pop %v5526
      %v5535 = vrcp.pop %v5527
      %v5536 = vrcp.pop %v5528
      %v5537 = vrcp.pop %v5529
      %v5538 = vrcp.pop %v5530
      %v5539 = vrcp.pop %v5531
      %v5540 = vmul.f32 %v5524, %v5532
      %v5541 = vmul.f32 %v5525, %v5533
      %v5542 = vmul.f32 %v5526, %v5534
      %v5543 = vmul.f32 %v5527, %v5535
      %v5544 = vmul.f32 %v5528, %v5536
      %v5545 = vmul.f32 %v5529, %v5537
      %v5546 = vmul.f32 %v5530, %v5538
      %v5547 = vmul.f32 %v5531, %v5539
      %v5548 = vsub.f32 2.0, %v5540
      %v5549 = vsub.f32 2.0, %v5541
      %v5550 = vsub.f32 2.0, %v5542
      %v5551 = vsub.f32 2.0, %v5543
      %v5552 = vsub.f32 2.0, %v5544
      %v5553 = vsub.f32 2.0, %v5545
      %v5554 = vsub.f32 2.0, %v5546
      %v5555 = vsub.f32 2.0, %v5547
      %v5556 = vmul.f32 %v5532, %v5548
      %v5557 = vmul.f32 %v5533, %v5549
      %v5558 = vmul.f32 %v5534, %v5550
      %v5559 = vmul.f32 %v5535, %v5551
      %v5560 = vmul.f32 %v5536, %v5552
      %v5561 = vmul.f32 %v5537, %v5553
      %v5562 = vmul.f32 %v5538, %v5554
      %v5563 = vmul.f32 %v5539, %v5555
      %v5564 = vmul.f32 %v5421, %v5556
      %v5565 = vmul.f32 %v5423, %v5557
      %v5566 = vmul.f32 %v5425, %v5558
      %v5567 = vmul.f32 %v5427, %v5559
      %v5568 = vmul.f32 %v5429, %v5560
      %v5569 = vmul.f32 %v5431, %v5561
      %v5570 = vmul.f32 %v5433, %v5562
      %v5571 = vmul.f32 %v5435, %v5563
      %5580 = vrot.lane.b32.xlu0 %v5556, 32
      %v5581 = vpop.permute.xlu0 %5580
      %5582 = vrot.lane.b32.xlu0 %v5557, 32
      %v5583 = vpop.permute.xlu0 %5582
      %5584 = vrot.lane.b32.xlu0 %v5558, 32
      %v5585 = vpop.permute.xlu0 %5584
      %5586 = vrot.lane.b32.xlu0 %v5559, 32
      %v5587 = vpop.permute.xlu0 %5586
      %5588 = vrot.lane.b32.xlu0 %v5560, 32
      %v5589 = vpop.permute.xlu0 %5588
      %5590 = vrot.lane.b32.xlu0 %v5561, 32
      %v5591 = vpop.permute.xlu0 %5590
      %5592 = vrot.lane.b32.xlu0 %v5562, 32
      %v5593 = vpop.permute.xlu0 %5592
      %5594 = vrot.lane.b32.xlu0 %v5563, 32
      %v5595 = vpop.permute.xlu0 %5594
      %v5604 = vmul.f32 %v5477, %v5581
      %v5605 = vmul.f32 %v5479, %v5583
      %v5606 = vmul.f32 %v5481, %v5585
      %v5607 = vmul.f32 %v5483, %v5587
      %v5608 = vmul.f32 %v5485, %v5589
      %v5609 = vmul.f32 %v5487, %v5591
      %v5610 = vmul.f32 %v5489, %v5593
      %v5611 = vmul.f32 %v5491, %v5595
      %v5612 = vsel %vm429, %v5564, %v5604
      %v5613 = vsel %vm429, %v5565, %v5605
      %v5614 = vsel %vm429, %v5566, %v5606
      %v5615 = vsel %vm429, %v5567, %v5607
      %v5616 = vsel %vm429, %v5568, %v5608
      %v5617 = vsel %vm429, %v5569, %v5609
      %v5618 = vsel %vm429, %v5570, %v5610
      %v5619 = vsel %vm429, %v5571, %v5611
      %v5620 = vsel %vm5306, %v5612, 0.0
      %v5621 = vsel %vm5306, %v5613, 0.0
      %v5622 = vsel %vm5306, %v5614, 0.0
      %v5623 = vsel %vm5306, %v5615, 0.0
      %v5624 = vsel %vm5306, %v5616, 0.0
      %v5625 = vsel %vm5306, %v5617, 0.0
      %v5626 = vsel %vm5306, %v5618, 0.0
      %v5627 = vsel %vm5306, %v5619, 0.0
      %5628 = vst [vmem:[%s405] sm:$0xff] %v5620
      %5629 = vst [vmem:[%s405 + $0x8] sm:$0xff] %v5621
      %5630 = vst [vmem:[%s405 + $0x10] sm:$0xff] %v5622
      %5631 = vst [vmem:[%s405 + $0x18] sm:$0xff] %v5623
      %5632 = vst [vmem:[%s405 + $0x20] sm:$0xff] %v5624
      %5633 = vst [vmem:[%s405 + $0x28] sm:$0xff] %v5625
      %5634 = vst [vmem:[%s405 + $0x30] sm:$0xff] %v5626
      %5635 = vst [vmem:[%s405 + $0x38] sm:$0xff] %v5627
      %s5636 = smul.u32 8, %s21
      %p5637 = scmp.lt.s32.totalorder %s5636, 15
      %s5638 = scalar_select %p5637, %s5636, 15
      %s5639 = smul.addr %s5638, 8
      %s5640 = scalar_lea.vmem %s10, %s5639
      // Predicated region
      $region61: #{gnn_forward.1} parent=59 // pred_check
        %p5641 = pneg %p264
      $region62: #{gnn_forward.1} parent=59 // pred_check_branch
        %5643 = sbr.rel (%p5641) target = $region64
      $region63: #{gnn_forward.1} parent=59 // pred_region
        %s5644 = smul.u32 8, %s21
      $region64: #{gnn_forward.1} parent=59 // pred_fallthru
        _
    $region60: #{gnn_forward.1} parent=5 // pred_fallthru
      _
    %p5645 = scmp.le.s32.totalorder 2, %s16
    // Predicated region
    $region65: #{gnn_forward.1} parent=5 // pred_check
      %p5646 = pneg %p5645
    $region66: #{gnn_forward.1} parent=5 // pred_check_branch
      %5648 = sbr.rel (%p5646) target = $region68
    $region67: #{gnn_forward.1} parent=5 // pred_region
      %s5649 = ssub.s32 %s16, 2
      // Predicated region
      $region69: #{gnn_forward.1} parent=67 // pred_check
        %p5650 = pneg %p270
      $region70: #{gnn_forward.1} parent=67 // pred_check_branch
        %5652 = sbr.rel (%p5650) target = $region72
      $region71: #{gnn_forward.1} parent=67 // pred_region
        %s5653 = smul.u32 8, %s22
        %p5654 = scmp.lt.s32.totalorder %s5653, 15
        %s5655 = scalar_select %p5654, %s5653, 15
        %s5656 = smul.addr %s5655, 8
        %s5657 = scalar_lea.vmem %s10, %s5656
      $region72: #{gnn_forward.1} parent=67 // pred_fallthru
        _
    $region68: #{gnn_forward.1} parent=5 // pred_fallthru
      _
  $region6: #{gnn_forward.1} parent=0 // loop_footer
    %s20 = sadd.s32 1, %s16
  $region7: #{gnn_forward.1} parent=0 // loop_footer_branch
    %15 = sbr.rel target = $region3
  $region8: #{gnn_forward.1} parent=0 // loop_exit
    _

</llo_original>
